<compile_context>
chip_gen: v7x
topology: tpu7x:2x2x1
jax: 0.10.0
libtpu: 0.0.40
codegen_flags: <defaults>
</compile_context>

<pallas_src>
import math

import jax
import jax.numpy as jnp
import numpy as np
from jax.experimental import pallas as pl
from jax.experimental.pallas import tpu as pltpu

# ----------------------------- model config ---------------------------------
N_MODALITIES = 2
INPUT_DIM = 16                 # same input_dim for every modality (input_dims=[16, 16])
BATCH = 2
SEQ_LEN = 8
NUM_LAYERS = 2
NHEAD = 8
DIM_FF = 64
DENSE_UNITS = 32
D_MODEL = NHEAD * math.ceil(INPUT_DIM / NHEAD)   # 16
HEAD_DIM = D_MODEL // NHEAD                      # 2
LN_EPS = 1e-5
assert D_MODEL % NHEAD == 0


# ------------------------------ kernel body ----------------------------------
def late_fusion_kernel(
    x_ref, pe_ref,
    w_in_ref, w_qkv_ref, w_att_ref, w_ff1_ref, w_ff2_ref,
    w_fc1_ref, w_fuse_ref, w_head_ref,
    bvec_ref, b_qkv_ref, b_ff1_ref, b_tail_ref,
    out_ref,
):
    bt, seq, dfx = x_ref.shape
    d = w_in_ref.shape[-1]                      # fused model width (M * D_MODEL = 32)
    n_layers = w_qkv_ref.shape[0]
    nh = N_MODALITIES * NHEAD                   # fused head count (16)
    n_tok = bt * seq

    def layer_norm(x, gamma, beta):
        # per-modality LayerNorm over each D_MODEL-wide block (exact f32 math)
        parts = []
        for m in range(N_MODALITIES):
            xm = x[:, m * D_MODEL:(m + 1) * D_MODEL]
            mu = jnp.mean(xm, axis=-1, keepdims=True)
            xc = xm - mu
            var = jnp.mean(xc * xc, axis=-1, keepdims=True)
            parts.append(xc * jax.lax.rsqrt(var + LN_EPS))
        return jnp.concatenate(parts, axis=-1) * gamma + beta

    # ---- input projection (block-diagonal over modality) + positional encoding ----
    x = x_ref[...].reshape(n_tok, dfx)
    h = jnp.dot(x, w_in_ref[...], preferred_element_type=jnp.float32) + bvec_ref[0]
    h = (h.reshape(bt, seq, d) + pe_ref[...][None]).reshape(n_tok, d)

    for l in range(n_layers):
        base = 1 + 6 * l
        # fused QKV for all heads of both modalities; columns pre-permuted to
        # [Qe|Qo|Ke|Ko|Ve|Vo] and 1/sqrt(head_dim) folded into Q (host side).
        qkv = (jnp.dot(h, w_qkv_ref[l], preferred_element_type=jnp.float32)
               + b_qkv_ref[l])                                     # (N, 3*d)
        qe = qkv[:, 0 * nh:1 * nh].reshape(bt, seq, nh)
        qo = qkv[:, 1 * nh:2 * nh].reshape(bt, seq, nh)
        ke = qkv[:, 2 * nh:3 * nh].reshape(bt, seq, nh)
        ko = qkv[:, 3 * nh:4 * nh].reshape(bt, seq, nh)
        ve = qkv[:, 4 * nh:5 * nh].reshape(bt, seq, nh)
        vo = qkv[:, 5 * nh:6 * nh].reshape(bt, seq, nh)

        # all 16 heads at once: the HEAD_DIM=2 contraction is expanded into two
        # broadcasted multiply-adds (VPU); softmax over k (sublane reductions).
        s = (qe[:, :, None, :] * ke[:, None, :, :]
             + qo[:, :, None, :] * ko[:, None, :, :])              # (bt, q, k, nh)
        s = s - jnp.max(s, axis=2, keepdims=True)
        p = jnp.exp(s)
        p = p / jnp.sum(p, axis=2, keepdims=True)                  # exact divide
        oe = jnp.sum(p * ve[:, None, :, :], axis=2).reshape(n_tok, nh)
        oo = jnp.sum(p * vo[:, None, :, :], axis=2).reshape(n_tok, nh)
        # out-projection split into e/o row blocks -> no lane concatenate
        attn = (jnp.dot(oe, w_att_ref[l, 0], preferred_element_type=jnp.float32)
                + jnp.dot(oo, w_att_ref[l, 1], preferred_element_type=jnp.float32)
                + bvec_ref[base])

        # residual + post-LN (dropout = identity at inference)
        h = layer_norm(h + attn, bvec_ref[base + 1], bvec_ref[base + 2])

        # feed-forward (block-diagonal over modality)
        ff = (jnp.dot(h, w_ff1_ref[l], preferred_element_type=jnp.float32)
              + b_ff1_ref[l])
        ff = jnp.maximum(ff, 0.0)
        ff = (jnp.dot(ff, w_ff2_ref[l], preferred_element_type=jnp.float32)
              + bvec_ref[base + 3])
        h = layer_norm(h + ff, bvec_ref[base + 4], bvec_ref[base + 5])

    # mean pool over sequence, per-modality fc1 (block-diag) + relu,
    # fusion_fc (plain dot on already-concatenated features) + relu, output head.
    pooled = jnp.mean(h.reshape(bt, seq, d), axis=1)                # (bt, d)
    f = jnp.dot(pooled, w_fc1_ref[...], preferred_element_type=jnp.float32) + b_tail_ref[0]
    f = jnp.maximum(f, 0.0)                                         # (bt, M*U)
    z = (jnp.dot(f, w_fuse_ref[...], preferred_element_type=jnp.float32)
         + b_tail_ref[1][:DENSE_UNITS])
    z = jnp.maximum(z, 0.0)                                         # (bt, U)
    y = (jnp.dot(z, w_head_ref[...], preferred_element_type=jnp.float32)
         + b_tail_ref[2][:1])
    out_ref[...] = jax.nn.sigmoid(y)                                # (bt, 1)


# ------------------------------ wrapper --------------------------------------
def _estimate_vmem_bytes(tile_b):
    """Rough per-grid-step VMEM working set (bytes, f32) for a batch tile."""
    d = N_MODALITIES * D_MODEL
    nh = N_MODALITIES * NHEAD
    n_tok = tile_b * SEQ_LEN
    x_blk = 2 * tile_b * SEQ_LEN * (N_MODALITIES * INPUT_DIM)      # double-buffered input
    act = n_tok * (4 * d + 3 * d + N_MODALITIES * DIM_FF)          # h / residual / qkv / ff rows
    attn = 3 * tile_b * SEQ_LEN * SEQ_LEN * nh                     # s, p, p*v temporaries
    weights = 2 * (NUM_LAYERS * (3 * d * d + 2 * d * N_MODALITIES * DIM_FF + d * d)
                   + 4 * d * d)
    return 4 * (x_blk + act + attn + weights) + (1 << 20)


def _pick_tile_b(batch, budget_bytes=40 * 1024 * 1024):
    # Large tiles amortize the ~0.35us fixed per-grid-step cost and keep rows
    # lane-dense; the budget keeps the working set inside v7x's 64 MiB physical
    # VMEM (and v5e/v6e scoped limits) with headroom for compiler internals.
    for t in (2048, 1024, 512, 256, 128):
        if batch % t == 0 and _estimate_vmem_bytes(t) <= budget_bytes:
            return t
    return batch        # small batches: one grid step with the whole batch resident


def late_fusion_transformer(x_list, packed):
    """x_list: list of (B, S, INPUT_DIM) f32 arrays (one per modality) -> (B, 1)."""
    # Modality fusion: concatenate features so one block-diagonal matmul chain
    # processes both modalities (2x lane density, half the instruction count).
    x = jnp.concatenate([xm.astype(jnp.float32) for xm in x_list], axis=-1)  # (B, S, M*Din)
    batch, seq, dfx = x.shape
    tile_b = _pick_tile_b(batch)
    grid = (batch // tile_b,)
    vmem_limit = int(min(48 * 1024 * 1024,
                         max(32 * 1024 * 1024, 2 * _estimate_vmem_bytes(tile_b))))

    def whole(a):       # weights: VMEM-resident, constant block across grid steps
        nd = a.ndim
        return pl.BlockSpec(a.shape, lambda i, _n=nd: (0,) * _n)

    in_specs = [pl.BlockSpec((tile_b, seq, dfx), lambda i: (i, 0, 0))]
    in_specs += [whole(a) for a in packed]

    return pl.pallas_call(
        late_fusion_kernel,
        out_shape=jax.ShapeDtypeStruct((batch, 1), jnp.float32),
        grid=grid,
        in_specs=in_specs,
        out_specs=pl.BlockSpec((tile_b, 1), lambda i: (i, 0)),
        compiler_params=pltpu.CompilerParams(
            dimension_semantics=("parallel",),   # batch tiles split across TCs when grid > 1
            vmem_limit_bytes=vmem_limit,
        ),
    )(x, *packed)


# ------------------------- parameters (PyTorch layout) ------------------------
def make_params(key):
    def init(k, shape, scale=0.05):
        return (scale * jax.random.normal(k, shape)).astype(jnp.float32)

    ks = iter(jax.random.split(key, 16))

    # sinusoidal positional encoding (D_MODEL is even here)
    position = np.arange(SEQ_LEN, dtype=np.float32)[:, None]
    div_term = np.exp(np.arange(0, D_MODEL, 2, dtype=np.float32)
                      * (-math.log(10000.0) / D_MODEL))
    pe = np.zeros((SEQ_LEN, D_MODEL), dtype=np.float32)
    pe[:, 0::2] = np.sin(position * div_term)
    pe[:, 1::2] = np.cos(position * div_term)

    M, L = N_MODALITIES, NUM_LAYERS
    return dict(
        pe=jnp.asarray(pe),
        wp=init(next(ks), (M, D_MODEL, INPUT_DIM)), bp=init(next(ks), (M, D_MODEL)),
        win=init(next(ks), (M, L, 3 * D_MODEL, D_MODEL)), bin=init(next(ks), (M, L, 3 * D_MODEL)),
        wo=init(next(ks), (M, L, D_MODEL, D_MODEL)), bo=init(next(ks), (M, L, D_MODEL)),
        ln1g=jnp.ones((M, L, D_MODEL), jnp.float32), ln1b=jnp.zeros((M, L, D_MODEL), jnp.float32),
        w1=init(next(ks), (M, L, DIM_FF, D_MODEL)), b1=init(next(ks), (M, L, DIM_FF)),
        w2=init(next(ks), (M, L, D_MODEL, DIM_FF)), b2=init(next(ks), (M, L, D_MODEL)),
        ln2g=jnp.ones((M, L, D_MODEL), jnp.float32), ln2b=jnp.zeros((M, L, D_MODEL), jnp.float32),
        wfc1=init(next(ks), (M, DENSE_UNITS, D_MODEL)), bfc1=init(next(ks), (M, DENSE_UNITS)),
        wfuse=init(next(ks), (DENSE_UNITS, M * DENSE_UNITS)), bfuse=init(next(ks), (DENSE_UNITS,)),
        wout=init(next(ks), (1, DENSE_UNITS)), bout=init(next(ks), (1,)),
    )


def _block_diag(blocks):
    rows = sum(b.shape[0] for b in blocks)
    cols = sum(b.shape[1] for b in blocks)
    out = jnp.zeros((rows, cols), jnp.float32)
    r = c = 0
    for b in blocks:
        out = out.at[r:r + b.shape[0], c:c + b.shape[1]].set(b)
        r += b.shape[0]
        c += b.shape[1]
    return out


def pack_params(raw):
    """PyTorch-convention params -> fused block-diagonal / pre-transposed layout."""
    Dm, H, Hd = D_MODEL, NHEAD, HEAD_DIM
    M, L, F, U = N_MODALITIES, NUM_LAYERS, DIM_FF, DENSE_UNITS
    D, NHt = M * Dm, M * H
    perm = [np.arange(H) * Hd + c for c in range(Hd)]   # head-dim component c across heads
    scale = 1.0 / math.sqrt(Hd)
    cat = jnp.concatenate

    pe_f = cat([raw['pe']] * M, axis=-1)                                   # (S, D)
    w_in = _block_diag([raw['wp'][m].T for m in range(M)])                 # (M*Din, D)
    bvec_rows = [cat([raw['bp'][m] for m in range(M)])]                    # b_in

    w_qkv_l, b_qkv_l, w_att_l, w_ff1_l, b_ff1_l, w_ff2_l = [], [], [], [], [], []
    for l in range(L):
        win, bi = raw['win'][:, l], raw['bin'][:, l]                       # (M,3Dm,Dm), (M,3Dm)
        blocks = [(win[:, :Dm, :], bi[:, :Dm], scale),                     # Q (scale folded in)
                  (win[:, Dm:2 * Dm, :], bi[:, Dm:2 * Dm], 1.0),           # K
                  (win[:, 2 * Dm:, :], bi[:, 2 * Dm:], 1.0)]               # V
        wcols, bcols = [], []
        for w, b, sc in blocks:
            for c in range(Hd):
                wcols.append(_block_diag([(w[m][perm[c], :] * sc).T for m in range(M)]))
                bcols.append(cat([b[m][perm[c]] * sc for m in range(M)]))
        w_qkv_l.append(cat(wcols, axis=1))                                 # (D, 3D): [Qe|Qo|Ke|Ko|Ve|Vo]
        b_qkv_l.append(cat(bcols))                                         # (3D,)
        w_att_l.append(jnp.stack(
            [_block_diag([raw['wo'][m, l][:, perm[c]].T for m in range(M)])
             for c in range(Hd)]))                                         # (Hd, NHt, D)
        w_ff1_l.append(_block_diag([raw['w1'][m, l].T for m in range(M)])) # (D, M*F)
        b_ff1_l.append(cat([raw['b1'][m, l] for m in range(M)]))           # (M*F,)
        w_ff2_l.append(_block_diag([raw['w2'][m, l].T for m in range(M)])) # (M*F, D)
        bvec_rows += [cat([raw['bo'][m, l] for m in range(M)]),
                      cat([raw['ln1g'][m, l] for m in range(M)]),
                      cat([raw['ln1b'][m, l] for m in range(M)]),
                      cat([raw['b2'][m, l] for m in range(M)]),
                      cat([raw['ln2g'][m, l] for m in range(M)]),
                      cat([raw['ln2b'][m, l] for m in range(M)])]

    w_fc1 = _block_diag([raw['wfc1'][m].T for m in range(M)])              # (D, M*U)
    w_fuse = raw['wfuse'].T                                                # (M*U, U)
    w_head = raw['wout'].T                                                 # (U, 1)

    bvec = jnp.stack(bvec_rows)                                            # (1+6L, D)
    b_tail = jnp.zeros((3, M * U), jnp.float32)
    b_tail = b_tail.at[0, :].set(cat([raw['bfc1'][m] for m in range(M)]))
    b_tail = b_tail.at[1, :U].set(raw['bfuse'])
    b_tail = b_tail.at[2, 0].set(raw['bout'][0])

    # shape guards (review: keep the bias packing from silently misaligning)
    assert bvec.shape == (1 + 6 * L, D), bvec.shape
    assert b_tail.shape == (3, M * U) and M * U >= U, b_tail.shape
    assert w_qkv_l[0].shape == (D, 3 * D) and w_att_l[0].shape == (Hd, NHt, D)
    assert w_ff1_l[0].shape == (D, M * F) and w_ff2_l[0].shape == (M * F, D)

    return (pe_f, w_in,
            jnp.stack(w_qkv_l), jnp.stack(w_att_l),
            jnp.stack(w_ff1_l), jnp.stack(w_ff2_l),
            w_fc1, w_fuse, w_head,
            bvec, jnp.stack(b_qkv_l), jnp.stack(b_ff1_l), b_tail)


# --------------------------- pure-JAX reference -------------------------------
def _ln_ref(x, g, b):
    mu = x.mean(axis=-1, keepdims=True)
    var = ((x - mu) ** 2).mean(axis=-1, keepdims=True)
    return (x - mu) / jnp.sqrt(var + LN_EPS) * g + b


def reference_forward(x_list, raw):
    feats = []
    for m in range(N_MODALITIES):
        h = x_list[m] @ raw['wp'][m].T + raw['bp'][m]
        h = h + raw['pe'][None]
        for l in range(NUM_LAYERS):
            qkv = h @ raw['win'][m, l].T + raw['bin'][m, l]
            q, k, v = (qkv[..., :D_MODEL], qkv[..., D_MODEL:2 * D_MODEL], qkv[..., 2 * D_MODEL:])
            b = h.shape[0]
            split = lambda t: t.reshape(b, SEQ_LEN, NHEAD, HEAD_DIM).transpose(0, 2, 1, 3)
            qh, kh, vh = split(q), split(k), split(v)
            s = jnp.einsum('bhqd,bhkd->bhqk', qh, kh) / math.sqrt(HEAD_DIM)
            p = jax.nn.softmax(s, axis=-1)
            o = jnp.einsum('bhqk,bhkd->bhqd', p, vh).transpose(0, 2, 1, 3).reshape(b, SEQ_LEN, D_MODEL)
            attn = o @ raw['wo'][m, l].T + raw['bo'][m, l]
            h = _ln_ref(h + attn, raw['ln1g'][m, l], raw['ln1b'][m, l])
            ff = jax.nn.relu(h @ raw['w1'][m, l].T + raw['b1'][m, l])
            ff = ff @ raw['w2'][m, l].T + raw['b2'][m, l]
            h = _ln_ref(h + ff, raw['ln2g'][m, l], raw['ln2b'][m, l])
        pooled = h.mean(axis=1)
        feats.append(jax.nn.relu(pooled @ raw['wfc1'][m].T + raw['bfc1'][m]))
    z = jnp.concatenate(feats, axis=1)
    z = jax.nn.relu(z @ raw['wfuse'].T + raw['bfuse'])
    y = z @ raw['wout'].T + raw['bout']
    return jax.nn.sigmoid(y)


# --------------------------------- main ---------------------------------------
if __name__ == "__main__":
    raw = make_params(jax.random.PRNGKey(0))
    packed = pack_params(raw)

    xkeys = jax.random.split(jax.random.PRNGKey(0), N_MODALITIES)
    x_list = [jax.random.normal(k, (BATCH, SEQ_LEN, INPUT_DIM), dtype=jnp.float32)
              for k in xkeys]

    out = jax.block_until_ready(late_fusion_transformer(x_list, packed))

    with jax.default_matmul_precision("highest"):
        ref = jax.block_until_ready(reference_forward(x_list, raw))

    assert out.shape == (BATCH, 1), out.shape
    assert bool(jnp.all(jnp.isfinite(out)))
    assert bool(jnp.all((out > 0.0) & (out < 1.0)))          # sigmoid output range
    max_err = float(jnp.max(jnp.abs(out - ref)))
    assert max_err < 2e-3, max_err
    print("KERNEL_OK")
</pallas_src>

<mosaic_0001>
module attributes {stable_mosaic.version = 11 : i64} {
  func.func @late_fusion_kernel(%arg0: i32, %arg1: memref<2x8x32xf32, #tpu.memory_space<vmem>>, %arg2: memref<8x32xf32, #tpu.memory_space<vmem>>, %arg3: memref<32x32xf32, #tpu.memory_space<vmem>>, %arg4: memref<2x32x96xf32, #tpu.memory_space<vmem>>, %arg5: memref<2x2x16x32xf32, #tpu.memory_space<vmem>>, %arg6: memref<2x32x128xf32, #tpu.memory_space<vmem>>, %arg7: memref<2x128x32xf32, #tpu.memory_space<vmem>>, %arg8: memref<32x64xf32, #tpu.memory_space<vmem>>, %arg9: memref<64x32xf32, #tpu.memory_space<vmem>>, %arg10: memref<32x1xf32, #tpu.memory_space<vmem>>, %arg11: memref<13x32xf32, #tpu.memory_space<vmem>>, %arg12: memref<2x96xf32, #tpu.memory_space<vmem>>, %arg13: memref<2x128xf32, #tpu.memory_space<vmem>>, %arg14: memref<3x64xf32, #tpu.memory_space<vmem>>, %arg15: memref<2x1xf32, #tpu.memory_space<vmem>>) attributes {dimension_semantics = [#tpu.dimension_semantics<parallel>], iteration_bounds = array<i64: 1>, scalar_prefetch = 0 : i64, scratch_operands = 0 : i64, tpu.core_type = #tpu.core_type<tc>, window_params = [{transform_indices = @transform_0, window_bounds = array<i64: 2, 8, 32>}, {pipeline_mode = #tpu.pipeline_mode<synchronous>, transform_indices = @transform_1, window_bounds = array<i64: 8, 32>}, {pipeline_mode = #tpu.pipeline_mode<synchronous>, transform_indices = @transform_2, window_bounds = array<i64: 32, 32>}, {pipeline_mode = #tpu.pipeline_mode<synchronous>, transform_indices = @transform_3, window_bounds = array<i64: 2, 32, 96>}, {pipeline_mode = #tpu.pipeline_mode<synchronous>, transform_indices = @transform_4, window_bounds = array<i64: 2, 2, 16, 32>}, {pipeline_mode = #tpu.pipeline_mode<synchronous>, transform_indices = @transform_5, window_bounds = array<i64: 2, 32, 128>}, {pipeline_mode = #tpu.pipeline_mode<synchronous>, transform_indices = @transform_6, window_bounds = array<i64: 2, 128, 32>}, {pipeline_mode = #tpu.pipeline_mode<synchronous>, transform_indices = @transform_7, window_bounds = array<i64: 32, 64>}, {pipeline_mode = #tpu.pipeline_mode<synchronous>, transform_indices = @transform_8, window_bounds = array<i64: 64, 32>}, {pipeline_mode = #tpu.pipeline_mode<synchronous>, transform_indices = @transform_9, window_bounds = array<i64: 32, 1>}, {pipeline_mode = #tpu.pipeline_mode<synchronous>, transform_indices = @transform_10, window_bounds = array<i64: 13, 32>}, {pipeline_mode = #tpu.pipeline_mode<synchronous>, transform_indices = @transform_11, window_bounds = array<i64: 2, 96>}, {pipeline_mode = #tpu.pipeline_mode<synchronous>, transform_indices = @transform_12, window_bounds = array<i64: 2, 128>}, {pipeline_mode = #tpu.pipeline_mode<synchronous>, transform_indices = @transform_13, window_bounds = array<i64: 3, 64>}, {transform_indices = @transform_14, window_bounds = array<i64: 2, 1>}]} {
    %c0 = arith.constant 0 : index
    %c0_0 = arith.constant 0 : index
    %c0_1 = arith.constant 0 : index
    %0 = vector.load %arg1[%c0, %c0_0, %c0_1] : memref<2x8x32xf32, #tpu.memory_space<vmem>>, vector<2x8x32xf32>
    %1 = vector.shape_cast %0 : vector<2x8x32xf32> to vector<16x32xf32>
    %c0_2 = arith.constant 0 : index
    %c0_3 = arith.constant 0 : index
    %2 = vector.load %arg3[%c0_2, %c0_3] : memref<32x32xf32, #tpu.memory_space<vmem>>, vector<32x32xf32>
    %cst = arith.constant dense<0.000000e+00> : vector<16x32xf32>
    %3 = tpu.matmul %1, %2, %cst {dimension_numbers = #tpu.dot_dimension_numbers<[1], [0], [0], [1], [0, 0, 1, 1], [], []>} : vector<16x32xf32>, vector<32x32xf32>, vector<16x32xf32> -> vector<16x32xf32>
    %c0_4 = arith.constant 0 : index
    %c0_5 = arith.constant 0 : index
    %4 = vector.load %arg11[%c0_4, %c0_5] : memref<13x32xf32, #tpu.memory_space<vmem>>, vector<1x32xf32>
    %5 = vector.shape_cast %4 : vector<1x32xf32> to vector<32xf32>
    %6 = vector.shape_cast %5 : vector<32xf32> to vector<1x32xf32>
    %7 = vector.broadcast %6 : vector<1x32xf32> to vector<16x32xf32>
    %8 = arith.addf %3, %7 : vector<16x32xf32>
    %9 = vector.shape_cast %8 : vector<16x32xf32> to vector<2x8x32xf32>
    %c0_6 = arith.constant 0 : index
    %c0_7 = arith.constant 0 : index
    %10 = vector.load %arg2[%c0_6, %c0_7] : memref<8x32xf32, #tpu.memory_space<vmem>>, vector<8x32xf32>
    %11 = vector.shape_cast %10 : vector<8x32xf32> to vector<1x8x32xf32>
    %12 = vector.broadcast %11 : vector<1x8x32xf32> to vector<2x8x32xf32>
    %13 = arith.addf %9, %12 : vector<2x8x32xf32>
    %14 = vector.shape_cast %13 : vector<2x8x32xf32> to vector<16x32xf32>
    %c0_8 = arith.constant 0 : index
    %c0_9 = arith.constant 0 : index
    %c0_10 = arith.constant 0 : index
    %15 = vector.load %arg4[%c0_8, %c0_9, %c0_10] : memref<2x32x96xf32, #tpu.memory_space<vmem>>, vector<1x32x96xf32>
    %16 = vector.shape_cast %15 : vector<1x32x96xf32> to vector<32x96xf32>
    %cst_11 = arith.constant dense<0.000000e+00> : vector<16x96xf32>
    %17 = tpu.matmul %14, %16, %cst_11 {dimension_numbers = #tpu.dot_dimension_numbers<[1], [0], [0], [1], [0, 0, 1, 1], [], []>} : vector<16x32xf32>, vector<32x96xf32>, vector<16x96xf32> -> vector<16x96xf32>
    %c0_12 = arith.constant 0 : index
    %c0_13 = arith.constant 0 : index
    %18 = vector.load %arg12[%c0_12, %c0_13] : memref<2x96xf32, #tpu.memory_space<vmem>>, vector<1x96xf32>
    %19 = vector.shape_cast %18 : vector<1x96xf32> to vector<96xf32>
    %20 = vector.shape_cast %19 : vector<96xf32> to vector<1x96xf32>
    %21 = vector.broadcast %20 : vector<1x96xf32> to vector<16x96xf32>
    %22 = arith.addf %17, %21 : vector<16x96xf32>
    %23 = vector.extract_strided_slice %22 {offsets = [0, 0], sizes = [16, 16], strides = [1, 1]} : vector<16x96xf32> to vector<16x16xf32>
    %24 = vector.shape_cast %23 : vector<16x16xf32> to vector<2x8x16xf32>
    %25 = vector.extract_strided_slice %22 {offsets = [0, 16], sizes = [16, 16], strides = [1, 1]} : vector<16x96xf32> to vector<16x16xf32>
    %26 = vector.shape_cast %25 : vector<16x16xf32> to vector<2x8x16xf32>
    %27 = vector.extract_strided_slice %22 {offsets = [0, 32], sizes = [16, 16], strides = [1, 1]} : vector<16x96xf32> to vector<16x16xf32>
    %28 = vector.shape_cast %27 : vector<16x16xf32> to vector<2x8x16xf32>
    %29 = vector.extract_strided_slice %22 {offsets = [0, 48], sizes = [16, 16], strides = [1, 1]} : vector<16x96xf32> to vector<16x16xf32>
    %30 = vector.shape_cast %29 : vector<16x16xf32> to vector<2x8x16xf32>
    %31 = vector.extract_strided_slice %22 {offsets = [0, 64], sizes = [16, 16], strides = [1, 1]} : vector<16x96xf32> to vector<16x16xf32>
    %32 = vector.shape_cast %31 : vector<16x16xf32> to vector<2x8x16xf32>
    %33 = vector.extract_strided_slice %22 {offsets = [0, 80], sizes = [16, 16], strides = [1, 1]} : vector<16x96xf32> to vector<16x16xf32>
    %34 = vector.shape_cast %33 : vector<16x16xf32> to vector<2x8x16xf32>
    %35 = vector.shape_cast %24 : vector<2x8x16xf32> to vector<2x8x1x16xf32>
    %36 = vector.shape_cast %28 : vector<2x8x16xf32> to vector<2x1x8x16xf32>
    %37 = vector.broadcast %35 : vector<2x8x1x16xf32> to vector<2x8x8x16xf32>
    %38 = vector.broadcast %36 : vector<2x1x8x16xf32> to vector<2x8x8x16xf32>
    %39 = arith.mulf %37, %38 : vector<2x8x8x16xf32>
    %40 = vector.shape_cast %26 : vector<2x8x16xf32> to vector<2x8x1x16xf32>
    %41 = vector.shape_cast %30 : vector<2x8x16xf32> to vector<2x1x8x16xf32>
    %42 = vector.broadcast %40 : vector<2x8x1x16xf32> to vector<2x8x8x16xf32>
    %43 = vector.broadcast %41 : vector<2x1x8x16xf32> to vector<2x8x8x16xf32>
    %44 = arith.mulf %42, %43 : vector<2x8x8x16xf32>
    %45 = arith.addf %39, %44 : vector<2x8x8x16xf32>
    %cst_14 = arith.constant dense<0xFF800000> : vector<2x8x16xf32>
    %46 = vector.multi_reduction <maximumf>, %45, %cst_14 [2] : vector<2x8x8x16xf32> to vector<2x8x16xf32>
    %47 = vector.shape_cast %46 : vector<2x8x16xf32> to vector<2x8x1x16xf32>
    %48 = vector.broadcast %47 : vector<2x8x1x16xf32> to vector<2x8x8x16xf32>
    %49 = arith.subf %45, %48 : vector<2x8x8x16xf32>
    %50 = math.exp %49 : vector<2x8x8x16xf32>
    %cst_15 = arith.constant dense<0.000000e+00> : vector<2x8x16xf32>
    %51 = vector.multi_reduction <add>, %50, %cst_15 [2] : vector<2x8x8x16xf32> to vector<2x8x16xf32>
    %52 = vector.shape_cast %51 : vector<2x8x16xf32> to vector<2x8x1x16xf32>
    %53 = vector.broadcast %52 : vector<2x8x1x16xf32> to vector<2x8x8x16xf32>
    %54 = arith.divf %50, %53 : vector<2x8x8x16xf32>
    %55 = vector.shape_cast %32 : vector<2x8x16xf32> to vector<2x1x8x16xf32>
    %56 = vector.broadcast %55 : vector<2x1x8x16xf32> to vector<2x8x8x16xf32>
    %57 = arith.mulf %54, %56 : vector<2x8x8x16xf32>
    %cst_16 = arith.constant dense<0.000000e+00> : vector<2x8x16xf32>
    %58 = vector.multi_reduction <add>, %57, %cst_16 [2] : vector<2x8x8x16xf32> to vector<2x8x16xf32>
    %59 = vector.shape_cast %58 : vector<2x8x16xf32> to vector<16x16xf32>
    %60 = vector.shape_cast %34 : vector<2x8x16xf32> to vector<2x1x8x16xf32>
    %61 = vector.broadcast %60 : vector<2x1x8x16xf32> to vector<2x8x8x16xf32>
    %62 = arith.mulf %54, %61 : vector<2x8x8x16xf32>
    %cst_17 = arith.constant dense<0.000000e+00> : vector<2x8x16xf32>
    %63 = vector.multi_reduction <add>, %62, %cst_17 [2] : vector<2x8x8x16xf32> to vector<2x8x16xf32>
    %64 = vector.shape_cast %63 : vector<2x8x16xf32> to vector<16x16xf32>
    %c0_18 = arith.constant 0 : index
    %c0_19 = arith.constant 0 : index
    %c0_20 = arith.constant 0 : index
    %c0_21 = arith.constant 0 : index
    %65 = vector.load %arg5[%c0_18, %c0_19, %c0_20, %c0_21] : memref<2x2x16x32xf32, #tpu.memory_space<vmem>>, vector<1x1x16x32xf32>
    %66 = vector.shape_cast %65 : vector<1x1x16x32xf32> to vector<16x32xf32>
    %cst_22 = arith.constant dense<0.000000e+00> : vector<16x32xf32>
    %67 = tpu.matmul %59, %66, %cst_22 {dimension_numbers = #tpu.dot_dimension_numbers<[1], [0], [0], [1], [0, 0, 1, 1], [], []>} : vector<16x16xf32>, vector<16x32xf32>, vector<16x32xf32> -> vector<16x32xf32>
    %c0_23 = arith.constant 0 : index
    %c1 = arith.constant 1 : index
    %c0_24 = arith.constant 0 : index
    %c0_25 = arith.constant 0 : index
    %68 = vector.load %arg5[%c0_23, %c1, %c0_24, %c0_25] : memref<2x2x16x32xf32, #tpu.memory_space<vmem>>, vector<1x1x16x32xf32>
    %69 = vector.shape_cast %68 : vector<1x1x16x32xf32> to vector<16x32xf32>
    %cst_26 = arith.constant dense<0.000000e+00> : vector<16x32xf32>
    %70 = tpu.matmul %64, %69, %cst_26 {dimension_numbers = #tpu.dot_dimension_numbers<[1], [0], [0], [1], [0, 0, 1, 1], [], []>} : vector<16x16xf32>, vector<16x32xf32>, vector<16x32xf32> -> vector<16x32xf32>
    %71 = arith.addf %67, %70 : vector<16x32xf32>
    %c1_27 = arith.constant 1 : index
    %c0_28 = arith.constant 0 : index
    %72 = vector.load %arg11[%c1_27, %c0_28] : memref<13x32xf32, #tpu.memory_space<vmem>>, vector<1x32xf32>
    %73 = vector.shape_cast %72 : vector<1x32xf32> to vector<32xf32>
    %74 = vector.shape_cast %73 : vector<32xf32> to vector<1x32xf32>
    %75 = vector.broadcast %74 : vector<1x32xf32> to vector<16x32xf32>
    %76 = arith.addf %71, %75 : vector<16x32xf32>
    %77 = arith.addf %14, %76 : vector<16x32xf32>
    %c2 = arith.constant 2 : index
    %c0_29 = arith.constant 0 : index
    %78 = vector.load %arg11[%c2, %c0_29] : memref<13x32xf32, #tpu.memory_space<vmem>>, vector<1x32xf32>
    %79 = vector.shape_cast %78 : vector<1x32xf32> to vector<32xf32>
    %c3 = arith.constant 3 : index
    %c0_30 = arith.constant 0 : index
    %80 = vector.load %arg11[%c3, %c0_30] : memref<13x32xf32, #tpu.memory_space<vmem>>, vector<1x32xf32>
    %81 = vector.shape_cast %80 : vector<1x32xf32> to vector<32xf32>
    %82 = vector.extract_strided_slice %77 {offsets = [0, 0], sizes = [16, 16], strides = [1, 1]} : vector<16x32xf32> to vector<16x16xf32>
    %cst_31 = arith.constant dense<0.000000e+00> : vector<16xf32>
    %83 = vector.multi_reduction <add>, %82, %cst_31 [1] : vector<16x16xf32> to vector<16xf32>
    %84 = vector.shape_cast %83 : vector<16xf32> to vector<16x1xf32>
    %cst_32 = arith.constant 1.600000e+01 : f32
    %85 = vector.broadcast %cst_32 : f32 to vector<16x1xf32>
    %86 = arith.divf %84, %85 : vector<16x1xf32>
    %87 = vector.broadcast %86 : vector<16x1xf32> to vector<16x16xf32>
    %88 = arith.subf %82, %87 : vector<16x16xf32>
    %89 = arith.mulf %88, %88 : vector<16x16xf32>
    %cst_33 = arith.constant dense<0.000000e+00> : vector<16xf32>
    %90 = vector.multi_reduction <add>, %89, %cst_33 [1] : vector<16x16xf32> to vector<16xf32>
    %91 = vector.shape_cast %90 : vector<16xf32> to vector<16x1xf32>
    %cst_34 = arith.constant 1.600000e+01 : f32
    %92 = vector.broadcast %cst_34 : f32 to vector<16x1xf32>
    %93 = arith.divf %91, %92 : vector<16x1xf32>
    %cst_35 = arith.constant 9.99999974E-6 : f32
    %94 = vector.broadcast %cst_35 : f32 to vector<16x1xf32>
    %95 = arith.addf %93, %94 : vector<16x1xf32>
    %96 = math.rsqrt %95 : vector<16x1xf32>
    %97 = vector.broadcast %96 : vector<16x1xf32> to vector<16x16xf32>
    %98 = arith.mulf %88, %97 : vector<16x16xf32>
    %99 = vector.extract_strided_slice %77 {offsets = [0, 16], sizes = [16, 16], strides = [1, 1]} : vector<16x32xf32> to vector<16x16xf32>
    %cst_36 = arith.constant dense<0.000000e+00> : vector<16xf32>
    %100 = vector.multi_reduction <add>, %99, %cst_36 [1] : vector<16x16xf32> to vector<16xf32>
    %101 = vector.shape_cast %100 : vector<16xf32> to vector<16x1xf32>
    %cst_37 = arith.constant 1.600000e+01 : f32
    %102 = vector.broadcast %cst_37 : f32 to vector<16x1xf32>
    %103 = arith.divf %101, %102 : vector<16x1xf32>
    %104 = vector.broadcast %103 : vector<16x1xf32> to vector<16x16xf32>
    %105 = arith.subf %99, %104 : vector<16x16xf32>
    %106 = arith.mulf %105, %105 : vector<16x16xf32>
    %cst_38 = arith.constant dense<0.000000e+00> : vector<16xf32>
    %107 = vector.multi_reduction <add>, %106, %cst_38 [1] : vector<16x16xf32> to vector<16xf32>
    %108 = vector.shape_cast %107 : vector<16xf32> to vector<16x1xf32>
    %cst_39 = arith.constant 1.600000e+01 : f32
    %109 = vector.broadcast %cst_39 : f32 to vector<16x1xf32>
    %110 = arith.divf %108, %109 : vector<16x1xf32>
    %cst_40 = arith.constant 9.99999974E-6 : f32
    %111 = vector.broadcast %cst_40 : f32 to vector<16x1xf32>
    %112 = arith.addf %110, %111 : vector<16x1xf32>
    %113 = math.rsqrt %112 : vector<16x1xf32>
    %114 = vector.broadcast %113 : vector<16x1xf32> to vector<16x16xf32>
    %115 = arith.mulf %105, %114 : vector<16x16xf32>
    %116 = tpu.concatenate %98, %115 in 1 : vector<16x16xf32>, vector<16x16xf32> -> vector<16x32xf32>
    %117 = vector.shape_cast %79 : vector<32xf32> to vector<1x32xf32>
    %118 = vector.broadcast %117 : vector<1x32xf32> to vector<16x32xf32>
    %119 = arith.mulf %116, %118 : vector<16x32xf32>
    %120 = vector.shape_cast %81 : vector<32xf32> to vector<1x32xf32>
    %121 = vector.broadcast %120 : vector<1x32xf32> to vector<16x32xf32>
    %122 = arith.addf %119, %121 : vector<16x32xf32>
    %c0_41 = arith.constant 0 : index
    %c0_42 = arith.constant 0 : index
    %c0_43 = arith.constant 0 : index
    %123 = vector.load %arg6[%c0_41, %c0_42, %c0_43] : memref<2x32x128xf32, #tpu.memory_space<vmem>>, vector<1x32x128xf32>
    %124 = vector.shape_cast %123 : vector<1x32x128xf32> to vector<32x128xf32>
    %cst_44 = arith.constant dense<0.000000e+00> : vector<16x128xf32>
    %125 = tpu.matmul %122, %124, %cst_44 {dimension_numbers = #tpu.dot_dimension_numbers<[1], [0], [0], [1], [0, 0, 1, 1], [], []>} : vector<16x32xf32>, vector<32x128xf32>, vector<16x128xf32> -> vector<16x128xf32>
    %c0_45 = arith.constant 0 : index
    %c0_46 = arith.constant 0 : index
    %126 = vector.load %arg13[%c0_45, %c0_46] : memref<2x128xf32, #tpu.memory_space<vmem>>, vector<1x128xf32>
    %127 = vector.shape_cast %126 : vector<1x128xf32> to vector<128xf32>
    %128 = vector.shape_cast %127 : vector<128xf32> to vector<1x128xf32>
    %129 = vector.broadcast %128 : vector<1x128xf32> to vector<16x128xf32>
    %130 = arith.addf %125, %129 : vector<16x128xf32>
    %cst_47 = arith.constant 0.000000e+00 : f32
    %131 = vector.broadcast %cst_47 : f32 to vector<16x128xf32>
    %132 = arith.maximumf %130, %131 : vector<16x128xf32>
    %c0_48 = arith.constant 0 : index
    %c0_49 = arith.constant 0 : index
    %c0_50 = arith.constant 0 : index
    %133 = vector.load %arg7[%c0_48, %c0_49, %c0_50] : memref<2x128x32xf32, #tpu.memory_space<vmem>>, vector<1x128x32xf32>
    %134 = vector.shape_cast %133 : vector<1x128x32xf32> to vector<128x32xf32>
    %cst_51 = arith.constant dense<0.000000e+00> : vector<16x32xf32>
    %135 = tpu.matmul %132, %134, %cst_51 {dimension_numbers = #tpu.dot_dimension_numbers<[1], [0], [0], [1], [0, 0, 1, 1], [], []>} : vector<16x128xf32>, vector<128x32xf32>, vector<16x32xf32> -> vector<16x32xf32>
    %c4 = arith.constant 4 : index
    %c0_52 = arith.constant 0 : index
    %136 = vector.load %arg11[%c4, %c0_52] : memref<13x32xf32, #tpu.memory_space<vmem>>, vector<1x32xf32>
    %137 = vector.shape_cast %136 : vector<1x32xf32> to vector<32xf32>
    %138 = vector.shape_cast %137 : vector<32xf32> to vector<1x32xf32>
    %139 = vector.broadcast %138 : vector<1x32xf32> to vector<16x32xf32>
    %140 = arith.addf %135, %139 : vector<16x32xf32>
    %141 = arith.addf %122, %140 : vector<16x32xf32>
    %c5 = arith.constant 5 : index
    %c0_53 = arith.constant 0 : index
    %142 = vector.load %arg11[%c5, %c0_53] : memref<13x32xf32, #tpu.memory_space<vmem>>, vector<1x32xf32>
    %143 = vector.shape_cast %142 : vector<1x32xf32> to vector<32xf32>
    %c6 = arith.constant 6 : index
    %c0_54 = arith.constant 0 : index
    %144 = vector.load %arg11[%c6, %c0_54] : memref<13x32xf32, #tpu.memory_space<vmem>>, vector<1x32xf32>
    %145 = vector.shape_cast %144 : vector<1x32xf32> to vector<32xf32>
    %146 = vector.extract_strided_slice %141 {offsets = [0, 0], sizes = [16, 16], strides = [1, 1]} : vector<16x32xf32> to vector<16x16xf32>
    %cst_55 = arith.constant dense<0.000000e+00> : vector<16xf32>
    %147 = vector.multi_reduction <add>, %146, %cst_55 [1] : vector<16x16xf32> to vector<16xf32>
    %148 = vector.shape_cast %147 : vector<16xf32> to vector<16x1xf32>
    %cst_56 = arith.constant 1.600000e+01 : f32
    %149 = vector.broadcast %cst_56 : f32 to vector<16x1xf32>
    %150 = arith.divf %148, %149 : vector<16x1xf32>
    %151 = vector.broadcast %150 : vector<16x1xf32> to vector<16x16xf32>
    %152 = arith.subf %146, %151 : vector<16x16xf32>
    %153 = arith.mulf %152, %152 : vector<16x16xf32>
    %cst_57 = arith.constant dense<0.000000e+00> : vector<16xf32>
    %154 = vector.multi_reduction <add>, %153, %cst_57 [1] : vector<16x16xf32> to vector<16xf32>
    %155 = vector.shape_cast %154 : vector<16xf32> to vector<16x1xf32>
    %cst_58 = arith.constant 1.600000e+01 : f32
    %156 = vector.broadcast %cst_58 : f32 to vector<16x1xf32>
    %157 = arith.divf %155, %156 : vector<16x1xf32>
    %cst_59 = arith.constant 9.99999974E-6 : f32
    %158 = vector.broadcast %cst_59 : f32 to vector<16x1xf32>
    %159 = arith.addf %157, %158 : vector<16x1xf32>
    %160 = math.rsqrt %159 : vector<16x1xf32>
    %161 = vector.broadcast %160 : vector<16x1xf32> to vector<16x16xf32>
    %162 = arith.mulf %152, %161 : vector<16x16xf32>
    %163 = vector.extract_strided_slice %141 {offsets = [0, 16], sizes = [16, 16], strides = [1, 1]} : vector<16x32xf32> to vector<16x16xf32>
    %cst_60 = arith.constant dense<0.000000e+00> : vector<16xf32>
    %164 = vector.multi_reduction <add>, %163, %cst_60 [1] : vector<16x16xf32> to vector<16xf32>
    %165 = vector.shape_cast %164 : vector<16xf32> to vector<16x1xf32>
    %cst_61 = arith.constant 1.600000e+01 : f32
    %166 = vector.broadcast %cst_61 : f32 to vector<16x1xf32>
    %167 = arith.divf %165, %166 : vector<16x1xf32>
    %168 = vector.broadcast %167 : vector<16x1xf32> to vector<16x16xf32>
    %169 = arith.subf %163, %168 : vector<16x16xf32>
    %170 = arith.mulf %169, %169 : vector<16x16xf32>
    %cst_62 = arith.constant dense<0.000000e+00> : vector<16xf32>
    %171 = vector.multi_reduction <add>, %170, %cst_62 [1] : vector<16x16xf32> to vector<16xf32>
    %172 = vector.shape_cast %171 : vector<16xf32> to vector<16x1xf32>
    %cst_63 = arith.constant 1.600000e+01 : f32
    %173 = vector.broadcast %cst_63 : f32 to vector<16x1xf32>
    %174 = arith.divf %172, %173 : vector<16x1xf32>
    %cst_64 = arith.constant 9.99999974E-6 : f32
    %175 = vector.broadcast %cst_64 : f32 to vector<16x1xf32>
    %176 = arith.addf %174, %175 : vector<16x1xf32>
    %177 = math.rsqrt %176 : vector<16x1xf32>
    %178 = vector.broadcast %177 : vector<16x1xf32> to vector<16x16xf32>
    %179 = arith.mulf %169, %178 : vector<16x16xf32>
    %180 = tpu.concatenate %162, %179 in 1 : vector<16x16xf32>, vector<16x16xf32> -> vector<16x32xf32>
    %181 = vector.shape_cast %143 : vector<32xf32> to vector<1x32xf32>
    %182 = vector.broadcast %181 : vector<1x32xf32> to vector<16x32xf32>
    %183 = arith.mulf %180, %182 : vector<16x32xf32>
    %184 = vector.shape_cast %145 : vector<32xf32> to vector<1x32xf32>
    %185 = vector.broadcast %184 : vector<1x32xf32> to vector<16x32xf32>
    %186 = arith.addf %183, %185 : vector<16x32xf32>
    %c1_65 = arith.constant 1 : index
    %c0_66 = arith.constant 0 : index
    %c0_67 = arith.constant 0 : index
    %187 = vector.load %arg4[%c1_65, %c0_66, %c0_67] : memref<2x32x96xf32, #tpu.memory_space<vmem>>, vector<1x32x96xf32>
    %188 = vector.shape_cast %187 : vector<1x32x96xf32> to vector<32x96xf32>
    %cst_68 = arith.constant dense<0.000000e+00> : vector<16x96xf32>
    %189 = tpu.matmul %186, %188, %cst_68 {dimension_numbers = #tpu.dot_dimension_numbers<[1], [0], [0], [1], [0, 0, 1, 1], [], []>} : vector<16x32xf32>, vector<32x96xf32>, vector<16x96xf32> -> vector<16x96xf32>
    %c1_69 = arith.constant 1 : index
    %c0_70 = arith.constant 0 : index
    %190 = vector.load %arg12[%c1_69, %c0_70] : memref<2x96xf32, #tpu.memory_space<vmem>>, vector<1x96xf32>
    %191 = vector.shape_cast %190 : vector<1x96xf32> to vector<96xf32>
    %192 = vector.shape_cast %191 : vector<96xf32> to vector<1x96xf32>
    %193 = vector.broadcast %192 : vector<1x96xf32> to vector<16x96xf32>
    %194 = arith.addf %189, %193 : vector<16x96xf32>
    %195 = vector.extract_strided_slice %194 {offsets = [0, 0], sizes = [16, 16], strides = [1, 1]} : vector<16x96xf32> to vector<16x16xf32>
    %196 = vector.shape_cast %195 : vector<16x16xf32> to vector<2x8x16xf32>
    %197 = vector.extract_strided_slice %194 {offsets = [0, 16], sizes = [16, 16], strides = [1, 1]} : vector<16x96xf32> to vector<16x16xf32>
    %198 = vector.shape_cast %197 : vector<16x16xf32> to vector<2x8x16xf32>
    %199 = vector.extract_strided_slice %194 {offsets = [0, 32], sizes = [16, 16], strides = [1, 1]} : vector<16x96xf32> to vector<16x16xf32>
    %200 = vector.shape_cast %199 : vector<16x16xf32> to vector<2x8x16xf32>
    %201 = vector.extract_strided_slice %194 {offsets = [0, 48], sizes = [16, 16], strides = [1, 1]} : vector<16x96xf32> to vector<16x16xf32>
    %202 = vector.shape_cast %201 : vector<16x16xf32> to vector<2x8x16xf32>
    %203 = vector.extract_strided_slice %194 {offsets = [0, 64], sizes = [16, 16], strides = [1, 1]} : vector<16x96xf32> to vector<16x16xf32>
    %204 = vector.shape_cast %203 : vector<16x16xf32> to vector<2x8x16xf32>
    %205 = vector.extract_strided_slice %194 {offsets = [0, 80], sizes = [16, 16], strides = [1, 1]} : vector<16x96xf32> to vector<16x16xf32>
    %206 = vector.shape_cast %205 : vector<16x16xf32> to vector<2x8x16xf32>
    %207 = vector.shape_cast %196 : vector<2x8x16xf32> to vector<2x8x1x16xf32>
    %208 = vector.shape_cast %200 : vector<2x8x16xf32> to vector<2x1x8x16xf32>
    %209 = vector.broadcast %207 : vector<2x8x1x16xf32> to vector<2x8x8x16xf32>
    %210 = vector.broadcast %208 : vector<2x1x8x16xf32> to vector<2x8x8x16xf32>
    %211 = arith.mulf %209, %210 : vector<2x8x8x16xf32>
    %212 = vector.shape_cast %198 : vector<2x8x16xf32> to vector<2x8x1x16xf32>
    %213 = vector.shape_cast %202 : vector<2x8x16xf32> to vector<2x1x8x16xf32>
    %214 = vector.broadcast %212 : vector<2x8x1x16xf32> to vector<2x8x8x16xf32>
    %215 = vector.broadcast %213 : vector<2x1x8x16xf32> to vector<2x8x8x16xf32>
    %216 = arith.mulf %214, %215 : vector<2x8x8x16xf32>
    %217 = arith.addf %211, %216 : vector<2x8x8x16xf32>
    %cst_71 = arith.constant dense<0xFF800000> : vector<2x8x16xf32>
    %218 = vector.multi_reduction <maximumf>, %217, %cst_71 [2] : vector<2x8x8x16xf32> to vector<2x8x16xf32>
    %219 = vector.shape_cast %218 : vector<2x8x16xf32> to vector<2x8x1x16xf32>
    %220 = vector.broadcast %219 : vector<2x8x1x16xf32> to vector<2x8x8x16xf32>
    %221 = arith.subf %217, %220 : vector<2x8x8x16xf32>
    %222 = math.exp %221 : vector<2x8x8x16xf32>
    %cst_72 = arith.constant dense<0.000000e+00> : vector<2x8x16xf32>
    %223 = vector.multi_reduction <add>, %222, %cst_72 [2] : vector<2x8x8x16xf32> to vector<2x8x16xf32>
    %224 = vector.shape_cast %223 : vector<2x8x16xf32> to vector<2x8x1x16xf32>
    %225 = vector.broadcast %224 : vector<2x8x1x16xf32> to vector<2x8x8x16xf32>
    %226 = arith.divf %222, %225 : vector<2x8x8x16xf32>
    %227 = vector.shape_cast %204 : vector<2x8x16xf32> to vector<2x1x8x16xf32>
    %228 = vector.broadcast %227 : vector<2x1x8x16xf32> to vector<2x8x8x16xf32>
    %229 = arith.mulf %226, %228 : vector<2x8x8x16xf32>
    %cst_73 = arith.constant dense<0.000000e+00> : vector<2x8x16xf32>
    %230 = vector.multi_reduction <add>, %229, %cst_73 [2] : vector<2x8x8x16xf32> to vector<2x8x16xf32>
    %231 = vector.shape_cast %230 : vector<2x8x16xf32> to vector<16x16xf32>
    %232 = vector.shape_cast %206 : vector<2x8x16xf32> to vector<2x1x8x16xf32>
    %233 = vector.broadcast %232 : vector<2x1x8x16xf32> to vector<2x8x8x16xf32>
    %234 = arith.mulf %226, %233 : vector<2x8x8x16xf32>
    %cst_74 = arith.constant dense<0.000000e+00> : vector<2x8x16xf32>
    %235 = vector.multi_reduction <add>, %234, %cst_74 [2] : vector<2x8x8x16xf32> to vector<2x8x16xf32>
    %236 = vector.shape_cast %235 : vector<2x8x16xf32> to vector<16x16xf32>
    %c1_75 = arith.constant 1 : index
    %c0_76 = arith.constant 0 : index
    %c0_77 = arith.constant 0 : index
    %c0_78 = arith.constant 0 : index
    %237 = vector.load %arg5[%c1_75, %c0_76, %c0_77, %c0_78] : memref<2x2x16x32xf32, #tpu.memory_space<vmem>>, vector<1x1x16x32xf32>
    %238 = vector.shape_cast %237 : vector<1x1x16x32xf32> to vector<16x32xf32>
    %cst_79 = arith.constant dense<0.000000e+00> : vector<16x32xf32>
    %239 = tpu.matmul %231, %238, %cst_79 {dimension_numbers = #tpu.dot_dimension_numbers<[1], [0], [0], [1], [0, 0, 1, 1], [], []>} : vector<16x16xf32>, vector<16x32xf32>, vector<16x32xf32> -> vector<16x32xf32>
    %c1_80 = arith.constant 1 : index
    %c1_81 = arith.constant 1 : index
    %c0_82 = arith.constant 0 : index
    %c0_83 = arith.constant 0 : index
    %240 = vector.load %arg5[%c1_80, %c1_81, %c0_82, %c0_83] : memref<2x2x16x32xf32, #tpu.memory_space<vmem>>, vector<1x1x16x32xf32>
    %241 = vector.shape_cast %240 : vector<1x1x16x32xf32> to vector<16x32xf32>
    %cst_84 = arith.constant dense<0.000000e+00> : vector<16x32xf32>
    %242 = tpu.matmul %236, %241, %cst_84 {dimension_numbers = #tpu.dot_dimension_numbers<[1], [0], [0], [1], [0, 0, 1, 1], [], []>} : vector<16x16xf32>, vector<16x32xf32>, vector<16x32xf32> -> vector<16x32xf32>
    %243 = arith.addf %239, %242 : vector<16x32xf32>
    %c7 = arith.constant 7 : index
    %c0_85 = arith.constant 0 : index
    %244 = vector.load %arg11[%c7, %c0_85] : memref<13x32xf32, #tpu.memory_space<vmem>>, vector<1x32xf32>
    %245 = vector.shape_cast %244 : vector<1x32xf32> to vector<32xf32>
    %246 = vector.shape_cast %245 : vector<32xf32> to vector<1x32xf32>
    %247 = vector.broadcast %246 : vector<1x32xf32> to vector<16x32xf32>
    %248 = arith.addf %243, %247 : vector<16x32xf32>
    %249 = arith.addf %186, %248 : vector<16x32xf32>
    %c8 = arith.constant 8 : index
    %c0_86 = arith.constant 0 : index
    %250 = vector.load %arg11[%c8, %c0_86] : memref<13x32xf32, #tpu.memory_space<vmem>>, vector<1x32xf32>
    %251 = vector.shape_cast %250 : vector<1x32xf32> to vector<32xf32>
    %c9 = arith.constant 9 : index
    %c0_87 = arith.constant 0 : index
    %252 = vector.load %arg11[%c9, %c0_87] : memref<13x32xf32, #tpu.memory_space<vmem>>, vector<1x32xf32>
    %253 = vector.shape_cast %252 : vector<1x32xf32> to vector<32xf32>
    %254 = vector.extract_strided_slice %249 {offsets = [0, 0], sizes = [16, 16], strides = [1, 1]} : vector<16x32xf32> to vector<16x16xf32>
    %cst_88 = arith.constant dense<0.000000e+00> : vector<16xf32>
    %255 = vector.multi_reduction <add>, %254, %cst_88 [1] : vector<16x16xf32> to vector<16xf32>
    %256 = vector.shape_cast %255 : vector<16xf32> to vector<16x1xf32>
    %cst_89 = arith.constant 1.600000e+01 : f32
    %257 = vector.broadcast %cst_89 : f32 to vector<16x1xf32>
    %258 = arith.divf %256, %257 : vector<16x1xf32>
    %259 = vector.broadcast %258 : vector<16x1xf32> to vector<16x16xf32>
    %260 = arith.subf %254, %259 : vector<16x16xf32>
    %261 = arith.mulf %260, %260 : vector<16x16xf32>
    %cst_90 = arith.constant dense<0.000000e+00> : vector<16xf32>
    %262 = vector.multi_reduction <add>, %261, %cst_90 [1] : vector<16x16xf32> to vector<16xf32>
    %263 = vector.shape_cast %262 : vector<16xf32> to vector<16x1xf32>
    %cst_91 = arith.constant 1.600000e+01 : f32
    %264 = vector.broadcast %cst_91 : f32 to vector<16x1xf32>
    %265 = arith.divf %263, %264 : vector<16x1xf32>
    %cst_92 = arith.constant 9.99999974E-6 : f32
    %266 = vector.broadcast %cst_92 : f32 to vector<16x1xf32>
    %267 = arith.addf %265, %266 : vector<16x1xf32>
    %268 = math.rsqrt %267 : vector<16x1xf32>
    %269 = vector.broadcast %268 : vector<16x1xf32> to vector<16x16xf32>
    %270 = arith.mulf %260, %269 : vector<16x16xf32>
    %271 = vector.extract_strided_slice %249 {offsets = [0, 16], sizes = [16, 16], strides = [1, 1]} : vector<16x32xf32> to vector<16x16xf32>
    %cst_93 = arith.constant dense<0.000000e+00> : vector<16xf32>
    %272 = vector.multi_reduction <add>, %271, %cst_93 [1] : vector<16x16xf32> to vector<16xf32>
    %273 = vector.shape_cast %272 : vector<16xf32> to vector<16x1xf32>
    %cst_94 = arith.constant 1.600000e+01 : f32
    %274 = vector.broadcast %cst_94 : f32 to vector<16x1xf32>
    %275 = arith.divf %273, %274 : vector<16x1xf32>
    %276 = vector.broadcast %275 : vector<16x1xf32> to vector<16x16xf32>
    %277 = arith.subf %271, %276 : vector<16x16xf32>
    %278 = arith.mulf %277, %277 : vector<16x16xf32>
    %cst_95 = arith.constant dense<0.000000e+00> : vector<16xf32>
    %279 = vector.multi_reduction <add>, %278, %cst_95 [1] : vector<16x16xf32> to vector<16xf32>
    %280 = vector.shape_cast %279 : vector<16xf32> to vector<16x1xf32>
    %cst_96 = arith.constant 1.600000e+01 : f32
    %281 = vector.broadcast %cst_96 : f32 to vector<16x1xf32>
    %282 = arith.divf %280, %281 : vector<16x1xf32>
    %cst_97 = arith.constant 9.99999974E-6 : f32
    %283 = vector.broadcast %cst_97 : f32 to vector<16x1xf32>
    %284 = arith.addf %282, %283 : vector<16x1xf32>
    %285 = math.rsqrt %284 : vector<16x1xf32>
    %286 = vector.broadcast %285 : vector<16x1xf32> to vector<16x16xf32>
    %287 = arith.mulf %277, %286 : vector<16x16xf32>
    %288 = tpu.concatenate %270, %287 in 1 : vector<16x16xf32>, vector<16x16xf32> -> vector<16x32xf32>
    %289 = vector.shape_cast %251 : vector<32xf32> to vector<1x32xf32>
    %290 = vector.broadcast %289 : vector<1x32xf32> to vector<16x32xf32>
    %291 = arith.mulf %288, %290 : vector<16x32xf32>
    %292 = vector.shape_cast %253 : vector<32xf32> to vector<1x32xf32>
    %293 = vector.broadcast %292 : vector<1x32xf32> to vector<16x32xf32>
    %294 = arith.addf %291, %293 : vector<16x32xf32>
    %c1_98 = arith.constant 1 : index
    %c0_99 = arith.constant 0 : index
    %c0_100 = arith.constant 0 : index
    %295 = vector.load %arg6[%c1_98, %c0_99, %c0_100] : memref<2x32x128xf32, #tpu.memory_space<vmem>>, vector<1x32x128xf32>
    %296 = vector.shape_cast %295 : vector<1x32x128xf32> to vector<32x128xf32>
    %cst_101 = arith.constant dense<0.000000e+00> : vector<16x128xf32>
    %297 = tpu.matmul %294, %296, %cst_101 {dimension_numbers = #tpu.dot_dimension_numbers<[1], [0], [0], [1], [0, 0, 1, 1], [], []>} : vector<16x32xf32>, vector<32x128xf32>, vector<16x128xf32> -> vector<16x128xf32>
    %c1_102 = arith.constant 1 : index
    %c0_103 = arith.constant 0 : index
    %298 = vector.load %arg13[%c1_102, %c0_103] : memref<2x128xf32, #tpu.memory_space<vmem>>, vector<1x128xf32>
    %299 = vector.shape_cast %298 : vector<1x128xf32> to vector<128xf32>
    %300 = vector.shape_cast %299 : vector<128xf32> to vector<1x128xf32>
    %301 = vector.broadcast %300 : vector<1x128xf32> to vector<16x128xf32>
    %302 = arith.addf %297, %301 : vector<16x128xf32>
    %cst_104 = arith.constant 0.000000e+00 : f32
    %303 = vector.broadcast %cst_104 : f32 to vector<16x128xf32>
    %304 = arith.maximumf %302, %303 : vector<16x128xf32>
    %c1_105 = arith.constant 1 : index
    %c0_106 = arith.constant 0 : index
    %c0_107 = arith.constant 0 : index
    %305 = vector.load %arg7[%c1_105, %c0_106, %c0_107] : memref<2x128x32xf32, #tpu.memory_space<vmem>>, vector<1x128x32xf32>
    %306 = vector.shape_cast %305 : vector<1x128x32xf32> to vector<128x32xf32>
    %cst_108 = arith.constant dense<0.000000e+00> : vector<16x32xf32>
    %307 = tpu.matmul %304, %306, %cst_108 {dimension_numbers = #tpu.dot_dimension_numbers<[1], [0], [0], [1], [0, 0, 1, 1], [], []>} : vector<16x128xf32>, vector<128x32xf32>, vector<16x32xf32> -> vector<16x32xf32>
    %c10 = arith.constant 10 : index
    %c0_109 = arith.constant 0 : index
    %308 = vector.load %arg11[%c10, %c0_109] : memref<13x32xf32, #tpu.memory_space<vmem>>, vector<1x32xf32>
    %309 = vector.shape_cast %308 : vector<1x32xf32> to vector<32xf32>
    %310 = vector.shape_cast %309 : vector<32xf32> to vector<1x32xf32>
    %311 = vector.broadcast %310 : vector<1x32xf32> to vector<16x32xf32>
    %312 = arith.addf %307, %311 : vector<16x32xf32>
    %313 = arith.addf %294, %312 : vector<16x32xf32>
    %c11 = arith.constant 11 : index
    %c0_110 = arith.constant 0 : index
    %314 = vector.load %arg11[%c11, %c0_110] : memref<13x32xf32, #tpu.memory_space<vmem>>, vector<1x32xf32>
    %315 = vector.shape_cast %314 : vector<1x32xf32> to vector<32xf32>
    %c12 = arith.constant 12 : index
    %c0_111 = arith.constant 0 : index
    %316 = vector.load %arg11[%c12, %c0_111] : memref<13x32xf32, #tpu.memory_space<vmem>>, vector<1x32xf32>
    %317 = vector.shape_cast %316 : vector<1x32xf32> to vector<32xf32>
    %318 = vector.extract_strided_slice %313 {offsets = [0, 0], sizes = [16, 16], strides = [1, 1]} : vector<16x32xf32> to vector<16x16xf32>
    %cst_112 = arith.constant dense<0.000000e+00> : vector<16xf32>
    %319 = vector.multi_reduction <add>, %318, %cst_112 [1] : vector<16x16xf32> to vector<16xf32>
    %320 = vector.shape_cast %319 : vector<16xf32> to vector<16x1xf32>
    %cst_113 = arith.constant 1.600000e+01 : f32
    %321 = vector.broadcast %cst_113 : f32 to vector<16x1xf32>
    %322 = arith.divf %320, %321 : vector<16x1xf32>
    %323 = vector.broadcast %322 : vector<16x1xf32> to vector<16x16xf32>
    %324 = arith.subf %318, %323 : vector<16x16xf32>
    %325 = arith.mulf %324, %324 : vector<16x16xf32>
    %cst_114 = arith.constant dense<0.000000e+00> : vector<16xf32>
    %326 = vector.multi_reduction <add>, %325, %cst_114 [1] : vector<16x16xf32> to vector<16xf32>
    %327 = vector.shape_cast %326 : vector<16xf32> to vector<16x1xf32>
    %cst_115 = arith.constant 1.600000e+01 : f32
    %328 = vector.broadcast %cst_115 : f32 to vector<16x1xf32>
    %329 = arith.divf %327, %328 : vector<16x1xf32>
    %cst_116 = arith.constant 9.99999974E-6 : f32
    %330 = vector.broadcast %cst_116 : f32 to vector<16x1xf32>
    %331 = arith.addf %329, %330 : vector<16x1xf32>
    %332 = math.rsqrt %331 : vector<16x1xf32>
    %333 = vector.broadcast %332 : vector<16x1xf32> to vector<16x16xf32>
    %334 = arith.mulf %324, %333 : vector<16x16xf32>
    %335 = vector.extract_strided_slice %313 {offsets = [0, 16], sizes = [16, 16], strides = [1, 1]} : vector<16x32xf32> to vector<16x16xf32>
    %cst_117 = arith.constant dense<0.000000e+00> : vector<16xf32>
    %336 = vector.multi_reduction <add>, %335, %cst_117 [1] : vector<16x16xf32> to vector<16xf32>
    %337 = vector.shape_cast %336 : vector<16xf32> to vector<16x1xf32>
    %cst_118 = arith.constant 1.600000e+01 : f32
    %338 = vector.broadcast %cst_118 : f32 to vector<16x1xf32>
    %339 = arith.divf %337, %338 : vector<16x1xf32>
    %340 = vector.broadcast %339 : vector<16x1xf32> to vector<16x16xf32>
    %341 = arith.subf %335, %340 : vector<16x16xf32>
    %342 = arith.mulf %341, %341 : vector<16x16xf32>
    %cst_119 = arith.constant dense<0.000000e+00> : vector<16xf32>
    %343 = vector.multi_reduction <add>, %342, %cst_119 [1] : vector<16x16xf32> to vector<16xf32>
    %344 = vector.shape_cast %343 : vector<16xf32> to vector<16x1xf32>
    %cst_120 = arith.constant 1.600000e+01 : f32
    %345 = vector.broadcast %cst_120 : f32 to vector<16x1xf32>
    %346 = arith.divf %344, %345 : vector<16x1xf32>
    %cst_121 = arith.constant 9.99999974E-6 : f32
    %347 = vector.broadcast %cst_121 : f32 to vector<16x1xf32>
    %348 = arith.addf %346, %347 : vector<16x1xf32>
    %349 = math.rsqrt %348 : vector<16x1xf32>
    %350 = vector.broadcast %349 : vector<16x1xf32> to vector<16x16xf32>
    %351 = arith.mulf %341, %350 : vector<16x16xf32>
    %352 = tpu.concatenate %334, %351 in 1 : vector<16x16xf32>, vector<16x16xf32> -> vector<16x32xf32>
    %353 = vector.shape_cast %315 : vector<32xf32> to vector<1x32xf32>
    %354 = vector.broadcast %353 : vector<1x32xf32> to vector<16x32xf32>
    %355 = arith.mulf %352, %354 : vector<16x32xf32>
    %356 = vector.shape_cast %317 : vector<32xf32> to vector<1x32xf32>
    %357 = vector.broadcast %356 : vector<1x32xf32> to vector<16x32xf32>
    %358 = arith.addf %355, %357 : vector<16x32xf32>
    %359 = vector.shape_cast %358 : vector<16x32xf32> to vector<2x8x32xf32>
    %cst_122 = arith.constant dense<0.000000e+00> : vector<2x32xf32>
    %360 = vector.multi_reduction <add>, %359, %cst_122 [1] : vector<2x8x32xf32> to vector<2x32xf32>
    %cst_123 = arith.constant 8.000000e+00 : f32
    %361 = vector.broadcast %cst_123 : f32 to vector<2x32xf32>
    %362 = arith.divf %360, %361 : vector<2x32xf32>
    %c0_124 = arith.constant 0 : index
    %c0_125 = arith.constant 0 : index
    %363 = vector.load %arg8[%c0_124, %c0_125] : memref<32x64xf32, #tpu.memory_space<vmem>>, vector<32x64xf32>
    %cst_126 = arith.constant dense<0.000000e+00> : vector<2x64xf32>
    %364 = tpu.matmul %362, %363, %cst_126 {dimension_numbers = #tpu.dot_dimension_numbers<[1], [0], [0], [1], [0, 0, 1, 1], [], []>} : vector<2x32xf32>, vector<32x64xf32>, vector<2x64xf32> -> vector<2x64xf32>
    %c0_127 = arith.constant 0 : index
    %c0_128 = arith.constant 0 : index
    %365 = vector.load %arg14[%c0_127, %c0_128] : memref<3x64xf32, #tpu.memory_space<vmem>>, vector<1x64xf32>
    %366 = vector.shape_cast %365 : vector<1x64xf32> to vector<64xf32>
    %367 = vector.shape_cast %366 : vector<64xf32> to vector<1x64xf32>
    %368 = vector.broadcast %367 : vector<1x64xf32> to vector<2x64xf32>
    %369 = arith.addf %364, %368 : vector<2x64xf32>
    %cst_129 = arith.constant 0.000000e+00 : f32
    %370 = vector.broadcast %cst_129 : f32 to vector<2x64xf32>
    %371 = arith.maximumf %369, %370 : vector<2x64xf32>
    %c0_130 = arith.constant 0 : index
    %c0_131 = arith.constant 0 : index
    %372 = vector.load %arg9[%c0_130, %c0_131] : memref<64x32xf32, #tpu.memory_space<vmem>>, vector<64x32xf32>
    %cst_132 = arith.constant dense<0.000000e+00> : vector<2x32xf32>
    %373 = tpu.matmul %371, %372, %cst_132 {dimension_numbers = #tpu.dot_dimension_numbers<[1], [0], [0], [1], [0, 0, 1, 1], [], []>} : vector<2x64xf32>, vector<64x32xf32>, vector<2x32xf32> -> vector<2x32xf32>
    %c1_133 = arith.constant 1 : index
    %c0_134 = arith.constant 0 : index
    %374 = vector.load %arg14[%c1_133, %c0_134] : memref<3x64xf32, #tpu.memory_space<vmem>>, vector<1x64xf32>
    %375 = vector.shape_cast %374 : vector<1x64xf32> to vector<64xf32>
    %376 = vector.extract_strided_slice %375 {offsets = [0], sizes = [32], strides = [1]} : vector<64xf32> to vector<32xf32>
    %377 = vector.shape_cast %376 : vector<32xf32> to vector<1x32xf32>
    %378 = vector.broadcast %377 : vector<1x32xf32> to vector<2x32xf32>
    %379 = arith.addf %373, %378 : vector<2x32xf32>
    %cst_135 = arith.constant 0.000000e+00 : f32
    %380 = vector.broadcast %cst_135 : f32 to vector<2x32xf32>
    %381 = arith.maximumf %379, %380 : vector<2x32xf32>
    %c0_136 = arith.constant 0 : index
    %c0_137 = arith.constant 0 : index
    %382 = vector.load %arg10[%c0_136, %c0_137] : memref<32x1xf32, #tpu.memory_space<vmem>>, vector<32x1xf32>
    %cst_138 = arith.constant dense<0.000000e+00> : vector<2x1xf32>
    %383 = tpu.matmul %381, %382, %cst_138 {dimension_numbers = #tpu.dot_dimension_numbers<[1], [0], [0], [1], [0, 0, 1, 1], [], []>} : vector<2x32xf32>, vector<32x1xf32>, vector<2x1xf32> -> vector<2x1xf32>
    %c2_139 = arith.constant 2 : index
    %c0_140 = arith.constant 0 : index
    %384 = vector.load %arg14[%c2_139, %c0_140] : memref<3x64xf32, #tpu.memory_space<vmem>>, vector<1x64xf32>
    %385 = vector.shape_cast %384 : vector<1x64xf32> to vector<64xf32>
    %386 = vector.extract_strided_slice %385 {offsets = [0], sizes = [1], strides = [1]} : vector<64xf32> to vector<1xf32>
    %387 = vector.shape_cast %386 : vector<1xf32> to vector<1x1xf32>
    %388 = vector.broadcast %387 : vector<1x1xf32> to vector<2x1xf32>
    %389 = arith.addf %383, %388 : vector<2x1xf32>
    %390 = arith.negf %389 : vector<2x1xf32>
    %391 = math.exp %390 : vector<2x1xf32>
    %cst_141 = arith.constant 1.000000e+00 : f32
    %392 = vector.broadcast %cst_141 : f32 to vector<2x1xf32>
    %393 = arith.addf %392, %391 : vector<2x1xf32>
    %394 = arith.divf %392, %393 : vector<2x1xf32>
    %c0_142 = arith.constant 0 : index
    %c0_143 = arith.constant 0 : index
    %395 = vector.load %arg15[%c0_142, %c0_143] : memref<2x1xf32, #tpu.memory_space<vmem>>, vector<2x1xf32>
    tpu.vector_store %arg15[%c0_142, %c0_143], %394 {strides = array<i32>} : memref<2x1xf32, #tpu.memory_space<vmem>>, vector<2x1xf32>,
    return
  }
  func.func @transform_0(%arg0: i32) -> (i32, i32, i32) {
    %c0_i32 = arith.constant 0 : i32
    %c0_i32_0 = arith.constant 0 : i32
    %c0_i32_1 = arith.constant 0 : i32
    return %arg0, %c0_i32, %c0_i32_0 : i32, i32, i32
  }
  func.func @transform_1(%arg0: i32) -> (i32, i32) {
    %c0_i32 = arith.constant 0 : i32
    %c0_i32_0 = arith.constant 0 : i32
    %c0_i32_1 = arith.constant 0 : i32
    return %c0_i32, %c0_i32_0 : i32, i32
  }
  func.func @transform_2(%arg0: i32) -> (i32, i32) {
    %c0_i32 = arith.constant 0 : i32
    %c0_i32_0 = arith.constant 0 : i32
    %c0_i32_1 = arith.constant 0 : i32
    return %c0_i32, %c0_i32_0 : i32, i32
  }
  func.func @transform_3(%arg0: i32) -> (i32, i32, i32) {
    %c0_i32 = arith.constant 0 : i32
    %c0_i32_0 = arith.constant 0 : i32
    %c0_i32_1 = arith.constant 0 : i32
    %c0_i32_2 = arith.constant 0 : i32
    return %c0_i32, %c0_i32_0, %c0_i32_1 : i32, i32, i32
  }
  func.func @transform_4(%arg0: i32) -> (i32, i32, i32, i32) {
    %c0_i32 = arith.constant 0 : i32
    %c0_i32_0 = arith.constant 0 : i32
    %c0_i32_1 = arith.constant 0 : i32
    %c0_i32_2 = arith.constant 0 : i32
    %c0_i32_3 = arith.constant 0 : i32
    return %c0_i32, %c0_i32_0, %c0_i32_1, %c0_i32_2 : i32, i32, i32, i32
  }
  func.func @transform_5(%arg0: i32) -> (i32, i32, i32) {
    %c0_i32 = arith.constant 0 : i32
    %c0_i32_0 = arith.constant 0 : i32
    %c0_i32_1 = arith.constant 0 : i32
    %c0_i32_2 = arith.constant 0 : i32
    return %c0_i32, %c0_i32_0, %c0_i32_1 : i32, i32, i32
  }
  func.func @transform_6(%arg0: i32) -> (i32, i32, i32) {
    %c0_i32 = arith.constant 0 : i32
    %c0_i32_0 = arith.constant 0 : i32
    %c0_i32_1 = arith.constant 0 : i32
    %c0_i32_2 = arith.constant 0 : i32
    return %c0_i32, %c0_i32_0, %c0_i32_1 : i32, i32, i32
  }
  func.func @transform_7(%arg0: i32) -> (i32, i32) {
    %c0_i32 = arith.constant 0 : i32
    %c0_i32_0 = arith.constant 0 : i32
    %c0_i32_1 = arith.constant 0 : i32
    return %c0_i32, %c0_i32_0 : i32, i32
  }
  func.func @transform_8(%arg0: i32) -> (i32, i32) {
    %c0_i32 = arith.constant 0 : i32
    %c0_i32_0 = arith.constant 0 : i32
    %c0_i32_1 = arith.constant 0 : i32
    return %c0_i32, %c0_i32_0 : i32, i32
  }
  func.func @transform_9(%arg0: i32) -> (i32, i32) {
    %c0_i32 = arith.constant 0 : i32
    %c0_i32_0 = arith.constant 0 : i32
    %c0_i32_1 = arith.constant 0 : i32
    return %c0_i32, %c0_i32_0 : i32, i32
  }
  func.func @transform_10(%arg0: i32) -> (i32, i32) {
    %c0_i32 = arith.constant 0 : i32
    %c0_i32_0 = arith.constant 0 : i32
    %c0_i32_1 = arith.constant 0 : i32
    return %c0_i32, %c0_i32_0 : i32, i32
  }
  func.func @transform_11(%arg0: i32) -> (i32, i32) {
    %c0_i32 = arith.constant 0 : i32
    %c0_i32_0 = arith.constant 0 : i32
    %c0_i32_1 = arith.constant 0 : i32
    return %c0_i32, %c0_i32_0 : i32, i32
  }
  func.func @transform_12(%arg0: i32) -> (i32, i32) {
    %c0_i32 = arith.constant 0 : i32
    %c0_i32_0 = arith.constant 0 : i32
    %c0_i32_1 = arith.constant 0 : i32
    return %c0_i32, %c0_i32_0 : i32, i32
  }
  func.func @transform_13(%arg0: i32) -> (i32, i32) {
    %c0_i32 = arith.constant 0 : i32
    %c0_i32_0 = arith.constant 0 : i32
    %c0_i32_1 = arith.constant 0 : i32
    return %c0_i32, %c0_i32_0 : i32, i32
  }
  func.func @transform_14(%arg0: i32) -> (i32, i32) {
    %c0_i32 = arith.constant 0 : i32
    %c0_i32_0 = arith.constant 0 : i32
    return %arg0, %c0_i32 : i32, i32
  }
}

</mosaic_0001>

<llo_original>
// kernel: tpu_custom_call.1
$region0: #{tpu_custom_call.1}
  #allocation0 [shape = 'u32[]', space=smem, size = 0x4, offset = 0x4, fixed_abs, tag = 'smem constant byte address 0x4 - core index']
  #allocation1 [shape = 'u32[144,128]{1,0:T(1,128)}', space=vmem, size = 0x12000, scoped, tag = 'internal scratch']
  %s0 = inlined_call_operand.vmem [shape: f32[2,8,32], index: 0, kind: input, shape index: {}]
  %s1 = inlined_call_operand.vmem [shape: f32[8,32], index: 1, kind: input, shape index: {}]
  %s2 = inlined_call_operand.vmem [shape: f32[32,32], index: 2, kind: input, shape index: {}]
  %s3 = inlined_call_operand.vmem [shape: f32[2,32,96], index: 3, kind: input, shape index: {}]
  %s4 = inlined_call_operand.vmem [shape: f32[2,2,16,32], index: 4, kind: input, shape index: {}]
  %s5 = inlined_call_operand.vmem [shape: f32[2,32,128], index: 5, kind: input, shape index: {}]
  %s6 = inlined_call_operand.vmem [shape: f32[2,128,32], index: 6, kind: input, shape index: {}]
  %s7 = inlined_call_operand.vmem [shape: f32[32,64], index: 7, kind: input, shape index: {}]
  %s8 = inlined_call_operand.vmem [shape: f32[64,32], index: 8, kind: input, shape index: {}]
  %s9 = inlined_call_operand.vmem [shape: f32[32,1], index: 9, kind: input, shape index: {}]
  %s10 = inlined_call_operand.vmem [shape: f32[13,32], index: 10, kind: input, shape index: {}]
  %s11 = inlined_call_operand.vmem [shape: f32[2,96], index: 11, kind: input, shape index: {}]
  %s12 = inlined_call_operand.vmem [shape: f32[2,128], index: 12, kind: input, shape index: {}]
  %s13 = inlined_call_operand.vmem [shape: f32[3,64], index: 13, kind: input, shape index: {}]
  %s14 = inlined_call_operand.vmem [shape: f32[2,1], index: 14, kind: output, shape index: {}]
  %s15 = sld [smem:[#allocation0]]
  $region66: #{tpu_custom_call.1} parent=0
    _
  %s17 = ssub.s32 1, %s15
  %s18 = scalar_select 0, %s17, %s15
  // Predicated region
  $region2: #{tpu_custom_call.1} parent=0 // pred_check
    _
  $region3: #{tpu_custom_call.1} parent=0 // pred_check_branch
    %20 = sbr.rel (0) target = $region5
  $region4: #{tpu_custom_call.1} parent=0 // pred_region
    _
  $region5: #{tpu_custom_call.1} parent=0 // pred_fallthru
    _
  // Predicated region
  $region6: #{tpu_custom_call.1} parent=0 // pred_check
    _
  $region7: #{tpu_custom_call.1} parent=0 // pred_check_branch
    %22 = sbr.rel (0) target = $region9
  $region8: #{tpu_custom_call.1} parent=0 // pred_region
    _
  $region9: #{tpu_custom_call.1} parent=0 // pred_fallthru
    _
  // Predicated region
  $region10: #{tpu_custom_call.1} parent=0 // pred_check
    _
  $region11: #{tpu_custom_call.1} parent=0 // pred_check_branch
    %24 = sbr.rel (0) target = $region13
  $region12: #{tpu_custom_call.1} parent=0 // pred_region
    _
  $region13: #{tpu_custom_call.1} parent=0 // pred_fallthru
    _
  // Predicated region
  $region14: #{tpu_custom_call.1} parent=0 // pred_check
    _
  $region15: #{tpu_custom_call.1} parent=0 // pred_check_branch
    %26 = sbr.rel (0) target = $region17
  $region16: #{tpu_custom_call.1} parent=0 // pred_region
    _
  $region17: #{tpu_custom_call.1} parent=0 // pred_fallthru
    _
  // Predicated region
  $region18: #{tpu_custom_call.1} parent=0 // pred_check
    _
  $region19: #{tpu_custom_call.1} parent=0 // pred_check_branch
    %28 = sbr.rel (0) target = $region21
  $region20: #{tpu_custom_call.1} parent=0 // pred_region
    _
  $region21: #{tpu_custom_call.1} parent=0 // pred_fallthru
    _
  // Predicated region
  $region22: #{tpu_custom_call.1} parent=0 // pred_check
    _
  $region23: #{tpu_custom_call.1} parent=0 // pred_check_branch
    %30 = sbr.rel (0) target = $region25
  $region24: #{tpu_custom_call.1} parent=0 // pred_region
    _
  $region25: #{tpu_custom_call.1} parent=0 // pred_fallthru
    _
  // Predicated region
  $region26: #{tpu_custom_call.1} parent=0 // pred_check
    _
  $region27: #{tpu_custom_call.1} parent=0 // pred_check_branch
    %32 = sbr.rel (0) target = $region29
  $region28: #{tpu_custom_call.1} parent=0 // pred_region
    _
  $region29: #{tpu_custom_call.1} parent=0 // pred_fallthru
    _
  // Predicated region
  $region30: #{tpu_custom_call.1} parent=0 // pred_check
    _
  $region31: #{tpu_custom_call.1} parent=0 // pred_check_branch
    %34 = sbr.rel (0) target = $region33
  $region32: #{tpu_custom_call.1} parent=0 // pred_region
    _
  $region33: #{tpu_custom_call.1} parent=0 // pred_fallthru
    _
  // Predicated region
  $region34: #{tpu_custom_call.1} parent=0 // pred_check
    _
  $region35: #{tpu_custom_call.1} parent=0 // pred_check_branch
    %36 = sbr.rel (0) target = $region37
  $region36: #{tpu_custom_call.1} parent=0 // pred_region
    _
  $region37: #{tpu_custom_call.1} parent=0 // pred_fallthru
    _
  // Predicated region
  $region38: #{tpu_custom_call.1} parent=0 // pred_check
    _
  $region39: #{tpu_custom_call.1} parent=0 // pred_check_branch
    %38 = sbr.rel (0) target = $region41
  $region40: #{tpu_custom_call.1} parent=0 // pred_region
    _
  $region41: #{tpu_custom_call.1} parent=0 // pred_fallthru
    _
  // Predicated region
  $region42: #{tpu_custom_call.1} parent=0 // pred_check
    _
  $region43: #{tpu_custom_call.1} parent=0 // pred_check_branch
    %40 = sbr.rel (0) target = $region45
  $region44: #{tpu_custom_call.1} parent=0 // pred_region
    _
  $region45: #{tpu_custom_call.1} parent=0 // pred_fallthru
    _
  // Predicated region
  $region46: #{tpu_custom_call.1} parent=0 // pred_check
    _
  $region47: #{tpu_custom_call.1} parent=0 // pred_check_branch
    %42 = sbr.rel (0) target = $region49
  $region48: #{tpu_custom_call.1} parent=0 // pred_region
    _
  $region49: #{tpu_custom_call.1} parent=0 // pred_fallthru
    _
  // Predicated region
  $region50: #{tpu_custom_call.1} parent=0 // pred_check
    _
  $region51: #{tpu_custom_call.1} parent=0 // pred_check_branch
    %44 = sbr.rel (0) target = $region53
  $region52: #{tpu_custom_call.1} parent=0 // pred_region
    _
  $region53: #{tpu_custom_call.1} parent=0 // pred_fallthru
    _
  // Predicated region
  $region54: #{tpu_custom_call.1} parent=0 // pred_check
    _
  $region55: #{tpu_custom_call.1} parent=0 // pred_check_branch
    %46 = sbr.rel (0) target = $region57
  $region56: #{tpu_custom_call.1} parent=0 // pred_region
    _
  $region57: #{tpu_custom_call.1} parent=0 // pred_fallthru
    _
  %v47 = vld [vmem:[%s0] sm:$0xff]
  %v48 = vld [vmem:[%s0 + $0x8] sm:$0xff]
  %v49 = vld [vmem:[%s2] sm:$0xff]
  %v50 = vld [vmem:[%s2 + $0x8] sm:$0xff]
  %v51 = vld [vmem:[%s2 + $0x10] sm:$0xff]
  %v52 = vld [vmem:[%s2 + $0x18] sm:$0xff]
  %v53 = vld [vmem:[%s10] sm:$0x1]
  %v54 = vlaneseq
  %v55 = vshrl.u32 %v54, 7
  %v56 = vsub.s32 0, %v55
  %v57 = vrot.slane %v53, %v56
  %vm58 = vcmask 261120
  %v60 = vsel %vm58, %v47, 0
  %v63 = vsel %vm58, %v48, 0
  %65 = vmatprep.subr.mxu0 0.0
  %66 = vmatpush1.msra.mxu0 %v49
  %67 = vmatprep.subr.mxu0 0.0
  %68 = vmatpush1.msra.mxu0 %v50
  %69 = vmatprep.subr.mxu0 0.0
  %70 = vmatpush1.msra.mxu0 %v51
  %71 = vmatprep.subr.mxu0 0.0
  %72 = vmatpush1.msra.mxu0 %v52
  %73 = vmatprep.subr.mxu0 0.0
  %74 = vmatpush1.msra.mxu0 0.0
  %75 = vmatprep.subr.mxu0 0.0
  %76 = vmatpush1.msra.mxu0 0.0
  %77 = vmatprep.subr.mxu0 0.0
  %78 = vmatpush1.msra.mxu0 0.0
  %79 = vmatprep.subr.mxu0 0.0
  %80 = vmatpush1.msra.mxu0 0.0
  %81 = vmatprep.subr.mxu0 0.0
  %82 = vmatpush1.msra.mxu0 0.0
  %83 = vmatprep.subr.mxu0 0.0
  %84 = vmatpush1.msra.mxu0 0.0
  %85 = vmatprep.subr.mxu0 0.0
  %86 = vmatpush1.msra.mxu0 0.0
  %87 = vmatprep.subr.mxu0 0.0
  %88 = vmatpush1.msra.mxu0 0.0
  %89 = vmatprep.subr.mxu0 0.0
  %90 = vmatpush1.msra.mxu0 0.0
  %91 = vmatprep.subr.mxu0 0.0
  %92 = vmatpush1.msra.mxu0 0.0
  %93 = vmatprep.subr.mxu0 0.0
  %94 = vmatpush1.msra.mxu0 0.0
  %95 = vmatprep.subr.mxu0 0.0
  %96 = vmatpush1.msra.mxu0 0.0
  %97 = vmatprep.subr.mxu0 0.0
  %98 = vmatpush1.msra.mxu0 0.0
  %99 = vmatprep.subr.mxu0 0.0
  %100 = vmatpush1.msra.mxu0 0.0
  %101 = vmatprep.subr.mxu0 0.0
  %102 = vmatpush1.msra.mxu0 0.0
  %103 = vmatprep.subr.mxu0 0.0
  %104 = vmatpush1.msra.mxu0 0.0
  %105 = vmatprep.subr.mxu0 0.0
  %106 = vmatpush1.msra.mxu0 0.0
  %107 = vmatprep.subr.mxu0 0.0
  %108 = vmatpush1.msra.mxu0 0.0
  %109 = vmatprep.subr.mxu0 0.0
  %110 = vmatpush1.msra.mxu0 0.0
  %111 = vmatprep.subr.mxu0 0.0
  %112 = vmatpush1.msra.mxu0 0.0
  %113 = vmatprep.subr.mxu0 0.0
  %114 = vmatpush1.msra.mxu0 0.0
  %115 = vmatprep.subr.mxu0 0.0
  %116 = vmatpush1.msra.mxu0 0.0
  %117 = vmatprep.subr.mxu0 0.0
  %118 = vmatpush1.msra.mxu0 0.0
  %119 = vmatprep.subr.mxu0 0.0
  %120 = vmatpush1.msra.mxu0 0.0
  %121 = vmatprep.subr.mxu0 0.0
  %122 = vmatpush1.msra.mxu0 0.0
  %123 = vmatprep.subr.mxu0 0.0
  %124 = vmatpush1.msra.mxu0 0.0
  %125 = vmatprep.subr.mxu0 0.0
  %126 = vmatpush1.msra.mxu0 0.0
  %127 = vmatprep.subr.mxu0 0.0
  %128 = vmatpush1.msra.mxu0 0.0
  %129 = vmatprep.mubr.f32.mxu0 0.0
  %130 = vmatmul.mubr.f32.gmra.mrb[0].mxu0 %v60
  %v131 = vpop.f32.mrb[0].mxu0
  %v132 = vadd.f32 %v57, %v131
  %v133 = vpop.f32.mrb[0].mxu0
  %134 = vmatprep.mubr.f32.mxu0 0.0
  %135 = vmatmul.mubr.f32.gmra.mrb[0].mxu0 %v63
  %v136 = vpop.f32.mrb[0].mxu0
  %v137 = vadd.f32 %v57, %v136
  %v138 = vpop.f32.mrb[0].mxu0
  %139 = vdwg.mxu0
  %v140 = vld [vmem:[%s1] sm:$0xff]
  %v141 = vadd.f32 %v132, %v140
  %v142 = vadd.f32 %v137, %v140
  %v143 = vld [vmem:[%s3] sm:$0xff]
  %v144 = vld [vmem:[%s3 + $0x8] sm:$0xff]
  %v145 = vld [vmem:[%s3 + $0x10] sm:$0xff]
  %v146 = vld [vmem:[%s3 + $0x18] sm:$0xff]
  %v147 = vld [vmem:[%s11] sm:$0x1]
  %v148 = vlaneseq
  %v149 = vshrl.u32 %v148, 7
  %v150 = vsub.s32 0, %v149
  %v151 = vrot.slane %v147, %v150
  %v153 = vsel %vm58, %v141, 0
  %v156 = vsel %vm58, %v142, 0
  %158 = vmatprep.subr.mxu0 0.0
  %159 = vmatpush1.msra.mxu0 %v143
  %160 = vmatprep.subr.mxu0 0.0
  %161 = vmatpush1.msra.mxu0 %v144
  %162 = vmatprep.subr.mxu0 0.0
  %163 = vmatpush1.msra.mxu0 %v145
  %164 = vmatprep.subr.mxu0 0.0
  %165 = vmatpush1.msra.mxu0 %v146
  %166 = vmatprep.subr.mxu0 0.0
  %167 = vmatpush1.msra.mxu0 0.0
  %168 = vmatprep.subr.mxu0 0.0
  %169 = vmatpush1.msra.mxu0 0.0
  %170 = vmatprep.subr.mxu0 0.0
  %171 = vmatpush1.msra.mxu0 0.0
  %172 = vmatprep.subr.mxu0 0.0
  %173 = vmatpush1.msra.mxu0 0.0
  %174 = vmatprep.subr.mxu0 0.0
  %175 = vmatpush1.msra.mxu0 0.0
  %176 = vmatprep.subr.mxu0 0.0
  %177 = vmatpush1.msra.mxu0 0.0
  %178 = vmatprep.subr.mxu0 0.0
  %179 = vmatpush1.msra.mxu0 0.0
  %180 = vmatprep.subr.mxu0 0.0
  %181 = vmatpush1.msra.mxu0 0.0
  %182 = vmatprep.subr.mxu0 0.0
  %183 = vmatpush1.msra.mxu0 0.0
  %184 = vmatprep.subr.mxu0 0.0
  %185 = vmatpush1.msra.mxu0 0.0
  %186 = vmatprep.subr.mxu0 0.0
  %187 = vmatpush1.msra.mxu0 0.0
  %188 = vmatprep.subr.mxu0 0.0
  %189 = vmatpush1.msra.mxu0 0.0
  %190 = vmatprep.subr.mxu0 0.0
  %191 = vmatpush1.msra.mxu0 0.0
  %192 = vmatprep.subr.mxu0 0.0
  %193 = vmatpush1.msra.mxu0 0.0
  %194 = vmatprep.subr.mxu0 0.0
  %195 = vmatpush1.msra.mxu0 0.0
  %196 = vmatprep.subr.mxu0 0.0
  %197 = vmatpush1.msra.mxu0 0.0
  %198 = vmatprep.subr.mxu0 0.0
  %199 = vmatpush1.msra.mxu0 0.0
  %200 = vmatprep.subr.mxu0 0.0
  %201 = vmatpush1.msra.mxu0 0.0
  %202 = vmatprep.subr.mxu0 0.0
  %203 = vmatpush1.msra.mxu0 0.0
  %204 = vmatprep.subr.mxu0 0.0
  %205 = vmatpush1.msra.mxu0 0.0
  %206 = vmatprep.subr.mxu0 0.0
  %207 = vmatpush1.msra.mxu0 0.0
  %208 = vmatprep.subr.mxu0 0.0
  %209 = vmatpush1.msra.mxu0 0.0
  %210 = vmatprep.subr.mxu0 0.0
  %211 = vmatpush1.msra.mxu0 0.0
  %212 = vmatprep.subr.mxu0 0.0
  %213 = vmatpush1.msra.mxu0 0.0
  %214 = vmatprep.subr.mxu0 0.0
  %215 = vmatpush1.msra.mxu0 0.0
  %216 = vmatprep.subr.mxu0 0.0
  %217 = vmatpush1.msra.mxu0 0.0
  %218 = vmatprep.subr.mxu0 0.0
  %219 = vmatpush1.msra.mxu0 0.0
  %220 = vmatprep.subr.mxu0 0.0
  %221 = vmatpush1.msra.mxu0 0.0
  %222 = vmatprep.mubr.f32.mxu0 0.0
  %223 = vmatmul.mubr.f32.gmra.mrb[0].mxu0 %v153
  %v224 = vpop.f32.mrb[0].mxu0
  %v225 = vadd.f32 %v151, %v224
  %v226 = vpop.f32.mrb[0].mxu0
  %227 = vmatprep.mubr.f32.mxu0 0.0
  %228 = vmatmul.mubr.f32.gmra.mrb[0].mxu0 %v156
  %v229 = vpop.f32.mrb[0].mxu0
  %v230 = vadd.f32 %v151, %v229
  %v231 = vpop.f32.mrb[0].mxu0
  %232 = vdwg.mxu0
  %v235 = vcombine.high %v225, %v225
  %v237 = vunpack.c.l.s4 1966171168
  %v238 = vunpack.c.0.s8 %v237
  %v239 = vlaneseq
  %v240 = vshrl.u32 %v239, 7
  %v241 = vsub.s32 %v238, %v240
  %v242 = vrot.slane %v225, %v241
  %v244 = vunpack.c.l.s4 1966171168
  %v245 = vunpack.c.0.s8 %v244
  %v246 = vlaneseq
  %v247 = vshrl.u32 %v246, 7
  %v248 = vsub.s32 %v245, %v247
  %v249 = vrot.slane %v235, %v248
  %v250 = vcombine.high %v242, %v242
  %v251 = vcombine.high %v249, %v249
  %v253 = vunpack.c.l.s4 1966171168
  %v254 = vunpack.c.0.s8 %v253
  %v255 = vlaneseq
  %v256 = vshrl.u32 %v255, 7
  %v257 = vsub.s32 %v254, %v256
  %v258 = vrot.slane %v242, %v257
  %v260 = vunpack.c.l.s4 1966171168
  %v261 = vunpack.c.0.s8 %v260
  %v262 = vlaneseq
  %v263 = vshrl.u32 %v262, 7
  %v264 = vsub.s32 %v261, %v263
  %v265 = vrot.slane %v249, %v264
  %v267 = vunpack.c.l.s4 1966171168
  %v268 = vunpack.c.0.s8 %v267
  %v269 = vlaneseq
  %v270 = vshrl.u32 %v269, 7
  %v271 = vsub.s32 %v268, %v270
  %v272 = vrot.slane %v250, %v271
  %v274 = vunpack.c.l.s4 1966171168
  %v275 = vunpack.c.0.s8 %v274
  %v276 = vlaneseq
  %v277 = vshrl.u32 %v276, 7
  %v278 = vsub.s32 %v275, %v277
  %v279 = vrot.slane %v251, %v278
  %v280 = vcombine.high %v258, %v258
  %v281 = vcombine.high %v265, %v265
  %v282 = vcombine.high %v272, %v272
  %v283 = vcombine.high %v279, %v279
  %v284 = vcombine.high %v230, %v230
  %v286 = vunpack.c.l.s4 1966171168
  %v287 = vunpack.c.0.s8 %v286
  %v288 = vlaneseq
  %v289 = vshrl.u32 %v288, 7
  %v290 = vsub.s32 %v287, %v289
  %v291 = vrot.slane %v230, %v290
  %v293 = vunpack.c.l.s4 1966171168
  %v294 = vunpack.c.0.s8 %v293
  %v295 = vlaneseq
  %v296 = vshrl.u32 %v295, 7
  %v297 = vsub.s32 %v294, %v296
  %v298 = vrot.slane %v284, %v297
  %v299 = vcombine.high %v291, %v291
  %v300 = vcombine.high %v298, %v298
  %v302 = vunpack.c.l.s4 1966171168
  %v303 = vunpack.c.0.s8 %v302
  %v304 = vlaneseq
  %v305 = vshrl.u32 %v304, 7
  %v306 = vsub.s32 %v303, %v305
  %v307 = vrot.slane %v291, %v306
  %v309 = vunpack.c.l.s4 1966171168
  %v310 = vunpack.c.0.s8 %v309
  %v311 = vlaneseq
  %v312 = vshrl.u32 %v311, 7
  %v313 = vsub.s32 %v310, %v312
  %v314 = vrot.slane %v298, %v313
  %v316 = vunpack.c.l.s4 1966171168
  %v317 = vunpack.c.0.s8 %v316
  %v318 = vlaneseq
  %v319 = vshrl.u32 %v318, 7
  %v320 = vsub.s32 %v317, %v319
  %v321 = vrot.slane %v299, %v320
  %v323 = vunpack.c.l.s4 1966171168
  %v324 = vunpack.c.0.s8 %v323
  %v325 = vlaneseq
  %v326 = vshrl.u32 %v325, 7
  %v327 = vsub.s32 %v324, %v326
  %v328 = vrot.slane %v300, %v327
  %v329 = vcombine.high %v307, %v307
  %v330 = vcombine.high %v314, %v314
  %v331 = vcombine.high %v321, %v321
  %v332 = vcombine.high %v328, %v328
  %v333 = vlaneseq
  %v334 = vshrl.u32 %v333, 7
  %v335 = vsub.s32 0, %v334
  %v336 = vrot.slane %v258, %v335
  %v337 = vlaneseq
  %v338 = vshrl.u32 %v337, 7
  %v339 = vsub.s32 0, %v338
  %v340 = vrot.slane %v272, %v339
  %v341 = vlaneseq
  %v342 = vshrl.u32 %v341, 7
  %v343 = vsub.s32 0, %v342
  %v344 = vrot.slane %v280, %v343
  %v345 = vlaneseq
  %v346 = vshrl.u32 %v345, 7
  %v347 = vsub.s32 0, %v346
  %v348 = vrot.slane %v282, %v347
  %v349 = vlaneseq
  %v350 = vshrl.u32 %v349, 7
  %v351 = vsub.s32 0, %v350
  %v352 = vrot.slane %v265, %v351
  %v353 = vlaneseq
  %v354 = vshrl.u32 %v353, 7
  %v355 = vsub.s32 0, %v354
  %v356 = vrot.slane %v279, %v355
  %v357 = vlaneseq
  %v358 = vshrl.u32 %v357, 7
  %v359 = vsub.s32 0, %v358
  %v360 = vrot.slane %v281, %v359
  %v361 = vlaneseq
  %v362 = vshrl.u32 %v361, 7
  %v363 = vsub.s32 0, %v362
  %v364 = vrot.slane %v283, %v363
  %v365 = vlaneseq
  %v366 = vshrl.u32 %v365, 7
  %v367 = vsub.s32 0, %v366
  %v368 = vrot.slane %v307, %v367
  %v369 = vlaneseq
  %v370 = vshrl.u32 %v369, 7
  %v371 = vsub.s32 0, %v370
  %v372 = vrot.slane %v321, %v371
  %v373 = vlaneseq
  %v374 = vshrl.u32 %v373, 7
  %v375 = vsub.s32 0, %v374
  %v376 = vrot.slane %v329, %v375
  %v377 = vlaneseq
  %v378 = vshrl.u32 %v377, 7
  %v379 = vsub.s32 0, %v378
  %v380 = vrot.slane %v331, %v379
  %v381 = vlaneseq
  %v382 = vshrl.u32 %v381, 7
  %v383 = vsub.s32 0, %v382
  %v384 = vrot.slane %v314, %v383
  %v385 = vlaneseq
  %v386 = vshrl.u32 %v385, 7
  %v387 = vsub.s32 0, %v386
  %v388 = vrot.slane %v328, %v387
  %v389 = vlaneseq
  %v390 = vshrl.u32 %v389, 7
  %v391 = vsub.s32 0, %v390
  %v392 = vrot.slane %v330, %v391
  %v393 = vlaneseq
  %v394 = vshrl.u32 %v393, 7
  %v395 = vsub.s32 0, %v394
  %v396 = vrot.slane %v332, %v395
  %413 = vrot.lane.b32.xlu0 %v225, 96
  %v414 = vpop.permute.xlu0 %413
  %415 = vrot.lane.b32.xlu0 %v230, 96
  %v416 = vpop.permute.xlu0 %415
  %v419 = vmul.f32 %v336, %v414
  %v420 = vmul.f32 %v340, %v414
  %v421 = vmul.f32 %v344, %v414
  %v422 = vmul.f32 %v348, %v414
  %v423 = vmul.f32 %v352, %v414
  %v424 = vmul.f32 %v356, %v414
  %v425 = vmul.f32 %v360, %v414
  %v426 = vmul.f32 %v364, %v414
  %v427 = vmul.f32 %v368, %v416
  %v428 = vmul.f32 %v372, %v416
  %v429 = vmul.f32 %v376, %v416
  %v430 = vmul.f32 %v380, %v416
  %v431 = vmul.f32 %v384, %v416
  %v432 = vmul.f32 %v388, %v416
  %v433 = vmul.f32 %v392, %v416
  %v434 = vmul.f32 %v396, %v416
  %451 = vrot.lane.b32.xlu0 %v419, 112
  %v452 = vpop.permute.xlu0 %451
  %453 = vrot.lane.b32.xlu0 %v420, 112
  %v454 = vpop.permute.xlu0 %453
  %455 = vrot.lane.b32.xlu0 %v421, 112
  %v456 = vpop.permute.xlu0 %455
  %457 = vrot.lane.b32.xlu0 %v422, 112
  %v458 = vpop.permute.xlu0 %457
  %459 = vrot.lane.b32.xlu0 %v423, 112
  %v460 = vpop.permute.xlu0 %459
  %461 = vrot.lane.b32.xlu0 %v424, 112
  %v462 = vpop.permute.xlu0 %461
  %463 = vrot.lane.b32.xlu0 %v425, 112
  %v464 = vpop.permute.xlu0 %463
  %465 = vrot.lane.b32.xlu0 %v426, 112
  %v466 = vpop.permute.xlu0 %465
  %467 = vrot.lane.b32.xlu0 %v427, 112
  %v468 = vpop.permute.xlu0 %467
  %469 = vrot.lane.b32.xlu0 %v428, 112
  %v470 = vpop.permute.xlu0 %469
  %471 = vrot.lane.b32.xlu0 %v429, 112
  %v472 = vpop.permute.xlu0 %471
  %473 = vrot.lane.b32.xlu0 %v430, 112
  %v474 = vpop.permute.xlu0 %473
  %475 = vrot.lane.b32.xlu0 %v431, 112
  %v476 = vpop.permute.xlu0 %475
  %477 = vrot.lane.b32.xlu0 %v432, 112
  %v478 = vpop.permute.xlu0 %477
  %479 = vrot.lane.b32.xlu0 %v433, 112
  %v480 = vpop.permute.xlu0 %479
  %481 = vrot.lane.b32.xlu0 %v434, 112
  %v482 = vpop.permute.xlu0 %481
  %v499 = vadd.f32 %v419, %v452
  %v500 = vadd.f32 %v420, %v454
  %v501 = vadd.f32 %v421, %v456
  %v502 = vadd.f32 %v422, %v458
  %v503 = vadd.f32 %v423, %v460
  %v504 = vadd.f32 %v424, %v462
  %v505 = vadd.f32 %v425, %v464
  %v506 = vadd.f32 %v426, %v466
  %v507 = vadd.f32 %v427, %v468
  %v508 = vadd.f32 %v428, %v470
  %v509 = vadd.f32 %v429, %v472
  %v510 = vadd.f32 %v430, %v474
  %v511 = vadd.f32 %v431, %v476
  %v512 = vadd.f32 %v432, %v478
  %v513 = vadd.f32 %v433, %v480
  %v514 = vadd.f32 %v434, %v482
  %vm515 = vcmask 130048
  %v516 = vsel %vm515, %v499, -inf
  %v517 = vrot.slane %v516, 4
  %v518 = vmax.f32 %v516, %v517
  %v519 = vrot.slane %v518, 2
  %v520 = vmax.f32 %v518, %v519
  %v521 = vrot.slane %v520, 1
  %v522 = vmax.f32 %v520, %v521
  %v523 = vsel %vm515, %v500, -inf
  %v524 = vrot.slane %v523, 4
  %v525 = vmax.f32 %v523, %v524
  %v526 = vrot.slane %v525, 2
  %v527 = vmax.f32 %v525, %v526
  %v528 = vrot.slane %v527, 1
  %v529 = vmax.f32 %v527, %v528
  %v530 = vsel %vm515, %v501, -inf
  %v531 = vrot.slane %v530, 4
  %v532 = vmax.f32 %v530, %v531
  %v533 = vrot.slane %v532, 2
  %v534 = vmax.f32 %v532, %v533
  %v535 = vrot.slane %v534, 1
  %v536 = vmax.f32 %v534, %v535
  %v537 = vsel %vm515, %v502, -inf
  %v538 = vrot.slane %v537, 4
  %v539 = vmax.f32 %v537, %v538
  %v540 = vrot.slane %v539, 2
  %v541 = vmax.f32 %v539, %v540
  %v542 = vrot.slane %v541, 1
  %v543 = vmax.f32 %v541, %v542
  %v544 = vsel %vm515, %v503, -inf
  %v545 = vrot.slane %v544, 4
  %v546 = vmax.f32 %v544, %v545
  %v547 = vrot.slane %v546, 2
  %v548 = vmax.f32 %v546, %v547
  %v549 = vrot.slane %v548, 1
  %v550 = vmax.f32 %v548, %v549
  %v551 = vsel %vm515, %v504, -inf
  %v552 = vrot.slane %v551, 4
  %v553 = vmax.f32 %v551, %v552
  %v554 = vrot.slane %v553, 2
  %v555 = vmax.f32 %v553, %v554
  %v556 = vrot.slane %v555, 1
  %v557 = vmax.f32 %v555, %v556
  %v558 = vsel %vm515, %v505, -inf
  %v559 = vrot.slane %v558, 4
  %v560 = vmax.f32 %v558, %v559
  %v561 = vrot.slane %v560, 2
  %v562 = vmax.f32 %v560, %v561
  %v563 = vrot.slane %v562, 1
  %v564 = vmax.f32 %v562, %v563
  %v565 = vsel %vm515, %v506, -inf
  %v566 = vrot.slane %v565, 4
  %v567 = vmax.f32 %v565, %v566
  %v568 = vrot.slane %v567, 2
  %v569 = vmax.f32 %v567, %v568
  %v570 = vrot.slane %v569, 1
  %v571 = vmax.f32 %v569, %v570
  %v572 = vsel %vm515, %v507, -inf
  %v573 = vrot.slane %v572, 4
  %v574 = vmax.f32 %v572, %v573
  %v575 = vrot.slane %v574, 2
  %v576 = vmax.f32 %v574, %v575
  %v577 = vrot.slane %v576, 1
  %v578 = vmax.f32 %v576, %v577
  %v579 = vsel %vm515, %v508, -inf
  %v580 = vrot.slane %v579, 4
  %v581 = vmax.f32 %v579, %v580
  %v582 = vrot.slane %v581, 2
  %v583 = vmax.f32 %v581, %v582
  %v584 = vrot.slane %v583, 1
  %v585 = vmax.f32 %v583, %v584
  %v586 = vsel %vm515, %v509, -inf
  %v587 = vrot.slane %v586, 4
  %v588 = vmax.f32 %v586, %v587
  %v589 = vrot.slane %v588, 2
  %v590 = vmax.f32 %v588, %v589
  %v591 = vrot.slane %v590, 1
  %v592 = vmax.f32 %v590, %v591
  %v593 = vsel %vm515, %v510, -inf
  %v594 = vrot.slane %v593, 4
  %v595 = vmax.f32 %v593, %v594
  %v596 = vrot.slane %v595, 2
  %v597 = vmax.f32 %v595, %v596
  %v598 = vrot.slane %v597, 1
  %v599 = vmax.f32 %v597, %v598
  %v600 = vsel %vm515, %v511, -inf
  %v601 = vrot.slane %v600, 4
  %v602 = vmax.f32 %v600, %v601
  %v603 = vrot.slane %v602, 2
  %v604 = vmax.f32 %v602, %v603
  %v605 = vrot.slane %v604, 1
  %v606 = vmax.f32 %v604, %v605
  %v607 = vsel %vm515, %v512, -inf
  %v608 = vrot.slane %v607, 4
  %v609 = vmax.f32 %v607, %v608
  %v610 = vrot.slane %v609, 2
  %v611 = vmax.f32 %v609, %v610
  %v612 = vrot.slane %v611, 1
  %v613 = vmax.f32 %v611, %v612
  %v614 = vsel %vm515, %v513, -inf
  %v615 = vrot.slane %v614, 4
  %v616 = vmax.f32 %v614, %v615
  %v617 = vrot.slane %v616, 2
  %v618 = vmax.f32 %v616, %v617
  %v619 = vrot.slane %v618, 1
  %v620 = vmax.f32 %v618, %v619
  %v621 = vsel %vm515, %v514, -inf
  %v622 = vrot.slane %v621, 4
  %v623 = vmax.f32 %v621, %v622
  %v624 = vrot.slane %v623, 2
  %v625 = vmax.f32 %v623, %v624
  %v626 = vrot.slane %v625, 1
  %v627 = vmax.f32 %v625, %v626
  %v628 = vsub.f32 %v499, %v522
  %v629 = vsub.f32 %v500, %v529
  %v630 = vsub.f32 %v501, %v536
  %v631 = vsub.f32 %v502, %v543
  %v632 = vsub.f32 %v503, %v550
  %v633 = vsub.f32 %v504, %v557
  %v634 = vsub.f32 %v505, %v564
  %v635 = vsub.f32 %v506, %v571
  %v636 = vsub.f32 %v507, %v578
  %v637 = vsub.f32 %v508, %v585
  %v638 = vsub.f32 %v509, %v592
  %v639 = vsub.f32 %v510, %v599
  %v640 = vsub.f32 %v511, %v606
  %v641 = vsub.f32 %v512, %v613
  %v642 = vsub.f32 %v513, %v620
  %v643 = vsub.f32 %v514, %v627
  %v644 = vmul.f32 %v628, 1.442695
  %v645 = vpow.pop %v644
  %v646 = vmul.f32 %v629, 1.442695
  %v647 = vpow.pop %v646
  %v648 = vmul.f32 %v630, 1.442695
  %v649 = vpow.pop %v648
  %v650 = vmul.f32 %v631, 1.442695
  %v651 = vpow.pop %v650
  %v652 = vmul.f32 %v632, 1.442695
  %v653 = vpow.pop %v652
  %v654 = vmul.f32 %v633, 1.442695
  %v655 = vpow.pop %v654
  %v656 = vmul.f32 %v634, 1.442695
  %v657 = vpow.pop %v656
  %v658 = vmul.f32 %v635, 1.442695
  %v659 = vpow.pop %v658
  %v660 = vmul.f32 %v636, 1.442695
  %v661 = vpow.pop %v660
  %v662 = vmul.f32 %v637, 1.442695
  %v663 = vpow.pop %v662
  %v664 = vmul.f32 %v638, 1.442695
  %v665 = vpow.pop %v664
  %v666 = vmul.f32 %v639, 1.442695
  %v667 = vpow.pop %v666
  %v668 = vmul.f32 %v640, 1.442695
  %v669 = vpow.pop %v668
  %v670 = vmul.f32 %v641, 1.442695
  %v671 = vpow.pop %v670
  %v672 = vmul.f32 %v642, 1.442695
  %v673 = vpow.pop %v672
  %v674 = vmul.f32 %v643, 1.442695
  %v675 = vpow.pop %v674
  %v676 = vsel %vm515, %v645, 0.0
  %v677 = vrot.slane %v676, 4
  %v678 = vadd.f32 %v676, %v677
  %v679 = vrot.slane %v678, 2
  %v680 = vadd.f32 %v678, %v679
  %v681 = vrot.slane %v680, 1
  %v682 = vadd.f32 %v680, %v681
  %v683 = vsel %vm515, %v647, 0.0
  %v684 = vrot.slane %v683, 4
  %v685 = vadd.f32 %v683, %v684
  %v686 = vrot.slane %v685, 2
  %v687 = vadd.f32 %v685, %v686
  %v688 = vrot.slane %v687, 1
  %v689 = vadd.f32 %v687, %v688
  %v690 = vsel %vm515, %v649, 0.0
  %v691 = vrot.slane %v690, 4
  %v692 = vadd.f32 %v690, %v691
  %v693 = vrot.slane %v692, 2
  %v694 = vadd.f32 %v692, %v693
  %v695 = vrot.slane %v694, 1
  %v696 = vadd.f32 %v694, %v695
  %v697 = vsel %vm515, %v651, 0.0
  %v698 = vrot.slane %v697, 4
  %v699 = vadd.f32 %v697, %v698
  %v700 = vrot.slane %v699, 2
  %v701 = vadd.f32 %v699, %v700
  %v702 = vrot.slane %v701, 1
  %v703 = vadd.f32 %v701, %v702
  %v704 = vsel %vm515, %v653, 0.0
  %v705 = vrot.slane %v704, 4
  %v706 = vadd.f32 %v704, %v705
  %v707 = vrot.slane %v706, 2
  %v708 = vadd.f32 %v706, %v707
  %v709 = vrot.slane %v708, 1
  %v710 = vadd.f32 %v708, %v709
  %v711 = vsel %vm515, %v655, 0.0
  %v712 = vrot.slane %v711, 4
  %v713 = vadd.f32 %v711, %v712
  %v714 = vrot.slane %v713, 2
  %v715 = vadd.f32 %v713, %v714
  %v716 = vrot.slane %v715, 1
  %v717 = vadd.f32 %v715, %v716
  %v718 = vsel %vm515, %v657, 0.0
  %v719 = vrot.slane %v718, 4
  %v720 = vadd.f32 %v718, %v719
  %v721 = vrot.slane %v720, 2
  %v722 = vadd.f32 %v720, %v721
  %v723 = vrot.slane %v722, 1
  %v724 = vadd.f32 %v722, %v723
  %v725 = vsel %vm515, %v659, 0.0
  %v726 = vrot.slane %v725, 4
  %v727 = vadd.f32 %v725, %v726
  %v728 = vrot.slane %v727, 2
  %v729 = vadd.f32 %v727, %v728
  %v730 = vrot.slane %v729, 1
  %v731 = vadd.f32 %v729, %v730
  %v732 = vsel %vm515, %v661, 0.0
  %v733 = vrot.slane %v732, 4
  %v734 = vadd.f32 %v732, %v733
  %v735 = vrot.slane %v734, 2
  %v736 = vadd.f32 %v734, %v735
  %v737 = vrot.slane %v736, 1
  %v738 = vadd.f32 %v736, %v737
  %v739 = vsel %vm515, %v663, 0.0
  %v740 = vrot.slane %v739, 4
  %v741 = vadd.f32 %v739, %v740
  %v742 = vrot.slane %v741, 2
  %v743 = vadd.f32 %v741, %v742
  %v744 = vrot.slane %v743, 1
  %v745 = vadd.f32 %v743, %v744
  %v746 = vsel %vm515, %v665, 0.0
  %v747 = vrot.slane %v746, 4
  %v748 = vadd.f32 %v746, %v747
  %v749 = vrot.slane %v748, 2
  %v750 = vadd.f32 %v748, %v749
  %v751 = vrot.slane %v750, 1
  %v752 = vadd.f32 %v750, %v751
  %v753 = vsel %vm515, %v667, 0.0
  %v754 = vrot.slane %v753, 4
  %v755 = vadd.f32 %v753, %v754
  %v756 = vrot.slane %v755, 2
  %v757 = vadd.f32 %v755, %v756
  %v758 = vrot.slane %v757, 1
  %v759 = vadd.f32 %v757, %v758
  %v760 = vsel %vm515, %v669, 0.0
  %v761 = vrot.slane %v760, 4
  %v762 = vadd.f32 %v760, %v761
  %v763 = vrot.slane %v762, 2
  %v764 = vadd.f32 %v762, %v763
  %v765 = vrot.slane %v764, 1
  %v766 = vadd.f32 %v764, %v765
  %v767 = vsel %vm515, %v671, 0.0
  %v768 = vrot.slane %v767, 4
  %v769 = vadd.f32 %v767, %v768
  %v770 = vrot.slane %v769, 2
  %v771 = vadd.f32 %v769, %v770
  %v772 = vrot.slane %v771, 1
  %v773 = vadd.f32 %v771, %v772
  %v774 = vsel %vm515, %v673, 0.0
  %v775 = vrot.slane %v774, 4
  %v776 = vadd.f32 %v774, %v775
  %v777 = vrot.slane %v776, 2
  %v778 = vadd.f32 %v776, %v777
  %v779 = vrot.slane %v778, 1
  %v780 = vadd.f32 %v778, %v779
  %v781 = vsel %vm515, %v675, 0.0
  %v782 = vrot.slane %v781, 4
  %v783 = vadd.f32 %v781, %v782
  %v784 = vrot.slane %v783, 2
  %v785 = vadd.f32 %v783, %v784
  %v786 = vrot.slane %v785, 1
  %v787 = vadd.f32 %v785, %v786
  %v788 = vrcp.pop %v682
  %v789 = vmul.f32 %v645, %v788
  %v790 = vrcp.pop %v689
  %v791 = vmul.f32 %v647, %v790
  %v792 = vrcp.pop %v696
  %v793 = vmul.f32 %v649, %v792
  %v794 = vrcp.pop %v703
  %v795 = vmul.f32 %v651, %v794
  %v796 = vrcp.pop %v710
  %v797 = vmul.f32 %v653, %v796
  %v798 = vrcp.pop %v717
  %v799 = vmul.f32 %v655, %v798
  %v800 = vrcp.pop %v724
  %v801 = vmul.f32 %v657, %v800
  %v802 = vrcp.pop %v731
  %v803 = vmul.f32 %v659, %v802
  %v804 = vrcp.pop %v738
  %v805 = vmul.f32 %v661, %v804
  %v806 = vrcp.pop %v745
  %v807 = vmul.f32 %v663, %v806
  %v808 = vrcp.pop %v752
  %v809 = vmul.f32 %v665, %v808
  %v810 = vrcp.pop %v759
  %v811 = vmul.f32 %v667, %v810
  %v812 = vrcp.pop %v766
  %v813 = vmul.f32 %v669, %v812
  %v814 = vrcp.pop %v773
  %v815 = vmul.f32 %v671, %v814
  %v816 = vrcp.pop %v780
  %v817 = vmul.f32 %v673, %v816
  %v818 = vrcp.pop %v787
  %v819 = vmul.f32 %v675, %v818
  %820 = vrot.lane.b32.xlu0 %v225, 64
  %v821 = vpop.permute.xlu0 %820
  %822 = vrot.lane.b32.xlu0 %v230, 64
  %v823 = vpop.permute.xlu0 %822
  %v826 = vmul.f32 %v789, %v821
  %v827 = vmul.f32 %v791, %v821
  %v828 = vmul.f32 %v793, %v821
  %v829 = vmul.f32 %v795, %v821
  %v830 = vmul.f32 %v797, %v821
  %v831 = vmul.f32 %v799, %v821
  %v832 = vmul.f32 %v801, %v821
  %v833 = vmul.f32 %v803, %v821
  %v834 = vmul.f32 %v805, %v823
  %v835 = vmul.f32 %v807, %v823
  %v836 = vmul.f32 %v809, %v823
  %v837 = vmul.f32 %v811, %v823
  %v838 = vmul.f32 %v813, %v823
  %v839 = vmul.f32 %v815, %v823
  %v840 = vmul.f32 %v817, %v823
  %v841 = vmul.f32 %v819, %v823
  %v842 = vsel %vm515, %v826, 0.0
  %v843 = vrot.slane %v842, 4
  %v844 = vadd.f32 %v842, %v843
  %v845 = vrot.slane %v844, 2
  %v846 = vadd.f32 %v844, %v845
  %v847 = vrot.slane %v846, 1
  %v848 = vadd.f32 %v846, %v847
  %v849 = vsel %vm515, %v827, 0.0
  %v850 = vrot.slane %v849, 4
  %v851 = vadd.f32 %v849, %v850
  %v852 = vrot.slane %v851, 2
  %v853 = vadd.f32 %v851, %v852
  %v854 = vrot.slane %v853, 1
  %v855 = vadd.f32 %v853, %v854
  %v856 = vsel %vm515, %v828, 0.0
  %v857 = vrot.slane %v856, 4
  %v858 = vadd.f32 %v856, %v857
  %v859 = vrot.slane %v858, 2
  %v860 = vadd.f32 %v858, %v859
  %v861 = vrot.slane %v860, 1
  %v862 = vadd.f32 %v860, %v861
  %v863 = vsel %vm515, %v829, 0.0
  %v864 = vrot.slane %v863, 4
  %v865 = vadd.f32 %v863, %v864
  %v866 = vrot.slane %v865, 2
  %v867 = vadd.f32 %v865, %v866
  %v868 = vrot.slane %v867, 1
  %v869 = vadd.f32 %v867, %v868
  %v870 = vsel %vm515, %v830, 0.0
  %v871 = vrot.slane %v870, 4
  %v872 = vadd.f32 %v870, %v871
  %v873 = vrot.slane %v872, 2
  %v874 = vadd.f32 %v872, %v873
  %v875 = vrot.slane %v874, 1
  %v876 = vadd.f32 %v874, %v875
  %v877 = vsel %vm515, %v831, 0.0
  %v878 = vrot.slane %v877, 4
  %v879 = vadd.f32 %v877, %v878
  %v880 = vrot.slane %v879, 2
  %v881 = vadd.f32 %v879, %v880
  %v882 = vrot.slane %v881, 1
  %v883 = vadd.f32 %v881, %v882
  %v884 = vsel %vm515, %v832, 0.0
  %v885 = vrot.slane %v884, 4
  %v886 = vadd.f32 %v884, %v885
  %v887 = vrot.slane %v886, 2
  %v888 = vadd.f32 %v886, %v887
  %v889 = vrot.slane %v888, 1
  %v890 = vadd.f32 %v888, %v889
  %v891 = vsel %vm515, %v833, 0.0
  %v892 = vrot.slane %v891, 4
  %v893 = vadd.f32 %v891, %v892
  %v894 = vrot.slane %v893, 2
  %v895 = vadd.f32 %v893, %v894
  %v896 = vrot.slane %v895, 1
  %v897 = vadd.f32 %v895, %v896
  %v898 = vsel %vm515, %v834, 0.0
  %v899 = vrot.slane %v898, 4
  %v900 = vadd.f32 %v898, %v899
  %v901 = vrot.slane %v900, 2
  %v902 = vadd.f32 %v900, %v901
  %v903 = vrot.slane %v902, 1
  %v904 = vadd.f32 %v902, %v903
  %v905 = vsel %vm515, %v835, 0.0
  %v906 = vrot.slane %v905, 4
  %v907 = vadd.f32 %v905, %v906
  %v908 = vrot.slane %v907, 2
  %v909 = vadd.f32 %v907, %v908
  %v910 = vrot.slane %v909, 1
  %v911 = vadd.f32 %v909, %v910
  %v912 = vsel %vm515, %v836, 0.0
  %v913 = vrot.slane %v912, 4
  %v914 = vadd.f32 %v912, %v913
  %v915 = vrot.slane %v914, 2
  %v916 = vadd.f32 %v914, %v915
  %v917 = vrot.slane %v916, 1
  %v918 = vadd.f32 %v916, %v917
  %v919 = vsel %vm515, %v837, 0.0
  %v920 = vrot.slane %v919, 4
  %v921 = vadd.f32 %v919, %v920
  %v922 = vrot.slane %v921, 2
  %v923 = vadd.f32 %v921, %v922
  %v924 = vrot.slane %v923, 1
  %v925 = vadd.f32 %v923, %v924
  %v926 = vsel %vm515, %v838, 0.0
  %v927 = vrot.slane %v926, 4
  %v928 = vadd.f32 %v926, %v927
  %v929 = vrot.slane %v928, 2
  %v930 = vadd.f32 %v928, %v929
  %v931 = vrot.slane %v930, 1
  %v932 = vadd.f32 %v930, %v931
  %v933 = vsel %vm515, %v839, 0.0
  %v934 = vrot.slane %v933, 4
  %v935 = vadd.f32 %v933, %v934
  %v936 = vrot.slane %v935, 2
  %v937 = vadd.f32 %v935, %v936
  %v938 = vrot.slane %v937, 1
  %v939 = vadd.f32 %v937, %v938
  %v940 = vsel %vm515, %v840, 0.0
  %v941 = vrot.slane %v940, 4
  %v942 = vadd.f32 %v940, %v941
  %v943 = vrot.slane %v942, 2
  %v944 = vadd.f32 %v942, %v943
  %v945 = vrot.slane %v944, 1
  %v946 = vadd.f32 %v944, %v945
  %v947 = vsel %vm515, %v841, 0.0
  %v948 = vrot.slane %v947, 4
  %v949 = vadd.f32 %v947, %v948
  %v950 = vrot.slane %v949, 2
  %v951 = vadd.f32 %v949, %v950
  %v952 = vrot.slane %v951, 1
  %v953 = vadd.f32 %v951, %v952
  %954 = vrot.lane.b32.xlu0 %v225, 48
  %v955 = vpop.permute.xlu0 %954
  %956 = vrot.lane.b32.xlu0 %v230, 48
  %v957 = vpop.permute.xlu0 %956
  %v960 = vmul.f32 %v789, %v955
  %v961 = vmul.f32 %v791, %v955
  %v962 = vmul.f32 %v793, %v955
  %v963 = vmul.f32 %v795, %v955
  %v964 = vmul.f32 %v797, %v955
  %v965 = vmul.f32 %v799, %v955
  %v966 = vmul.f32 %v801, %v955
  %v967 = vmul.f32 %v803, %v955
  %v968 = vmul.f32 %v805, %v957
  %v969 = vmul.f32 %v807, %v957
  %v970 = vmul.f32 %v809, %v957
  %v971 = vmul.f32 %v811, %v957
  %v972 = vmul.f32 %v813, %v957
  %v973 = vmul.f32 %v815, %v957
  %v974 = vmul.f32 %v817, %v957
  %v975 = vmul.f32 %v819, %v957
  %v976 = vsel %vm515, %v960, 0.0
  %v977 = vrot.slane %v976, 4
  %v978 = vadd.f32 %v976, %v977
  %v979 = vrot.slane %v978, 2
  %v980 = vadd.f32 %v978, %v979
  %v981 = vrot.slane %v980, 1
  %v982 = vadd.f32 %v980, %v981
  %v983 = vsel %vm515, %v961, 0.0
  %v984 = vrot.slane %v983, 4
  %v985 = vadd.f32 %v983, %v984
  %v986 = vrot.slane %v985, 2
  %v987 = vadd.f32 %v985, %v986
  %v988 = vrot.slane %v987, 1
  %v989 = vadd.f32 %v987, %v988
  %v990 = vsel %vm515, %v962, 0.0
  %v991 = vrot.slane %v990, 4
  %v992 = vadd.f32 %v990, %v991
  %v993 = vrot.slane %v992, 2
  %v994 = vadd.f32 %v992, %v993
  %v995 = vrot.slane %v994, 1
  %v996 = vadd.f32 %v994, %v995
  %v997 = vsel %vm515, %v963, 0.0
  %v998 = vrot.slane %v997, 4
  %v999 = vadd.f32 %v997, %v998
  %v1000 = vrot.slane %v999, 2
  %v1001 = vadd.f32 %v999, %v1000
  %v1002 = vrot.slane %v1001, 1
  %v1003 = vadd.f32 %v1001, %v1002
  %v1004 = vsel %vm515, %v964, 0.0
  %v1005 = vrot.slane %v1004, 4
  %v1006 = vadd.f32 %v1004, %v1005
  %v1007 = vrot.slane %v1006, 2
  %v1008 = vadd.f32 %v1006, %v1007
  %v1009 = vrot.slane %v1008, 1
  %v1010 = vadd.f32 %v1008, %v1009
  %v1011 = vsel %vm515, %v965, 0.0
  %v1012 = vrot.slane %v1011, 4
  %v1013 = vadd.f32 %v1011, %v1012
  %v1014 = vrot.slane %v1013, 2
  %v1015 = vadd.f32 %v1013, %v1014
  %v1016 = vrot.slane %v1015, 1
  %v1017 = vadd.f32 %v1015, %v1016
  %v1018 = vsel %vm515, %v966, 0.0
  %v1019 = vrot.slane %v1018, 4
  %v1020 = vadd.f32 %v1018, %v1019
  %v1021 = vrot.slane %v1020, 2
  %v1022 = vadd.f32 %v1020, %v1021
  %v1023 = vrot.slane %v1022, 1
  %v1024 = vadd.f32 %v1022, %v1023
  %v1025 = vsel %vm515, %v967, 0.0
  %v1026 = vrot.slane %v1025, 4
  %v1027 = vadd.f32 %v1025, %v1026
  %v1028 = vrot.slane %v1027, 2
  %v1029 = vadd.f32 %v1027, %v1028
  %v1030 = vrot.slane %v1029, 1
  %v1031 = vadd.f32 %v1029, %v1030
  %v1032 = vsel %vm515, %v968, 0.0
  %v1033 = vrot.slane %v1032, 4
  %v1034 = vadd.f32 %v1032, %v1033
  %v1035 = vrot.slane %v1034, 2
  %v1036 = vadd.f32 %v1034, %v1035
  %v1037 = vrot.slane %v1036, 1
  %v1038 = vadd.f32 %v1036, %v1037
  %v1039 = vsel %vm515, %v969, 0.0
  %v1040 = vrot.slane %v1039, 4
  %v1041 = vadd.f32 %v1039, %v1040
  %v1042 = vrot.slane %v1041, 2
  %v1043 = vadd.f32 %v1041, %v1042
  %v1044 = vrot.slane %v1043, 1
  %v1045 = vadd.f32 %v1043, %v1044
  %v1046 = vsel %vm515, %v970, 0.0
  %v1047 = vrot.slane %v1046, 4
  %v1048 = vadd.f32 %v1046, %v1047
  %v1049 = vrot.slane %v1048, 2
  %v1050 = vadd.f32 %v1048, %v1049
  %v1051 = vrot.slane %v1050, 1
  %v1052 = vadd.f32 %v1050, %v1051
  %v1053 = vsel %vm515, %v971, 0.0
  %v1054 = vrot.slane %v1053, 4
  %v1055 = vadd.f32 %v1053, %v1054
  %v1056 = vrot.slane %v1055, 2
  %v1057 = vadd.f32 %v1055, %v1056
  %v1058 = vrot.slane %v1057, 1
  %v1059 = vadd.f32 %v1057, %v1058
  %v1060 = vsel %vm515, %v972, 0.0
  %v1061 = vrot.slane %v1060, 4
  %v1062 = vadd.f32 %v1060, %v1061
  %v1063 = vrot.slane %v1062, 2
  %v1064 = vadd.f32 %v1062, %v1063
  %v1065 = vrot.slane %v1064, 1
  %v1066 = vadd.f32 %v1064, %v1065
  %v1067 = vsel %vm515, %v973, 0.0
  %v1068 = vrot.slane %v1067, 4
  %v1069 = vadd.f32 %v1067, %v1068
  %v1070 = vrot.slane %v1069, 2
  %v1071 = vadd.f32 %v1069, %v1070
  %v1072 = vrot.slane %v1071, 1
  %v1073 = vadd.f32 %v1071, %v1072
  %v1074 = vsel %vm515, %v974, 0.0
  %v1075 = vrot.slane %v1074, 4
  %v1076 = vadd.f32 %v1074, %v1075
  %v1077 = vrot.slane %v1076, 2
  %v1078 = vadd.f32 %v1076, %v1077
  %v1079 = vrot.slane %v1078, 1
  %v1080 = vadd.f32 %v1078, %v1079
  %v1081 = vsel %vm515, %v975, 0.0
  %v1082 = vrot.slane %v1081, 4
  %v1083 = vadd.f32 %v1081, %v1082
  %v1084 = vrot.slane %v1083, 2
  %v1085 = vadd.f32 %v1083, %v1084
  %v1086 = vrot.slane %v1085, 1
  %v1087 = vadd.f32 %v1085, %v1086
  %v1088 = vld [vmem:[%s4] sm:$0xff]
  %v1089 = vld [vmem:[%s4 + $0x8] sm:$0xff]
  %s1090 = scalar_lea.vmem %s4, 16
  %v1091 = vld [vmem:[%s1090] sm:$0xff]
  %v1092 = vld [vmem:[%s1090 + $0x8] sm:$0xff]
  %vm1109 = vcmask 1041409
  %v1110 = vsel %vm1109, %v989, %v982
  %vm1111 = vcmask 1042434
  %v1112 = vsel %vm1111, %v996, %v1110
  %vm1113 = vcmask 1043459
  %v1114 = vsel %vm1113, %v1003, %v1112
  %vm1115 = vcmask 1044484
  %v1116 = vsel %vm1115, %v1010, %v1114
  %vm1117 = vcmask 1045509
  %v1118 = vsel %vm1117, %v1017, %v1116
  %vm1119 = vcmask 1046534
  %v1120 = vsel %vm1119, %v1024, %v1118
  %vm1121 = vcmask 1047559
  %v1122 = vsel %vm1121, %v1031, %v1120
  %v1123 = vsel %vm1109, %v1045, %v1038
  %v1124 = vsel %vm1111, %v1052, %v1123
  %v1125 = vsel %vm1113, %v1059, %v1124
  %v1126 = vsel %vm1115, %v1066, %v1125
  %v1127 = vsel %vm1117, %v1073, %v1126
  %v1128 = vsel %vm1119, %v1080, %v1127
  %v1129 = vsel %vm1121, %v1087, %v1128
  %v1130 = vsel %vm515, %v1122, 0
  %v1132 = vsel %vm515, %v1129, 0
  %1134 = vmatprep.subr.mxu0 0.0
  %1135 = vmatpush1.msra.mxu0 %v1091
  %1136 = vmatprep.subr.mxu0 0.0
  %1137 = vmatpush1.msra.mxu0 %v1092
  %1138 = vmatprep.subr.mxu0 0.0
  %1139 = vmatpush1.msra.mxu0 0.0
  %1140 = vmatprep.subr.mxu0 0.0
  %1141 = vmatpush1.msra.mxu0 0.0
  %1142 = vmatprep.subr.mxu0 0.0
  %1143 = vmatpush1.msra.mxu0 0.0
  %1144 = vmatprep.subr.mxu0 0.0
  %1145 = vmatpush1.msra.mxu0 0.0
  %1146 = vmatprep.subr.mxu0 0.0
  %1147 = vmatpush1.msra.mxu0 0.0
  %1148 = vmatprep.subr.mxu0 0.0
  %1149 = vmatpush1.msra.mxu0 0.0
  %1150 = vmatprep.subr.mxu0 0.0
  %1151 = vmatpush1.msra.mxu0 0.0
  %1152 = vmatprep.subr.mxu0 0.0
  %1153 = vmatpush1.msra.mxu0 0.0
  %1154 = vmatprep.subr.mxu0 0.0
  %1155 = vmatpush1.msra.mxu0 0.0
  %1156 = vmatprep.subr.mxu0 0.0
  %1157 = vmatpush1.msra.mxu0 0.0
  %1158 = vmatprep.subr.mxu0 0.0
  %1159 = vmatpush1.msra.mxu0 0.0
  %1160 = vmatprep.subr.mxu0 0.0
  %1161 = vmatpush1.msra.mxu0 0.0
  %1162 = vmatprep.subr.mxu0 0.0
  %1163 = vmatpush1.msra.mxu0 0.0
  %1164 = vmatprep.subr.mxu0 0.0
  %1165 = vmatpush1.msra.mxu0 0.0
  %1166 = vmatprep.subr.mxu0 0.0
  %1167 = vmatpush1.msra.mxu0 0.0
  %1168 = vmatprep.subr.mxu0 0.0
  %1169 = vmatpush1.msra.mxu0 0.0
  %1170 = vmatprep.subr.mxu0 0.0
  %1171 = vmatpush1.msra.mxu0 0.0
  %1172 = vmatprep.subr.mxu0 0.0
  %1173 = vmatpush1.msra.mxu0 0.0
  %1174 = vmatprep.subr.mxu0 0.0
  %1175 = vmatpush1.msra.mxu0 0.0
  %1176 = vmatprep.subr.mxu0 0.0
  %1177 = vmatpush1.msra.mxu0 0.0
  %1178 = vmatprep.subr.mxu0 0.0
  %1179 = vmatpush1.msra.mxu0 0.0
  %1180 = vmatprep.subr.mxu0 0.0
  %1181 = vmatpush1.msra.mxu0 0.0
  %1182 = vmatprep.subr.mxu0 0.0
  %1183 = vmatpush1.msra.mxu0 0.0
  %1184 = vmatprep.subr.mxu0 0.0
  %1185 = vmatpush1.msra.mxu0 0.0
  %1186 = vmatprep.subr.mxu0 0.0
  %1187 = vmatpush1.msra.mxu0 0.0
  %1188 = vmatprep.subr.mxu0 0.0
  %1189 = vmatpush1.msra.mxu0 0.0
  %1190 = vmatprep.subr.mxu0 0.0
  %1191 = vmatpush1.msra.mxu0 0.0
  %1192 = vmatprep.subr.mxu0 0.0
  %1193 = vmatpush1.msra.mxu0 0.0
  %1194 = vmatprep.subr.mxu0 0.0
  %1195 = vmatpush1.msra.mxu0 0.0
  %1196 = vmatprep.subr.mxu0 0.0
  %1197 = vmatpush1.msra.mxu0 0.0
  %1198 = vmatprep.mubr.f32.mxu0 0.0
  %1199 = vmatmul.mubr.f32.gmra.mrb[0].mxu0 %v1130
  %v1200 = vpop.f32.mrb[0].mxu0
  %v1201 = vadd.f32 0.0, %v1200
  %v1202 = vpop.f32.mrb[0].mxu0
  %1203 = vmatprep.mubr.f32.mxu0 0.0
  %1204 = vmatmul.mubr.f32.gmra.mrb[0].mxu0 %v1132
  %v1205 = vpop.f32.mrb[0].mxu0
  %v1206 = vadd.f32 0.0, %v1205
  %v1207 = vpop.f32.mrb[0].mxu0
  %1208 = vdwg.mxu0
  %v1225 = vsel %vm1109, %v855, %v848
  %v1226 = vsel %vm1111, %v862, %v1225
  %v1227 = vsel %vm1113, %v869, %v1226
  %v1228 = vsel %vm1115, %v876, %v1227
  %v1229 = vsel %vm1117, %v883, %v1228
  %v1230 = vsel %vm1119, %v890, %v1229
  %v1231 = vsel %vm1121, %v897, %v1230
  %v1232 = vsel %vm1109, %v911, %v904
  %v1233 = vsel %vm1111, %v918, %v1232
  %v1234 = vsel %vm1113, %v925, %v1233
  %v1235 = vsel %vm1115, %v932, %v1234
  %v1236 = vsel %vm1117, %v939, %v1235
  %v1237 = vsel %vm1119, %v946, %v1236
  %v1238 = vsel %vm1121, %v953, %v1237
  %v1239 = vsel %vm515, %v1231, 0
  %v1241 = vsel %vm515, %v1238, 0
  %1243 = vmatprep.subr.mxu0 0.0
  %1244 = vmatpush1.msra.mxu0 %v1088
  %1245 = vmatprep.subr.mxu0 0.0
  %1246 = vmatpush1.msra.mxu0 %v1089
  %1247 = vmatprep.subr.mxu0 0.0
  %1248 = vmatpush1.msra.mxu0 0.0
  %1249 = vmatprep.subr.mxu0 0.0
  %1250 = vmatpush1.msra.mxu0 0.0
  %1251 = vmatprep.subr.mxu0 0.0
  %1252 = vmatpush1.msra.mxu0 0.0
  %1253 = vmatprep.subr.mxu0 0.0
  %1254 = vmatpush1.msra.mxu0 0.0
  %1255 = vmatprep.subr.mxu0 0.0
  %1256 = vmatpush1.msra.mxu0 0.0
  %1257 = vmatprep.subr.mxu0 0.0
  %1258 = vmatpush1.msra.mxu0 0.0
  %1259 = vmatprep.subr.mxu0 0.0
  %1260 = vmatpush1.msra.mxu0 0.0
  %1261 = vmatprep.subr.mxu0 0.0
  %1262 = vmatpush1.msra.mxu0 0.0
  %1263 = vmatprep.subr.mxu0 0.0
  %1264 = vmatpush1.msra.mxu0 0.0
  %1265 = vmatprep.subr.mxu0 0.0
  %1266 = vmatpush1.msra.mxu0 0.0
  %1267 = vmatprep.subr.mxu0 0.0
  %1268 = vmatpush1.msra.mxu0 0.0
  %1269 = vmatprep.subr.mxu0 0.0
  %1270 = vmatpush1.msra.mxu0 0.0
  %1271 = vmatprep.subr.mxu0 0.0
  %1272 = vmatpush1.msra.mxu0 0.0
  %1273 = vmatprep.subr.mxu0 0.0
  %1274 = vmatpush1.msra.mxu0 0.0
  %1275 = vmatprep.subr.mxu0 0.0
  %1276 = vmatpush1.msra.mxu0 0.0
  %1277 = vmatprep.subr.mxu0 0.0
  %1278 = vmatpush1.msra.mxu0 0.0
  %1279 = vmatprep.subr.mxu0 0.0
  %1280 = vmatpush1.msra.mxu0 0.0
  %1281 = vmatprep.subr.mxu0 0.0
  %1282 = vmatpush1.msra.mxu0 0.0
  %1283 = vmatprep.subr.mxu0 0.0
  %1284 = vmatpush1.msra.mxu0 0.0
  %1285 = vmatprep.subr.mxu0 0.0
  %1286 = vmatpush1.msra.mxu0 0.0
  %1287 = vmatprep.subr.mxu0 0.0
  %1288 = vmatpush1.msra.mxu0 0.0
  %1289 = vmatprep.subr.mxu0 0.0
  %1290 = vmatpush1.msra.mxu0 0.0
  %1291 = vmatprep.subr.mxu0 0.0
  %1292 = vmatpush1.msra.mxu0 0.0
  %1293 = vmatprep.subr.mxu0 0.0
  %1294 = vmatpush1.msra.mxu0 0.0
  %1295 = vmatprep.subr.mxu0 0.0
  %1296 = vmatpush1.msra.mxu0 0.0
  %1297 = vmatprep.subr.mxu0 0.0
  %1298 = vmatpush1.msra.mxu0 0.0
  %1299 = vmatprep.subr.mxu0 0.0
  %1300 = vmatpush1.msra.mxu0 0.0
  %1301 = vmatprep.subr.mxu0 0.0
  %1302 = vmatpush1.msra.mxu0 0.0
  %1303 = vmatprep.subr.mxu0 0.0
  %1304 = vmatpush1.msra.mxu0 0.0
  %1305 = vmatprep.subr.mxu0 0.0
  %1306 = vmatpush1.msra.mxu0 0.0
  %1307 = vmatprep.mubr.f32.mxu0 0.0
  %1308 = vmatmul.mubr.f32.gmra.mrb[0].mxu0 %v1239
  %v1309 = vpop.f32.mrb[0].mxu0
  %v1310 = vadd.f32 %v1201, %v1309
  %v1311 = vpop.f32.mrb[0].mxu0
  %1312 = vmatprep.mubr.f32.mxu0 0.0
  %1313 = vmatmul.mubr.f32.gmra.mrb[0].mxu0 %v1241
  %v1314 = vpop.f32.mrb[0].mxu0
  %v1315 = vadd.f32 %v1206, %v1314
  %v1316 = vpop.f32.mrb[0].mxu0
  %1317 = vdwg.mxu0
  %v1318 = vld [vmem:[%s10 + $0x1] sm:$0x1]
  %v1319 = vlaneseq
  %v1320 = vshrl.u32 %v1319, 7
  %v1321 = vsub.s32 0, %v1320
  %v1322 = vrot.slane %v1318, %v1321
  %v1323 = vadd.f32 %v1310, %v1322
  %v1324 = vadd.f32 %v1315, %v1322
  %v1325 = vadd.f32 %v141, %v1323
  %v1326 = vadd.f32 %v142, %v1324
  %v1327 = vld [vmem:[%s10 + $0x2] sm:$0x1]
  %v1328 = vld [vmem:[%s10 + $0x3] sm:$0x1]
  %v1329 = vsel %vm515, %v1325, 0.0
  %1330 = vadd.xlane.f32.xlu0 %v1329
  %v1331 = vpop.xlane.xlu0 %1330
  %v1332 = vsel %vm515, %v1326, 0.0
  %1333 = vadd.xlane.f32.xlu0 %v1332
  %v1334 = vpop.xlane.xlu0 %1333
  %v1335 = vrcp.pop 16.0
  %v1336 = vmul.f32 %v1331, %v1335
  %v1337 = vmul.f32 %v1334, %v1335
  %v1338 = vsub.f32 %v1325, %v1336
  %v1339 = vsub.f32 %v1326, %v1337
  %v1340 = vmul.f32 %v1338, %v1338
  %v1341 = vmul.f32 %v1339, %v1339
  %v1342 = vsel %vm515, %v1340, 0.0
  %1343 = vadd.xlane.f32.xlu0 %v1342
  %v1344 = vpop.xlane.xlu0 %1343
  %v1345 = vsel %vm515, %v1341, 0.0
  %1346 = vadd.xlane.f32.xlu0 %v1345
  %v1347 = vpop.xlane.xlu0 %1346
  %v1348 = vmul.f32 %v1344, %v1335
  %v1349 = vmul.f32 %v1347, %v1335
  %v1350 = vadd.f32 %v1348, 1e-05
  %v1351 = vadd.f32 %v1349, 1e-05
  %v1352 = vrsqrt.pop %v1350
  %v1353 = vrsqrt.pop %v1351
  %v1354 = vmul.f32 %v1338, %v1352
  %v1355 = vmul.f32 %v1339, %v1353
  %1358 = vrot.lane.b32.xlu0 %v1325, 112
  %v1359 = vpop.permute.xlu0 %1358
  %1360 = vrot.lane.b32.xlu0 %v1326, 112
  %v1361 = vpop.permute.xlu0 %1360
  %v1364 = vsel %vm515, %v1359, 0.0
  %1365 = vadd.xlane.f32.xlu0 %v1364
  %v1366 = vpop.xlane.xlu0 %1365
  %v1367 = vsel %vm515, %v1361, 0.0
  %1368 = vadd.xlane.f32.xlu0 %v1367
  %v1369 = vpop.xlane.xlu0 %1368
  %v1370 = vmul.f32 %v1366, %v1335
  %v1371 = vmul.f32 %v1369, %v1335
  %v1372 = vsub.f32 %v1325, %v1370
  %v1373 = vsub.f32 %v1326, %v1371
  %v1374 = vmul.f32 %v1372, %v1372
  %v1375 = vmul.f32 %v1373, %v1373
  %1378 = vrot.lane.b32.xlu0 %v1374, 112
  %v1379 = vpop.permute.xlu0 %1378
  %1380 = vrot.lane.b32.xlu0 %v1375, 112
  %v1381 = vpop.permute.xlu0 %1380
  %v1384 = vsel %vm515, %v1379, 0.0
  %1385 = vadd.xlane.f32.xlu0 %v1384
  %v1386 = vpop.xlane.xlu0 %1385
  %v1387 = vsel %vm515, %v1381, 0.0
  %1388 = vadd.xlane.f32.xlu0 %v1387
  %v1389 = vpop.xlane.xlu0 %1388
  %v1390 = vmul.f32 %v1386, %v1335
  %v1391 = vmul.f32 %v1389, %v1335
  %v1392 = vadd.f32 %v1390, 1e-05
  %v1393 = vadd.f32 %v1391, 1e-05
  %v1394 = vrsqrt.pop %v1392
  %v1395 = vrsqrt.pop %v1393
  %v1396 = vmul.f32 %v1372, %v1394
  %v1397 = vmul.f32 %v1373, %v1395
  %v1398 = vsel %vm515, %v1354, %v1396
  %v1399 = vsel %vm515, %v1355, %v1397
  %v1400 = vlaneseq
  %v1401 = vshrl.u32 %v1400, 7
  %v1402 = vsub.s32 0, %v1401
  %v1403 = vrot.slane %v1327, %v1402
  %v1404 = vmul.f32 %v1398, %v1403
  %v1405 = vmul.f32 %v1399, %v1403
  %v1406 = vlaneseq
  %v1407 = vshrl.u32 %v1406, 7
  %v1408 = vsub.s32 0, %v1407
  %v1409 = vrot.slane %v1328, %v1408
  %v1410 = vadd.f32 %v1404, %v1409
  %v1411 = vadd.f32 %v1405, %v1409
  %v1412 = vld [vmem:[%s5] sm:$0xff]
  %v1413 = vld [vmem:[%s5 + $0x8] sm:$0xff]
  %v1414 = vld [vmem:[%s5 + $0x10] sm:$0xff]
  %v1415 = vld [vmem:[%s5 + $0x18] sm:$0xff]
  %v1416 = vld [vmem:[%s12] sm:$0x1]
  %v1417 = vlaneseq
  %v1418 = vshrl.u32 %v1417, 7
  %v1419 = vsub.s32 0, %v1418
  %v1420 = vrot.slane %v1416, %v1419
  %v1422 = vsel %vm58, %v1410, 0
  %v1425 = vsel %vm58, %v1411, 0
  %1427 = vmatprep.subr.mxu0 0.0
  %1428 = vmatpush1.msra.mxu0 %v1412
  %1429 = vmatprep.subr.mxu0 0.0
  %1430 = vmatpush1.msra.mxu0 %v1413
  %1431 = vmatprep.subr.mxu0 0.0
  %1432 = vmatpush1.msra.mxu0 %v1414
  %1433 = vmatprep.subr.mxu0 0.0
  %1434 = vmatpush1.msra.mxu0 %v1415
  %1435 = vmatprep.subr.mxu0 0.0
  %1436 = vmatpush1.msra.mxu0 0.0
  %1437 = vmatprep.subr.mxu0 0.0
  %1438 = vmatpush1.msra.mxu0 0.0
  %1439 = vmatprep.subr.mxu0 0.0
  %1440 = vmatpush1.msra.mxu0 0.0
  %1441 = vmatprep.subr.mxu0 0.0
  %1442 = vmatpush1.msra.mxu0 0.0
  %1443 = vmatprep.subr.mxu0 0.0
  %1444 = vmatpush1.msra.mxu0 0.0
  %1445 = vmatprep.subr.mxu0 0.0
  %1446 = vmatpush1.msra.mxu0 0.0
  %1447 = vmatprep.subr.mxu0 0.0
  %1448 = vmatpush1.msra.mxu0 0.0
  %1449 = vmatprep.subr.mxu0 0.0
  %1450 = vmatpush1.msra.mxu0 0.0
  %1451 = vmatprep.subr.mxu0 0.0
  %1452 = vmatpush1.msra.mxu0 0.0
  %1453 = vmatprep.subr.mxu0 0.0
  %1454 = vmatpush1.msra.mxu0 0.0
  %1455 = vmatprep.subr.mxu0 0.0
  %1456 = vmatpush1.msra.mxu0 0.0
  %1457 = vmatprep.subr.mxu0 0.0
  %1458 = vmatpush1.msra.mxu0 0.0
  %1459 = vmatprep.subr.mxu0 0.0
  %1460 = vmatpush1.msra.mxu0 0.0
  %1461 = vmatprep.subr.mxu0 0.0
  %1462 = vmatpush1.msra.mxu0 0.0
  %1463 = vmatprep.subr.mxu0 0.0
  %1464 = vmatpush1.msra.mxu0 0.0
  %1465 = vmatprep.subr.mxu0 0.0
  %1466 = vmatpush1.msra.mxu0 0.0
  %1467 = vmatprep.subr.mxu0 0.0
  %1468 = vmatpush1.msra.mxu0 0.0
  %1469 = vmatprep.subr.mxu0 0.0
  %1470 = vmatpush1.msra.mxu0 0.0
  %1471 = vmatprep.subr.mxu0 0.0
  %1472 = vmatpush1.msra.mxu0 0.0
  %1473 = vmatprep.subr.mxu0 0.0
  %1474 = vmatpush1.msra.mxu0 0.0
  %1475 = vmatprep.subr.mxu0 0.0
  %1476 = vmatpush1.msra.mxu0 0.0
  %1477 = vmatprep.subr.mxu0 0.0
  %1478 = vmatpush1.msra.mxu0 0.0
  %1479 = vmatprep.subr.mxu0 0.0
  %1480 = vmatpush1.msra.mxu0 0.0
  %1481 = vmatprep.subr.mxu0 0.0
  %1482 = vmatpush1.msra.mxu0 0.0
  %1483 = vmatprep.subr.mxu0 0.0
  %1484 = vmatpush1.msra.mxu0 0.0
  %1485 = vmatprep.subr.mxu0 0.0
  %1486 = vmatpush1.msra.mxu0 0.0
  %1487 = vmatprep.subr.mxu0 0.0
  %1488 = vmatpush1.msra.mxu0 0.0
  %1489 = vmatprep.subr.mxu0 0.0
  %1490 = vmatpush1.msra.mxu0 0.0
  %1491 = vmatprep.mubr.f32.mxu0 0.0
  %1492 = vmatmul.mubr.f32.gmra.mrb[0].mxu0 %v1422
  %v1493 = vpop.f32.mrb[0].mxu0
  %v1494 = vadd.f32 %v1420, %v1493
  %v1495 = vpop.f32.mrb[0].mxu0
  %1496 = vmatprep.mubr.f32.mxu0 0.0
  %1497 = vmatmul.mubr.f32.gmra.mrb[0].mxu0 %v1425
  %v1498 = vpop.f32.mrb[0].mxu0
  %v1499 = vadd.f32 %v1420, %v1498
  %v1500 = vpop.f32.mrb[0].mxu0
  %1501 = vdwg.mxu0
  %v1502 = vmax.f32 %v1494, 0.0
  %v1503 = vmax.f32 %v1499, 0.0
  %v1504 = vld [vmem:[%s6] sm:$0xff]
  %v1505 = vld [vmem:[%s6 + $0x8] sm:$0xff]
  %v1506 = vld [vmem:[%s6 + $0x10] sm:$0xff]
  %v1507 = vld [vmem:[%s6 + $0x18] sm:$0xff]
  %v1508 = vld [vmem:[%s6 + $0x20] sm:$0xff]
  %v1509 = vld [vmem:[%s6 + $0x28] sm:$0xff]
  %v1510 = vld [vmem:[%s6 + $0x30] sm:$0xff]
  %v1511 = vld [vmem:[%s6 + $0x38] sm:$0xff]
  %v1512 = vld [vmem:[%s6 + $0x40] sm:$0xff]
  %v1513 = vld [vmem:[%s6 + $0x48] sm:$0xff]
  %v1514 = vld [vmem:[%s6 + $0x50] sm:$0xff]
  %v1515 = vld [vmem:[%s6 + $0x58] sm:$0xff]
  %v1516 = vld [vmem:[%s6 + $0x60] sm:$0xff]
  %v1517 = vld [vmem:[%s6 + $0x68] sm:$0xff]
  %v1518 = vld [vmem:[%s6 + $0x70] sm:$0xff]
  %v1519 = vld [vmem:[%s6 + $0x78] sm:$0xff]
  %v1520 = vld [vmem:[%s10 + $0x4] sm:$0x1]
  %v1521 = vlaneseq
  %v1522 = vshrl.u32 %v1521, 7
  %v1523 = vsub.s32 0, %v1522
  %v1524 = vrot.slane %v1520, %v1523
  %1525 = vmatprep.subr.mxu0 0.0
  %1526 = vmatpush1.msra.mxu0 %v1504
  %1527 = vmatprep.subr.mxu0 0.0
  %1528 = vmatpush1.msra.mxu0 %v1505
  %1529 = vmatprep.subr.mxu0 0.0
  %1530 = vmatpush1.msra.mxu0 %v1506
  %1531 = vmatprep.subr.mxu0 0.0
  %1532 = vmatpush1.msra.mxu0 %v1507
  %1533 = vmatprep.subr.mxu0 0.0
  %1534 = vmatpush1.msra.mxu0 %v1508
  %1535 = vmatprep.subr.mxu0 0.0
  %1536 = vmatpush1.msra.mxu0 %v1509
  %1537 = vmatprep.subr.mxu0 0.0
  %1538 = vmatpush1.msra.mxu0 %v1510
  %1539 = vmatprep.subr.mxu0 0.0
  %1540 = vmatpush1.msra.mxu0 %v1511
  %1541 = vmatprep.subr.mxu0 0.0
  %1542 = vmatpush1.msra.mxu0 %v1512
  %1543 = vmatprep.subr.mxu0 0.0
  %1544 = vmatpush1.msra.mxu0 %v1513
  %1545 = vmatprep.subr.mxu0 0.0
  %1546 = vmatpush1.msra.mxu0 %v1514
  %1547 = vmatprep.subr.mxu0 0.0
  %1548 = vmatpush1.msra.mxu0 %v1515
  %1549 = vmatprep.subr.mxu0 0.0
  %1550 = vmatpush1.msra.mxu0 %v1516
  %1551 = vmatprep.subr.mxu0 0.0
  %1552 = vmatpush1.msra.mxu0 %v1517
  %1553 = vmatprep.subr.mxu0 0.0
  %1554 = vmatpush1.msra.mxu0 %v1518
  %1555 = vmatprep.subr.mxu0 0.0
  %1556 = vmatpush1.msra.mxu0 %v1519
  %1557 = vmatprep.subr.mxu0 0.0
  %1558 = vmatpush1.msra.mxu0 0.0
  %1559 = vmatprep.subr.mxu0 0.0
  %1560 = vmatpush1.msra.mxu0 0.0
  %1561 = vmatprep.subr.mxu0 0.0
  %1562 = vmatpush1.msra.mxu0 0.0
  %1563 = vmatprep.subr.mxu0 0.0
  %1564 = vmatpush1.msra.mxu0 0.0
  %1565 = vmatprep.subr.mxu0 0.0
  %1566 = vmatpush1.msra.mxu0 0.0
  %1567 = vmatprep.subr.mxu0 0.0
  %1568 = vmatpush1.msra.mxu0 0.0
  %1569 = vmatprep.subr.mxu0 0.0
  %1570 = vmatpush1.msra.mxu0 0.0
  %1571 = vmatprep.subr.mxu0 0.0
  %1572 = vmatpush1.msra.mxu0 0.0
  %1573 = vmatprep.subr.mxu0 0.0
  %1574 = vmatpush1.msra.mxu0 0.0
  %1575 = vmatprep.subr.mxu0 0.0
  %1576 = vmatpush1.msra.mxu0 0.0
  %1577 = vmatprep.subr.mxu0 0.0
  %1578 = vmatpush1.msra.mxu0 0.0
  %1579 = vmatprep.subr.mxu0 0.0
  %1580 = vmatpush1.msra.mxu0 0.0
  %1581 = vmatprep.subr.mxu0 0.0
  %1582 = vmatpush1.msra.mxu0 0.0
  %1583 = vmatprep.subr.mxu0 0.0
  %1584 = vmatpush1.msra.mxu0 0.0
  %1585 = vmatprep.subr.mxu0 0.0
  %1586 = vmatpush1.msra.mxu0 0.0
  %1587 = vmatprep.subr.mxu0 0.0
  %1588 = vmatpush1.msra.mxu0 0.0
  %1589 = vmatprep.mubr.f32.mxu0 0.0
  %1590 = vmatmul.mubr.f32.gmra.mrb[0].mxu0 %v1502
  %v1591 = vpop.f32.mrb[0].mxu0
  %v1592 = vadd.f32 %v1524, %v1591
  %v1593 = vpop.f32.mrb[0].mxu0
  %1594 = vmatprep.mubr.f32.mxu0 0.0
  %1595 = vmatmul.mubr.f32.gmra.mrb[0].mxu0 %v1503
  %v1596 = vpop.f32.mrb[0].mxu0
  %v1597 = vadd.f32 %v1524, %v1596
  %v1598 = vpop.f32.mrb[0].mxu0
  %1599 = vdwg.mxu0
  %v1600 = vadd.f32 %v1410, %v1592
  %v1601 = vadd.f32 %v1411, %v1597
  %v1602 = vld [vmem:[%s10 + $0x5] sm:$0x1]
  %v1603 = vld [vmem:[%s10 + $0x6] sm:$0x1]
  %v1604 = vsel %vm515, %v1600, 0.0
  %1605 = vadd.xlane.f32.xlu0 %v1604
  %v1606 = vpop.xlane.xlu0 %1605
  %v1607 = vsel %vm515, %v1601, 0.0
  %1608 = vadd.xlane.f32.xlu0 %v1607
  %v1609 = vpop.xlane.xlu0 %1608
  %v1610 = vmul.f32 %v1606, %v1335
  %v1611 = vmul.f32 %v1609, %v1335
  %v1612 = vsub.f32 %v1600, %v1610
  %v1613 = vsub.f32 %v1601, %v1611
  %v1614 = vmul.f32 %v1612, %v1612
  %v1615 = vmul.f32 %v1613, %v1613
  %v1616 = vsel %vm515, %v1614, 0.0
  %1617 = vadd.xlane.f32.xlu0 %v1616
  %v1618 = vpop.xlane.xlu0 %1617
  %v1619 = vsel %vm515, %v1615, 0.0
  %1620 = vadd.xlane.f32.xlu0 %v1619
  %v1621 = vpop.xlane.xlu0 %1620
  %v1622 = vmul.f32 %v1618, %v1335
  %v1623 = vmul.f32 %v1621, %v1335
  %v1624 = vadd.f32 %v1622, 1e-05
  %v1625 = vadd.f32 %v1623, 1e-05
  %v1626 = vrsqrt.pop %v1624
  %v1627 = vrsqrt.pop %v1625
  %v1628 = vmul.f32 %v1612, %v1626
  %v1629 = vmul.f32 %v1613, %v1627
  %1632 = vrot.lane.b32.xlu0 %v1600, 112
  %v1633 = vpop.permute.xlu0 %1632
  %1634 = vrot.lane.b32.xlu0 %v1601, 112
  %v1635 = vpop.permute.xlu0 %1634
  %v1638 = vsel %vm515, %v1633, 0.0
  %1639 = vadd.xlane.f32.xlu0 %v1638
  %v1640 = vpop.xlane.xlu0 %1639
  %v1641 = vsel %vm515, %v1635, 0.0
  %1642 = vadd.xlane.f32.xlu0 %v1641
  %v1643 = vpop.xlane.xlu0 %1642
  %v1644 = vmul.f32 %v1640, %v1335
  %v1645 = vmul.f32 %v1643, %v1335
  %v1646 = vsub.f32 %v1600, %v1644
  %v1647 = vsub.f32 %v1601, %v1645
  %v1648 = vmul.f32 %v1646, %v1646
  %v1649 = vmul.f32 %v1647, %v1647
  %1652 = vrot.lane.b32.xlu0 %v1648, 112
  %v1653 = vpop.permute.xlu0 %1652
  %1654 = vrot.lane.b32.xlu0 %v1649, 112
  %v1655 = vpop.permute.xlu0 %1654
  %v1658 = vsel %vm515, %v1653, 0.0
  %1659 = vadd.xlane.f32.xlu0 %v1658
  %v1660 = vpop.xlane.xlu0 %1659
  %v1661 = vsel %vm515, %v1655, 0.0
  %1662 = vadd.xlane.f32.xlu0 %v1661
  %v1663 = vpop.xlane.xlu0 %1662
  %v1664 = vmul.f32 %v1660, %v1335
  %v1665 = vmul.f32 %v1663, %v1335
  %v1666 = vadd.f32 %v1664, 1e-05
  %v1667 = vadd.f32 %v1665, 1e-05
  %v1668 = vrsqrt.pop %v1666
  %v1669 = vrsqrt.pop %v1667
  %v1670 = vmul.f32 %v1646, %v1668
  %v1671 = vmul.f32 %v1647, %v1669
  %v1672 = vsel %vm515, %v1628, %v1670
  %v1673 = vsel %vm515, %v1629, %v1671
  %v1674 = vlaneseq
  %v1675 = vshrl.u32 %v1674, 7
  %v1676 = vsub.s32 0, %v1675
  %v1677 = vrot.slane %v1602, %v1676
  %v1678 = vmul.f32 %v1672, %v1677
  %v1679 = vmul.f32 %v1673, %v1677
  %v1680 = vlaneseq
  %v1681 = vshrl.u32 %v1680, 7
  %v1682 = vsub.s32 0, %v1681
  %v1683 = vrot.slane %v1603, %v1682
  %v1684 = vadd.f32 %v1678, %v1683
  %v1685 = vadd.f32 %v1679, %v1683
  %s1686 = scalar_lea.vmem %s3, 32
  %v1687 = vld [vmem:[%s1686] sm:$0xff]
  %v1688 = vld [vmem:[%s1686 + $0x8] sm:$0xff]
  %v1689 = vld [vmem:[%s1686 + $0x10] sm:$0xff]
  %v1690 = vld [vmem:[%s1686 + $0x18] sm:$0xff]
  %v1691 = vld [vmem:[%s11 + $0x1] sm:$0x1]
  %v1692 = vlaneseq
  %v1693 = vshrl.u32 %v1692, 7
  %v1694 = vsub.s32 0, %v1693
  %v1695 = vrot.slane %v1691, %v1694
  %v1697 = vsel %vm58, %v1684, 0
  %v1700 = vsel %vm58, %v1685, 0
  %1702 = vmatprep.subr.mxu0 0.0
  %1703 = vmatpush1.msra.mxu0 %v1687
  %1704 = vmatprep.subr.mxu0 0.0
  %1705 = vmatpush1.msra.mxu0 %v1688
  %1706 = vmatprep.subr.mxu0 0.0
  %1707 = vmatpush1.msra.mxu0 %v1689
  %1708 = vmatprep.subr.mxu0 0.0
  %1709 = vmatpush1.msra.mxu0 %v1690
  %1710 = vmatprep.subr.mxu0 0.0
  %1711 = vmatpush1.msra.mxu0 0.0
  %1712 = vmatprep.subr.mxu0 0.0
  %1713 = vmatpush1.msra.mxu0 0.0
  %1714 = vmatprep.subr.mxu0 0.0
  %1715 = vmatpush1.msra.mxu0 0.0
  %1716 = vmatprep.subr.mxu0 0.0
  %1717 = vmatpush1.msra.mxu0 0.0
  %1718 = vmatprep.subr.mxu0 0.0
  %1719 = vmatpush1.msra.mxu0 0.0
  %1720 = vmatprep.subr.mxu0 0.0
  %1721 = vmatpush1.msra.mxu0 0.0
  %1722 = vmatprep.subr.mxu0 0.0
  %1723 = vmatpush1.msra.mxu0 0.0
  %1724 = vmatprep.subr.mxu0 0.0
  %1725 = vmatpush1.msra.mxu0 0.0
  %1726 = vmatprep.subr.mxu0 0.0
  %1727 = vmatpush1.msra.mxu0 0.0
  %1728 = vmatprep.subr.mxu0 0.0
  %1729 = vmatpush1.msra.mxu0 0.0
  %1730 = vmatprep.subr.mxu0 0.0
  %1731 = vmatpush1.msra.mxu0 0.0
  %1732 = vmatprep.subr.mxu0 0.0
  %1733 = vmatpush1.msra.mxu0 0.0
  %1734 = vmatprep.subr.mxu0 0.0
  %1735 = vmatpush1.msra.mxu0 0.0
  %1736 = vmatprep.subr.mxu0 0.0
  %1737 = vmatpush1.msra.mxu0 0.0
  %1738 = vmatprep.subr.mxu0 0.0
  %1739 = vmatpush1.msra.mxu0 0.0
  %1740 = vmatprep.subr.mxu0 0.0
  %1741 = vmatpush1.msra.mxu0 0.0
  %1742 = vmatprep.subr.mxu0 0.0
  %1743 = vmatpush1.msra.mxu0 0.0
  %1744 = vmatprep.subr.mxu0 0.0
  %1745 = vmatpush1.msra.mxu0 0.0
  %1746 = vmatprep.subr.mxu0 0.0
  %1747 = vmatpush1.msra.mxu0 0.0
  %1748 = vmatprep.subr.mxu0 0.0
  %1749 = vmatpush1.msra.mxu0 0.0
  %1750 = vmatprep.subr.mxu0 0.0
  %1751 = vmatpush1.msra.mxu0 0.0
  %1752 = vmatprep.subr.mxu0 0.0
  %1753 = vmatpush1.msra.mxu0 0.0
  %1754 = vmatprep.subr.mxu0 0.0
  %1755 = vmatpush1.msra.mxu0 0.0
  %1756 = vmatprep.subr.mxu0 0.0
  %1757 = vmatpush1.msra.mxu0 0.0
  %1758 = vmatprep.subr.mxu0 0.0
  %1759 = vmatpush1.msra.mxu0 0.0
  %1760 = vmatprep.subr.mxu0 0.0
  %1761 = vmatpush1.msra.mxu0 0.0
  %1762 = vmatprep.subr.mxu0 0.0
  %1763 = vmatpush1.msra.mxu0 0.0
  %1764 = vmatprep.subr.mxu0 0.0
  %1765 = vmatpush1.msra.mxu0 0.0
  %1766 = vmatprep.mubr.f32.mxu0 0.0
  %1767 = vmatmul.mubr.f32.gmra.mrb[0].mxu0 %v1697
  %v1768 = vpop.f32.mrb[0].mxu0
  %v1769 = vadd.f32 %v1695, %v1768
  %v1770 = vpop.f32.mrb[0].mxu0
  %1771 = vmatprep.mubr.f32.mxu0 0.0
  %1772 = vmatmul.mubr.f32.gmra.mrb[0].mxu0 %v1700
  %v1773 = vpop.f32.mrb[0].mxu0
  %v1774 = vadd.f32 %v1695, %v1773
  %v1775 = vpop.f32.mrb[0].mxu0
  %1776 = vdwg.mxu0
  %v1779 = vcombine.high %v1769, %v1769
  %v1781 = vunpack.c.l.s4 1966171168
  %v1782 = vunpack.c.0.s8 %v1781
  %v1783 = vlaneseq
  %v1784 = vshrl.u32 %v1783, 7
  %v1785 = vsub.s32 %v1782, %v1784
  %v1786 = vrot.slane %v1769, %v1785
  %v1788 = vunpack.c.l.s4 1966171168
  %v1789 = vunpack.c.0.s8 %v1788
  %v1790 = vlaneseq
  %v1791 = vshrl.u32 %v1790, 7
  %v1792 = vsub.s32 %v1789, %v1791
  %v1793 = vrot.slane %v1779, %v1792
  %v1794 = vcombine.high %v1786, %v1786
  %v1795 = vcombine.high %v1793, %v1793
  %v1797 = vunpack.c.l.s4 1966171168
  %v1798 = vunpack.c.0.s8 %v1797
  %v1799 = vlaneseq
  %v1800 = vshrl.u32 %v1799, 7
  %v1801 = vsub.s32 %v1798, %v1800
  %v1802 = vrot.slane %v1786, %v1801
  %v1804 = vunpack.c.l.s4 1966171168
  %v1805 = vunpack.c.0.s8 %v1804
  %v1806 = vlaneseq
  %v1807 = vshrl.u32 %v1806, 7
  %v1808 = vsub.s32 %v1805, %v1807
  %v1809 = vrot.slane %v1793, %v1808
  %v1811 = vunpack.c.l.s4 1966171168
  %v1812 = vunpack.c.0.s8 %v1811
  %v1813 = vlaneseq
  %v1814 = vshrl.u32 %v1813, 7
  %v1815 = vsub.s32 %v1812, %v1814
  %v1816 = vrot.slane %v1794, %v1815
  %v1818 = vunpack.c.l.s4 1966171168
  %v1819 = vunpack.c.0.s8 %v1818
  %v1820 = vlaneseq
  %v1821 = vshrl.u32 %v1820, 7
  %v1822 = vsub.s32 %v1819, %v1821
  %v1823 = vrot.slane %v1795, %v1822
  %v1824 = vcombine.high %v1802, %v1802
  %v1825 = vcombine.high %v1809, %v1809
  %v1826 = vcombine.high %v1816, %v1816
  %v1827 = vcombine.high %v1823, %v1823
  %v1828 = vcombine.high %v1774, %v1774
  %v1830 = vunpack.c.l.s4 1966171168
  %v1831 = vunpack.c.0.s8 %v1830
  %v1832 = vlaneseq
  %v1833 = vshrl.u32 %v1832, 7
  %v1834 = vsub.s32 %v1831, %v1833
  %v1835 = vrot.slane %v1774, %v1834
  %v1837 = vunpack.c.l.s4 1966171168
  %v1838 = vunpack.c.0.s8 %v1837
  %v1839 = vlaneseq
  %v1840 = vshrl.u32 %v1839, 7
  %v1841 = vsub.s32 %v1838, %v1840
  %v1842 = vrot.slane %v1828, %v1841
  %v1843 = vcombine.high %v1835, %v1835
  %v1844 = vcombine.high %v1842, %v1842
  %v1846 = vunpack.c.l.s4 1966171168
  %v1847 = vunpack.c.0.s8 %v1846
  %v1848 = vlaneseq
  %v1849 = vshrl.u32 %v1848, 7
  %v1850 = vsub.s32 %v1847, %v1849
  %v1851 = vrot.slane %v1835, %v1850
  %v1853 = vunpack.c.l.s4 1966171168
  %v1854 = vunpack.c.0.s8 %v1853
  %v1855 = vlaneseq
  %v1856 = vshrl.u32 %v1855, 7
  %v1857 = vsub.s32 %v1854, %v1856
  %v1858 = vrot.slane %v1842, %v1857
  %v1860 = vunpack.c.l.s4 1966171168
  %v1861 = vunpack.c.0.s8 %v1860
  %v1862 = vlaneseq
  %v1863 = vshrl.u32 %v1862, 7
  %v1864 = vsub.s32 %v1861, %v1863
  %v1865 = vrot.slane %v1843, %v1864
  %v1867 = vunpack.c.l.s4 1966171168
  %v1868 = vunpack.c.0.s8 %v1867
  %v1869 = vlaneseq
  %v1870 = vshrl.u32 %v1869, 7
  %v1871 = vsub.s32 %v1868, %v1870
  %v1872 = vrot.slane %v1844, %v1871
  %v1873 = vcombine.high %v1851, %v1851
  %v1874 = vcombine.high %v1858, %v1858
  %v1875 = vcombine.high %v1865, %v1865
  %v1876 = vcombine.high %v1872, %v1872
  %v1877 = vlaneseq
  %v1878 = vshrl.u32 %v1877, 7
  %v1879 = vsub.s32 0, %v1878
  %v1880 = vrot.slane %v1802, %v1879
  %v1881 = vlaneseq
  %v1882 = vshrl.u32 %v1881, 7
  %v1883 = vsub.s32 0, %v1882
  %v1884 = vrot.slane %v1816, %v1883
  %v1885 = vlaneseq
  %v1886 = vshrl.u32 %v1885, 7
  %v1887 = vsub.s32 0, %v1886
  %v1888 = vrot.slane %v1824, %v1887
  %v1889 = vlaneseq
  %v1890 = vshrl.u32 %v1889, 7
  %v1891 = vsub.s32 0, %v1890
  %v1892 = vrot.slane %v1826, %v1891
  %v1893 = vlaneseq
  %v1894 = vshrl.u32 %v1893, 7
  %v1895 = vsub.s32 0, %v1894
  %v1896 = vrot.slane %v1809, %v1895
  %v1897 = vlaneseq
  %v1898 = vshrl.u32 %v1897, 7
  %v1899 = vsub.s32 0, %v1898
  %v1900 = vrot.slane %v1823, %v1899
  %v1901 = vlaneseq
  %v1902 = vshrl.u32 %v1901, 7
  %v1903 = vsub.s32 0, %v1902
  %v1904 = vrot.slane %v1825, %v1903
  %v1905 = vlaneseq
  %v1906 = vshrl.u32 %v1905, 7
  %v1907 = vsub.s32 0, %v1906
  %v1908 = vrot.slane %v1827, %v1907
  %v1909 = vlaneseq
  %v1910 = vshrl.u32 %v1909, 7
  %v1911 = vsub.s32 0, %v1910
  %v1912 = vrot.slane %v1851, %v1911
  %v1913 = vlaneseq
  %v1914 = vshrl.u32 %v1913, 7
  %v1915 = vsub.s32 0, %v1914
  %v1916 = vrot.slane %v1865, %v1915
  %v1917 = vlaneseq
  %v1918 = vshrl.u32 %v1917, 7
  %v1919 = vsub.s32 0, %v1918
  %v1920 = vrot.slane %v1873, %v1919
  %v1921 = vlaneseq
  %v1922 = vshrl.u32 %v1921, 7
  %v1923 = vsub.s32 0, %v1922
  %v1924 = vrot.slane %v1875, %v1923
  %v1925 = vlaneseq
  %v1926 = vshrl.u32 %v1925, 7
  %v1927 = vsub.s32 0, %v1926
  %v1928 = vrot.slane %v1858, %v1927
  %v1929 = vlaneseq
  %v1930 = vshrl.u32 %v1929, 7
  %v1931 = vsub.s32 0, %v1930
  %v1932 = vrot.slane %v1872, %v1931
  %v1933 = vlaneseq
  %v1934 = vshrl.u32 %v1933, 7
  %v1935 = vsub.s32 0, %v1934
  %v1936 = vrot.slane %v1874, %v1935
  %v1937 = vlaneseq
  %v1938 = vshrl.u32 %v1937, 7
  %v1939 = vsub.s32 0, %v1938
  %v1940 = vrot.slane %v1876, %v1939
  %1957 = vrot.lane.b32.xlu0 %v1769, 96
  %v1958 = vpop.permute.xlu0 %1957
  %1959 = vrot.lane.b32.xlu0 %v1774, 96
  %v1960 = vpop.permute.xlu0 %1959
  %v1963 = vmul.f32 %v1880, %v1958
  %v1964 = vmul.f32 %v1884, %v1958
  %v1965 = vmul.f32 %v1888, %v1958
  %v1966 = vmul.f32 %v1892, %v1958
  %v1967 = vmul.f32 %v1896, %v1958
  %v1968 = vmul.f32 %v1900, %v1958
  %v1969 = vmul.f32 %v1904, %v1958
  %v1970 = vmul.f32 %v1908, %v1958
  %v1971 = vmul.f32 %v1912, %v1960
  %v1972 = vmul.f32 %v1916, %v1960
  %v1973 = vmul.f32 %v1920, %v1960
  %v1974 = vmul.f32 %v1924, %v1960
  %v1975 = vmul.f32 %v1928, %v1960
  %v1976 = vmul.f32 %v1932, %v1960
  %v1977 = vmul.f32 %v1936, %v1960
  %v1978 = vmul.f32 %v1940, %v1960
  %1995 = vrot.lane.b32.xlu0 %v1963, 112
  %v1996 = vpop.permute.xlu0 %1995
  %1997 = vrot.lane.b32.xlu0 %v1964, 112
  %v1998 = vpop.permute.xlu0 %1997
  %1999 = vrot.lane.b32.xlu0 %v1965, 112
  %v2000 = vpop.permute.xlu0 %1999
  %2001 = vrot.lane.b32.xlu0 %v1966, 112
  %v2002 = vpop.permute.xlu0 %2001
  %2003 = vrot.lane.b32.xlu0 %v1967, 112
  %v2004 = vpop.permute.xlu0 %2003
  %2005 = vrot.lane.b32.xlu0 %v1968, 112
  %v2006 = vpop.permute.xlu0 %2005
  %2007 = vrot.lane.b32.xlu0 %v1969, 112
  %v2008 = vpop.permute.xlu0 %2007
  %2009 = vrot.lane.b32.xlu0 %v1970, 112
  %v2010 = vpop.permute.xlu0 %2009
  %2011 = vrot.lane.b32.xlu0 %v1971, 112
  %v2012 = vpop.permute.xlu0 %2011
  %2013 = vrot.lane.b32.xlu0 %v1972, 112
  %v2014 = vpop.permute.xlu0 %2013
  %2015 = vrot.lane.b32.xlu0 %v1973, 112
  %v2016 = vpop.permute.xlu0 %2015
  %2017 = vrot.lane.b32.xlu0 %v1974, 112
  %v2018 = vpop.permute.xlu0 %2017
  %2019 = vrot.lane.b32.xlu0 %v1975, 112
  %v2020 = vpop.permute.xlu0 %2019
  %2021 = vrot.lane.b32.xlu0 %v1976, 112
  %v2022 = vpop.permute.xlu0 %2021
  %2023 = vrot.lane.b32.xlu0 %v1977, 112
  %v2024 = vpop.permute.xlu0 %2023
  %2025 = vrot.lane.b32.xlu0 %v1978, 112
  %v2026 = vpop.permute.xlu0 %2025
  %v2043 = vadd.f32 %v1963, %v1996
  %v2044 = vadd.f32 %v1964, %v1998
  %v2045 = vadd.f32 %v1965, %v2000
  %v2046 = vadd.f32 %v1966, %v2002
  %v2047 = vadd.f32 %v1967, %v2004
  %v2048 = vadd.f32 %v1968, %v2006
  %v2049 = vadd.f32 %v1969, %v2008
  %v2050 = vadd.f32 %v1970, %v2010
  %v2051 = vadd.f32 %v1971, %v2012
  %v2052 = vadd.f32 %v1972, %v2014
  %v2053 = vadd.f32 %v1973, %v2016
  %v2054 = vadd.f32 %v1974, %v2018
  %v2055 = vadd.f32 %v1975, %v2020
  %v2056 = vadd.f32 %v1976, %v2022
  %v2057 = vadd.f32 %v1977, %v2024
  %v2058 = vadd.f32 %v1978, %v2026
  %v2059 = vsel %vm515, %v2043, -inf
  %v2060 = vrot.slane %v2059, 4
  %v2061 = vmax.f32 %v2059, %v2060
  %v2062 = vrot.slane %v2061, 2
  %v2063 = vmax.f32 %v2061, %v2062
  %v2064 = vrot.slane %v2063, 1
  %v2065 = vmax.f32 %v2063, %v2064
  %v2066 = vsel %vm515, %v2044, -inf
  %v2067 = vrot.slane %v2066, 4
  %v2068 = vmax.f32 %v2066, %v2067
  %v2069 = vrot.slane %v2068, 2
  %v2070 = vmax.f32 %v2068, %v2069
  %v2071 = vrot.slane %v2070, 1
  %v2072 = vmax.f32 %v2070, %v2071
  %v2073 = vsel %vm515, %v2045, -inf
  %v2074 = vrot.slane %v2073, 4
  %v2075 = vmax.f32 %v2073, %v2074
  %v2076 = vrot.slane %v2075, 2
  %v2077 = vmax.f32 %v2075, %v2076
  %v2078 = vrot.slane %v2077, 1
  %v2079 = vmax.f32 %v2077, %v2078
  %v2080 = vsel %vm515, %v2046, -inf
  %v2081 = vrot.slane %v2080, 4
  %v2082 = vmax.f32 %v2080, %v2081
  %v2083 = vrot.slane %v2082, 2
  %v2084 = vmax.f32 %v2082, %v2083
  %v2085 = vrot.slane %v2084, 1
  %v2086 = vmax.f32 %v2084, %v2085
  %v2087 = vsel %vm515, %v2047, -inf
  %v2088 = vrot.slane %v2087, 4
  %v2089 = vmax.f32 %v2087, %v2088
  %v2090 = vrot.slane %v2089, 2
  %v2091 = vmax.f32 %v2089, %v2090
  %v2092 = vrot.slane %v2091, 1
  %v2093 = vmax.f32 %v2091, %v2092
  %v2094 = vsel %vm515, %v2048, -inf
  %v2095 = vrot.slane %v2094, 4
  %v2096 = vmax.f32 %v2094, %v2095
  %v2097 = vrot.slane %v2096, 2
  %v2098 = vmax.f32 %v2096, %v2097
  %v2099 = vrot.slane %v2098, 1
  %v2100 = vmax.f32 %v2098, %v2099
  %v2101 = vsel %vm515, %v2049, -inf
  %v2102 = vrot.slane %v2101, 4
  %v2103 = vmax.f32 %v2101, %v2102
  %v2104 = vrot.slane %v2103, 2
  %v2105 = vmax.f32 %v2103, %v2104
  %v2106 = vrot.slane %v2105, 1
  %v2107 = vmax.f32 %v2105, %v2106
  %v2108 = vsel %vm515, %v2050, -inf
  %v2109 = vrot.slane %v2108, 4
  %v2110 = vmax.f32 %v2108, %v2109
  %v2111 = vrot.slane %v2110, 2
  %v2112 = vmax.f32 %v2110, %v2111
  %v2113 = vrot.slane %v2112, 1
  %v2114 = vmax.f32 %v2112, %v2113
  %v2115 = vsel %vm515, %v2051, -inf
  %v2116 = vrot.slane %v2115, 4
  %v2117 = vmax.f32 %v2115, %v2116
  %v2118 = vrot.slane %v2117, 2
  %v2119 = vmax.f32 %v2117, %v2118
  %v2120 = vrot.slane %v2119, 1
  %v2121 = vmax.f32 %v2119, %v2120
  %v2122 = vsel %vm515, %v2052, -inf
  %v2123 = vrot.slane %v2122, 4
  %v2124 = vmax.f32 %v2122, %v2123
  %v2125 = vrot.slane %v2124, 2
  %v2126 = vmax.f32 %v2124, %v2125
  %v2127 = vrot.slane %v2126, 1
  %v2128 = vmax.f32 %v2126, %v2127
  %v2129 = vsel %vm515, %v2053, -inf
  %v2130 = vrot.slane %v2129, 4
  %v2131 = vmax.f32 %v2129, %v2130
  %v2132 = vrot.slane %v2131, 2
  %v2133 = vmax.f32 %v2131, %v2132
  %v2134 = vrot.slane %v2133, 1
  %v2135 = vmax.f32 %v2133, %v2134
  %v2136 = vsel %vm515, %v2054, -inf
  %v2137 = vrot.slane %v2136, 4
  %v2138 = vmax.f32 %v2136, %v2137
  %v2139 = vrot.slane %v2138, 2
  %v2140 = vmax.f32 %v2138, %v2139
  %v2141 = vrot.slane %v2140, 1
  %v2142 = vmax.f32 %v2140, %v2141
  %v2143 = vsel %vm515, %v2055, -inf
  %v2144 = vrot.slane %v2143, 4
  %v2145 = vmax.f32 %v2143, %v2144
  %v2146 = vrot.slane %v2145, 2
  %v2147 = vmax.f32 %v2145, %v2146
  %v2148 = vrot.slane %v2147, 1
  %v2149 = vmax.f32 %v2147, %v2148
  %v2150 = vsel %vm515, %v2056, -inf
  %v2151 = vrot.slane %v2150, 4
  %v2152 = vmax.f32 %v2150, %v2151
  %v2153 = vrot.slane %v2152, 2
  %v2154 = vmax.f32 %v2152, %v2153
  %v2155 = vrot.slane %v2154, 1
  %v2156 = vmax.f32 %v2154, %v2155
  %v2157 = vsel %vm515, %v2057, -inf
  %v2158 = vrot.slane %v2157, 4
  %v2159 = vmax.f32 %v2157, %v2158
  %v2160 = vrot.slane %v2159, 2
  %v2161 = vmax.f32 %v2159, %v2160
  %v2162 = vrot.slane %v2161, 1
  %v2163 = vmax.f32 %v2161, %v2162
  %v2164 = vsel %vm515, %v2058, -inf
  %v2165 = vrot.slane %v2164, 4
  %v2166 = vmax.f32 %v2164, %v2165
  %v2167 = vrot.slane %v2166, 2
  %v2168 = vmax.f32 %v2166, %v2167
  %v2169 = vrot.slane %v2168, 1
  %v2170 = vmax.f32 %v2168, %v2169
  %v2171 = vsub.f32 %v2043, %v2065
  %v2172 = vsub.f32 %v2044, %v2072
  %v2173 = vsub.f32 %v2045, %v2079
  %v2174 = vsub.f32 %v2046, %v2086
  %v2175 = vsub.f32 %v2047, %v2093
  %v2176 = vsub.f32 %v2048, %v2100
  %v2177 = vsub.f32 %v2049, %v2107
  %v2178 = vsub.f32 %v2050, %v2114
  %v2179 = vsub.f32 %v2051, %v2121
  %v2180 = vsub.f32 %v2052, %v2128
  %v2181 = vsub.f32 %v2053, %v2135
  %v2182 = vsub.f32 %v2054, %v2142
  %v2183 = vsub.f32 %v2055, %v2149
  %v2184 = vsub.f32 %v2056, %v2156
  %v2185 = vsub.f32 %v2057, %v2163
  %v2186 = vsub.f32 %v2058, %v2170
  %v2187 = vmul.f32 %v2171, 1.442695
  %v2188 = vpow.pop %v2187
  %v2189 = vmul.f32 %v2172, 1.442695
  %v2190 = vpow.pop %v2189
  %v2191 = vmul.f32 %v2173, 1.442695
  %v2192 = vpow.pop %v2191
  %v2193 = vmul.f32 %v2174, 1.442695
  %v2194 = vpow.pop %v2193
  %v2195 = vmul.f32 %v2175, 1.442695
  %v2196 = vpow.pop %v2195
  %v2197 = vmul.f32 %v2176, 1.442695
  %v2198 = vpow.pop %v2197
  %v2199 = vmul.f32 %v2177, 1.442695
  %v2200 = vpow.pop %v2199
  %v2201 = vmul.f32 %v2178, 1.442695
  %v2202 = vpow.pop %v2201
  %v2203 = vmul.f32 %v2179, 1.442695
  %v2204 = vpow.pop %v2203
  %v2205 = vmul.f32 %v2180, 1.442695
  %v2206 = vpow.pop %v2205
  %v2207 = vmul.f32 %v2181, 1.442695
  %v2208 = vpow.pop %v2207
  %v2209 = vmul.f32 %v2182, 1.442695
  %v2210 = vpow.pop %v2209
  %v2211 = vmul.f32 %v2183, 1.442695
  %v2212 = vpow.pop %v2211
  %v2213 = vmul.f32 %v2184, 1.442695
  %v2214 = vpow.pop %v2213
  %v2215 = vmul.f32 %v2185, 1.442695
  %v2216 = vpow.pop %v2215
  %v2217 = vmul.f32 %v2186, 1.442695
  %v2218 = vpow.pop %v2217
  %v2219 = vsel %vm515, %v2188, 0.0
  %v2220 = vrot.slane %v2219, 4
  %v2221 = vadd.f32 %v2219, %v2220
  %v2222 = vrot.slane %v2221, 2
  %v2223 = vadd.f32 %v2221, %v2222
  %v2224 = vrot.slane %v2223, 1
  %v2225 = vadd.f32 %v2223, %v2224
  %v2226 = vsel %vm515, %v2190, 0.0
  %v2227 = vrot.slane %v2226, 4
  %v2228 = vadd.f32 %v2226, %v2227
  %v2229 = vrot.slane %v2228, 2
  %v2230 = vadd.f32 %v2228, %v2229
  %v2231 = vrot.slane %v2230, 1
  %v2232 = vadd.f32 %v2230, %v2231
  %v2233 = vsel %vm515, %v2192, 0.0
  %v2234 = vrot.slane %v2233, 4
  %v2235 = vadd.f32 %v2233, %v2234
  %v2236 = vrot.slane %v2235, 2
  %v2237 = vadd.f32 %v2235, %v2236
  %v2238 = vrot.slane %v2237, 1
  %v2239 = vadd.f32 %v2237, %v2238
  %v2240 = vsel %vm515, %v2194, 0.0
  %v2241 = vrot.slane %v2240, 4
  %v2242 = vadd.f32 %v2240, %v2241
  %v2243 = vrot.slane %v2242, 2
  %v2244 = vadd.f32 %v2242, %v2243
  %v2245 = vrot.slane %v2244, 1
  %v2246 = vadd.f32 %v2244, %v2245
  %v2247 = vsel %vm515, %v2196, 0.0
  %v2248 = vrot.slane %v2247, 4
  %v2249 = vadd.f32 %v2247, %v2248
  %v2250 = vrot.slane %v2249, 2
  %v2251 = vadd.f32 %v2249, %v2250
  %v2252 = vrot.slane %v2251, 1
  %v2253 = vadd.f32 %v2251, %v2252
  %v2254 = vsel %vm515, %v2198, 0.0
  %v2255 = vrot.slane %v2254, 4
  %v2256 = vadd.f32 %v2254, %v2255
  %v2257 = vrot.slane %v2256, 2
  %v2258 = vadd.f32 %v2256, %v2257
  %v2259 = vrot.slane %v2258, 1
  %v2260 = vadd.f32 %v2258, %v2259
  %v2261 = vsel %vm515, %v2200, 0.0
  %v2262 = vrot.slane %v2261, 4
  %v2263 = vadd.f32 %v2261, %v2262
  %v2264 = vrot.slane %v2263, 2
  %v2265 = vadd.f32 %v2263, %v2264
  %v2266 = vrot.slane %v2265, 1
  %v2267 = vadd.f32 %v2265, %v2266
  %v2268 = vsel %vm515, %v2202, 0.0
  %v2269 = vrot.slane %v2268, 4
  %v2270 = vadd.f32 %v2268, %v2269
  %v2271 = vrot.slane %v2270, 2
  %v2272 = vadd.f32 %v2270, %v2271
  %v2273 = vrot.slane %v2272, 1
  %v2274 = vadd.f32 %v2272, %v2273
  %v2275 = vsel %vm515, %v2204, 0.0
  %v2276 = vrot.slane %v2275, 4
  %v2277 = vadd.f32 %v2275, %v2276
  %v2278 = vrot.slane %v2277, 2
  %v2279 = vadd.f32 %v2277, %v2278
  %v2280 = vrot.slane %v2279, 1
  %v2281 = vadd.f32 %v2279, %v2280
  %v2282 = vsel %vm515, %v2206, 0.0
  %v2283 = vrot.slane %v2282, 4
  %v2284 = vadd.f32 %v2282, %v2283
  %v2285 = vrot.slane %v2284, 2
  %v2286 = vadd.f32 %v2284, %v2285
  %v2287 = vrot.slane %v2286, 1
  %v2288 = vadd.f32 %v2286, %v2287
  %v2289 = vsel %vm515, %v2208, 0.0
  %v2290 = vrot.slane %v2289, 4
  %v2291 = vadd.f32 %v2289, %v2290
  %v2292 = vrot.slane %v2291, 2
  %v2293 = vadd.f32 %v2291, %v2292
  %v2294 = vrot.slane %v2293, 1
  %v2295 = vadd.f32 %v2293, %v2294
  %v2296 = vsel %vm515, %v2210, 0.0
  %v2297 = vrot.slane %v2296, 4
  %v2298 = vadd.f32 %v2296, %v2297
  %v2299 = vrot.slane %v2298, 2
  %v2300 = vadd.f32 %v2298, %v2299
  %v2301 = vrot.slane %v2300, 1
  %v2302 = vadd.f32 %v2300, %v2301
  %v2303 = vsel %vm515, %v2212, 0.0
  %v2304 = vrot.slane %v2303, 4
  %v2305 = vadd.f32 %v2303, %v2304
  %v2306 = vrot.slane %v2305, 2
  %v2307 = vadd.f32 %v2305, %v2306
  %v2308 = vrot.slane %v2307, 1
  %v2309 = vadd.f32 %v2307, %v2308
  %v2310 = vsel %vm515, %v2214, 0.0
  %v2311 = vrot.slane %v2310, 4
  %v2312 = vadd.f32 %v2310, %v2311
  %v2313 = vrot.slane %v2312, 2
  %v2314 = vadd.f32 %v2312, %v2313
  %v2315 = vrot.slane %v2314, 1
  %v2316 = vadd.f32 %v2314, %v2315
  %v2317 = vsel %vm515, %v2216, 0.0
  %v2318 = vrot.slane %v2317, 4
  %v2319 = vadd.f32 %v2317, %v2318
  %v2320 = vrot.slane %v2319, 2
  %v2321 = vadd.f32 %v2319, %v2320
  %v2322 = vrot.slane %v2321, 1
  %v2323 = vadd.f32 %v2321, %v2322
  %v2324 = vsel %vm515, %v2218, 0.0
  %v2325 = vrot.slane %v2324, 4
  %v2326 = vadd.f32 %v2324, %v2325
  %v2327 = vrot.slane %v2326, 2
  %v2328 = vadd.f32 %v2326, %v2327
  %v2329 = vrot.slane %v2328, 1
  %v2330 = vadd.f32 %v2328, %v2329
  %v2331 = vrcp.pop %v2225
  %v2332 = vmul.f32 %v2188, %v2331
  %v2333 = vrcp.pop %v2232
  %v2334 = vmul.f32 %v2190, %v2333
  %v2335 = vrcp.pop %v2239
  %v2336 = vmul.f32 %v2192, %v2335
  %v2337 = vrcp.pop %v2246
  %v2338 = vmul.f32 %v2194, %v2337
  %v2339 = vrcp.pop %v2253
  %v2340 = vmul.f32 %v2196, %v2339
  %v2341 = vrcp.pop %v2260
  %v2342 = vmul.f32 %v2198, %v2341
  %v2343 = vrcp.pop %v2267
  %v2344 = vmul.f32 %v2200, %v2343
  %v2345 = vrcp.pop %v2274
  %v2346 = vmul.f32 %v2202, %v2345
  %v2347 = vrcp.pop %v2281
  %v2348 = vmul.f32 %v2204, %v2347
  %v2349 = vrcp.pop %v2288
  %v2350 = vmul.f32 %v2206, %v2349
  %v2351 = vrcp.pop %v2295
  %v2352 = vmul.f32 %v2208, %v2351
  %v2353 = vrcp.pop %v2302
  %v2354 = vmul.f32 %v2210, %v2353
  %v2355 = vrcp.pop %v2309
  %v2356 = vmul.f32 %v2212, %v2355
  %v2357 = vrcp.pop %v2316
  %v2358 = vmul.f32 %v2214, %v2357
  %v2359 = vrcp.pop %v2323
  %v2360 = vmul.f32 %v2216, %v2359
  %v2361 = vrcp.pop %v2330
  %v2362 = vmul.f32 %v2218, %v2361
  %2363 = vrot.lane.b32.xlu0 %v1769, 64
  %v2364 = vpop.permute.xlu0 %2363
  %2365 = vrot.lane.b32.xlu0 %v1774, 64
  %v2366 = vpop.permute.xlu0 %2365
  %v2369 = vmul.f32 %v2332, %v2364
  %v2370 = vmul.f32 %v2334, %v2364
  %v2371 = vmul.f32 %v2336, %v2364
  %v2372 = vmul.f32 %v2338, %v2364
  %v2373 = vmul.f32 %v2340, %v2364
  %v2374 = vmul.f32 %v2342, %v2364
  %v2375 = vmul.f32 %v2344, %v2364
  %v2376 = vmul.f32 %v2346, %v2364
  %v2377 = vmul.f32 %v2348, %v2366
  %v2378 = vmul.f32 %v2350, %v2366
  %v2379 = vmul.f32 %v2352, %v2366
  %v2380 = vmul.f32 %v2354, %v2366
  %v2381 = vmul.f32 %v2356, %v2366
  %v2382 = vmul.f32 %v2358, %v2366
  %v2383 = vmul.f32 %v2360, %v2366
  %v2384 = vmul.f32 %v2362, %v2366
  %v2385 = vsel %vm515, %v2369, 0.0
  %v2386 = vrot.slane %v2385, 4
  %v2387 = vadd.f32 %v2385, %v2386
  %v2388 = vrot.slane %v2387, 2
  %v2389 = vadd.f32 %v2387, %v2388
  %v2390 = vrot.slane %v2389, 1
  %v2391 = vadd.f32 %v2389, %v2390
  %v2392 = vsel %vm515, %v2370, 0.0
  %v2393 = vrot.slane %v2392, 4
  %v2394 = vadd.f32 %v2392, %v2393
  %v2395 = vrot.slane %v2394, 2
  %v2396 = vadd.f32 %v2394, %v2395
  %v2397 = vrot.slane %v2396, 1
  %v2398 = vadd.f32 %v2396, %v2397
  %v2399 = vsel %vm515, %v2371, 0.0
  %v2400 = vrot.slane %v2399, 4
  %v2401 = vadd.f32 %v2399, %v2400
  %v2402 = vrot.slane %v2401, 2
  %v2403 = vadd.f32 %v2401, %v2402
  %v2404 = vrot.slane %v2403, 1
  %v2405 = vadd.f32 %v2403, %v2404
  %v2406 = vsel %vm515, %v2372, 0.0
  %v2407 = vrot.slane %v2406, 4
  %v2408 = vadd.f32 %v2406, %v2407
  %v2409 = vrot.slane %v2408, 2
  %v2410 = vadd.f32 %v2408, %v2409
  %v2411 = vrot.slane %v2410, 1
  %v2412 = vadd.f32 %v2410, %v2411
  %v2413 = vsel %vm515, %v2373, 0.0
  %v2414 = vrot.slane %v2413, 4
  %v2415 = vadd.f32 %v2413, %v2414
  %v2416 = vrot.slane %v2415, 2
  %v2417 = vadd.f32 %v2415, %v2416
  %v2418 = vrot.slane %v2417, 1
  %v2419 = vadd.f32 %v2417, %v2418
  %v2420 = vsel %vm515, %v2374, 0.0
  %v2421 = vrot.slane %v2420, 4
  %v2422 = vadd.f32 %v2420, %v2421
  %v2423 = vrot.slane %v2422, 2
  %v2424 = vadd.f32 %v2422, %v2423
  %v2425 = vrot.slane %v2424, 1
  %v2426 = vadd.f32 %v2424, %v2425
  %v2427 = vsel %vm515, %v2375, 0.0
  %v2428 = vrot.slane %v2427, 4
  %v2429 = vadd.f32 %v2427, %v2428
  %v2430 = vrot.slane %v2429, 2
  %v2431 = vadd.f32 %v2429, %v2430
  %v2432 = vrot.slane %v2431, 1
  %v2433 = vadd.f32 %v2431, %v2432
  %v2434 = vsel %vm515, %v2376, 0.0
  %v2435 = vrot.slane %v2434, 4
  %v2436 = vadd.f32 %v2434, %v2435
  %v2437 = vrot.slane %v2436, 2
  %v2438 = vadd.f32 %v2436, %v2437
  %v2439 = vrot.slane %v2438, 1
  %v2440 = vadd.f32 %v2438, %v2439
  %v2441 = vsel %vm515, %v2377, 0.0
  %v2442 = vrot.slane %v2441, 4
  %v2443 = vadd.f32 %v2441, %v2442
  %v2444 = vrot.slane %v2443, 2
  %v2445 = vadd.f32 %v2443, %v2444
  %v2446 = vrot.slane %v2445, 1
  %v2447 = vadd.f32 %v2445, %v2446
  %v2448 = vsel %vm515, %v2378, 0.0
  %v2449 = vrot.slane %v2448, 4
  %v2450 = vadd.f32 %v2448, %v2449
  %v2451 = vrot.slane %v2450, 2
  %v2452 = vadd.f32 %v2450, %v2451
  %v2453 = vrot.slane %v2452, 1
  %v2454 = vadd.f32 %v2452, %v2453
  %v2455 = vsel %vm515, %v2379, 0.0
  %v2456 = vrot.slane %v2455, 4
  %v2457 = vadd.f32 %v2455, %v2456
  %v2458 = vrot.slane %v2457, 2
  %v2459 = vadd.f32 %v2457, %v2458
  %v2460 = vrot.slane %v2459, 1
  %v2461 = vadd.f32 %v2459, %v2460
  %v2462 = vsel %vm515, %v2380, 0.0
  %v2463 = vrot.slane %v2462, 4
  %v2464 = vadd.f32 %v2462, %v2463
  %v2465 = vrot.slane %v2464, 2
  %v2466 = vadd.f32 %v2464, %v2465
  %v2467 = vrot.slane %v2466, 1
  %v2468 = vadd.f32 %v2466, %v2467
  %v2469 = vsel %vm515, %v2381, 0.0
  %v2470 = vrot.slane %v2469, 4
  %v2471 = vadd.f32 %v2469, %v2470
  %v2472 = vrot.slane %v2471, 2
  %v2473 = vadd.f32 %v2471, %v2472
  %v2474 = vrot.slane %v2473, 1
  %v2475 = vadd.f32 %v2473, %v2474
  %v2476 = vsel %vm515, %v2382, 0.0
  %v2477 = vrot.slane %v2476, 4
  %v2478 = vadd.f32 %v2476, %v2477
  %v2479 = vrot.slane %v2478, 2
  %v2480 = vadd.f32 %v2478, %v2479
  %v2481 = vrot.slane %v2480, 1
  %v2482 = vadd.f32 %v2480, %v2481
  %v2483 = vsel %vm515, %v2383, 0.0
  %v2484 = vrot.slane %v2483, 4
  %v2485 = vadd.f32 %v2483, %v2484
  %v2486 = vrot.slane %v2485, 2
  %v2487 = vadd.f32 %v2485, %v2486
  %v2488 = vrot.slane %v2487, 1
  %v2489 = vadd.f32 %v2487, %v2488
  %v2490 = vsel %vm515, %v2384, 0.0
  %v2491 = vrot.slane %v2490, 4
  %v2492 = vadd.f32 %v2490, %v2491
  %v2493 = vrot.slane %v2492, 2
  %v2494 = vadd.f32 %v2492, %v2493
  %v2495 = vrot.slane %v2494, 1
  %v2496 = vadd.f32 %v2494, %v2495
  %2497 = vrot.lane.b32.xlu0 %v1769, 48
  %v2498 = vpop.permute.xlu0 %2497
  %2499 = vrot.lane.b32.xlu0 %v1774, 48
  %v2500 = vpop.permute.xlu0 %2499
  %v2503 = vmul.f32 %v2332, %v2498
  %v2504 = vmul.f32 %v2334, %v2498
  %v2505 = vmul.f32 %v2336, %v2498
  %v2506 = vmul.f32 %v2338, %v2498
  %v2507 = vmul.f32 %v2340, %v2498
  %v2508 = vmul.f32 %v2342, %v2498
  %v2509 = vmul.f32 %v2344, %v2498
  %v2510 = vmul.f32 %v2346, %v2498
  %v2511 = vmul.f32 %v2348, %v2500
  %v2512 = vmul.f32 %v2350, %v2500
  %v2513 = vmul.f32 %v2352, %v2500
  %v2514 = vmul.f32 %v2354, %v2500
  %v2515 = vmul.f32 %v2356, %v2500
  %v2516 = vmul.f32 %v2358, %v2500
  %v2517 = vmul.f32 %v2360, %v2500
  %v2518 = vmul.f32 %v2362, %v2500
  %v2519 = vsel %vm515, %v2503, 0.0
  %v2520 = vrot.slane %v2519, 4
  %v2521 = vadd.f32 %v2519, %v2520
  %v2522 = vrot.slane %v2521, 2
  %v2523 = vadd.f32 %v2521, %v2522
  %v2524 = vrot.slane %v2523, 1
  %v2525 = vadd.f32 %v2523, %v2524
  %v2526 = vsel %vm515, %v2504, 0.0
  %v2527 = vrot.slane %v2526, 4
  %v2528 = vadd.f32 %v2526, %v2527
  %v2529 = vrot.slane %v2528, 2
  %v2530 = vadd.f32 %v2528, %v2529
  %v2531 = vrot.slane %v2530, 1
  %v2532 = vadd.f32 %v2530, %v2531
  %v2533 = vsel %vm515, %v2505, 0.0
  %v2534 = vrot.slane %v2533, 4
  %v2535 = vadd.f32 %v2533, %v2534
  %v2536 = vrot.slane %v2535, 2
  %v2537 = vadd.f32 %v2535, %v2536
  %v2538 = vrot.slane %v2537, 1
  %v2539 = vadd.f32 %v2537, %v2538
  %v2540 = vsel %vm515, %v2506, 0.0
  %v2541 = vrot.slane %v2540, 4
  %v2542 = vadd.f32 %v2540, %v2541
  %v2543 = vrot.slane %v2542, 2
  %v2544 = vadd.f32 %v2542, %v2543
  %v2545 = vrot.slane %v2544, 1
  %v2546 = vadd.f32 %v2544, %v2545
  %v2547 = vsel %vm515, %v2507, 0.0
  %v2548 = vrot.slane %v2547, 4
  %v2549 = vadd.f32 %v2547, %v2548
  %v2550 = vrot.slane %v2549, 2
  %v2551 = vadd.f32 %v2549, %v2550
  %v2552 = vrot.slane %v2551, 1
  %v2553 = vadd.f32 %v2551, %v2552
  %v2554 = vsel %vm515, %v2508, 0.0
  %v2555 = vrot.slane %v2554, 4
  %v2556 = vadd.f32 %v2554, %v2555
  %v2557 = vrot.slane %v2556, 2
  %v2558 = vadd.f32 %v2556, %v2557
  %v2559 = vrot.slane %v2558, 1
  %v2560 = vadd.f32 %v2558, %v2559
  %v2561 = vsel %vm515, %v2509, 0.0
  %v2562 = vrot.slane %v2561, 4
  %v2563 = vadd.f32 %v2561, %v2562
  %v2564 = vrot.slane %v2563, 2
  %v2565 = vadd.f32 %v2563, %v2564
  %v2566 = vrot.slane %v2565, 1
  %v2567 = vadd.f32 %v2565, %v2566
  %v2568 = vsel %vm515, %v2510, 0.0
  %v2569 = vrot.slane %v2568, 4
  %v2570 = vadd.f32 %v2568, %v2569
  %v2571 = vrot.slane %v2570, 2
  %v2572 = vadd.f32 %v2570, %v2571
  %v2573 = vrot.slane %v2572, 1
  %v2574 = vadd.f32 %v2572, %v2573
  %v2575 = vsel %vm515, %v2511, 0.0
  %v2576 = vrot.slane %v2575, 4
  %v2577 = vadd.f32 %v2575, %v2576
  %v2578 = vrot.slane %v2577, 2
  %v2579 = vadd.f32 %v2577, %v2578
  %v2580 = vrot.slane %v2579, 1
  %v2581 = vadd.f32 %v2579, %v2580
  %v2582 = vsel %vm515, %v2512, 0.0
  %v2583 = vrot.slane %v2582, 4
  %v2584 = vadd.f32 %v2582, %v2583
  %v2585 = vrot.slane %v2584, 2
  %v2586 = vadd.f32 %v2584, %v2585
  %v2587 = vrot.slane %v2586, 1
  %v2588 = vadd.f32 %v2586, %v2587
  %v2589 = vsel %vm515, %v2513, 0.0
  %v2590 = vrot.slane %v2589, 4
  %v2591 = vadd.f32 %v2589, %v2590
  %v2592 = vrot.slane %v2591, 2
  %v2593 = vadd.f32 %v2591, %v2592
  %v2594 = vrot.slane %v2593, 1
  %v2595 = vadd.f32 %v2593, %v2594
  %v2596 = vsel %vm515, %v2514, 0.0
  %v2597 = vrot.slane %v2596, 4
  %v2598 = vadd.f32 %v2596, %v2597
  %v2599 = vrot.slane %v2598, 2
  %v2600 = vadd.f32 %v2598, %v2599
  %v2601 = vrot.slane %v2600, 1
  %v2602 = vadd.f32 %v2600, %v2601
  %v2603 = vsel %vm515, %v2515, 0.0
  %v2604 = vrot.slane %v2603, 4
  %v2605 = vadd.f32 %v2603, %v2604
  %v2606 = vrot.slane %v2605, 2
  %v2607 = vadd.f32 %v2605, %v2606
  %v2608 = vrot.slane %v2607, 1
  %v2609 = vadd.f32 %v2607, %v2608
  %v2610 = vsel %vm515, %v2516, 0.0
  %v2611 = vrot.slane %v2610, 4
  %v2612 = vadd.f32 %v2610, %v2611
  %v2613 = vrot.slane %v2612, 2
  %v2614 = vadd.f32 %v2612, %v2613
  %v2615 = vrot.slane %v2614, 1
  %v2616 = vadd.f32 %v2614, %v2615
  %v2617 = vsel %vm515, %v2517, 0.0
  %v2618 = vrot.slane %v2617, 4
  %v2619 = vadd.f32 %v2617, %v2618
  %v2620 = vrot.slane %v2619, 2
  %v2621 = vadd.f32 %v2619, %v2620
  %v2622 = vrot.slane %v2621, 1
  %v2623 = vadd.f32 %v2621, %v2622
  %v2624 = vsel %vm515, %v2518, 0.0
  %v2625 = vrot.slane %v2624, 4
  %v2626 = vadd.f32 %v2624, %v2625
  %v2627 = vrot.slane %v2626, 2
  %v2628 = vadd.f32 %v2626, %v2627
  %v2629 = vrot.slane %v2628, 1
  %v2630 = vadd.f32 %v2628, %v2629
  %s2631 = scalar_lea.vmem %s4, 32
  %v2632 = vld [vmem:[%s2631] sm:$0xff]
  %v2633 = vld [vmem:[%s2631 + $0x8] sm:$0xff]
  %s2634 = scalar_lea.vmem %s4, 48
  %v2635 = vld [vmem:[%s2634] sm:$0xff]
  %v2636 = vld [vmem:[%s2634 + $0x8] sm:$0xff]
  %v2653 = vsel %vm1109, %v2532, %v2525
  %v2654 = vsel %vm1111, %v2539, %v2653
  %v2655 = vsel %vm1113, %v2546, %v2654
  %v2656 = vsel %vm1115, %v2553, %v2655
  %v2657 = vsel %vm1117, %v2560, %v2656
  %v2658 = vsel %vm1119, %v2567, %v2657
  %v2659 = vsel %vm1121, %v2574, %v2658
  %v2660 = vsel %vm1109, %v2588, %v2581
  %v2661 = vsel %vm1111, %v2595, %v2660
  %v2662 = vsel %vm1113, %v2602, %v2661
  %v2663 = vsel %vm1115, %v2609, %v2662
  %v2664 = vsel %vm1117, %v2616, %v2663
  %v2665 = vsel %vm1119, %v2623, %v2664
  %v2666 = vsel %vm1121, %v2630, %v2665
  %v2667 = vsel %vm515, %v2659, 0
  %v2669 = vsel %vm515, %v2666, 0
  %2671 = vmatprep.subr.mxu0 0.0
  %2672 = vmatpush1.msra.mxu0 %v2635
  %2673 = vmatprep.subr.mxu0 0.0
  %2674 = vmatpush1.msra.mxu0 %v2636
  %2675 = vmatprep.subr.mxu0 0.0
  %2676 = vmatpush1.msra.mxu0 0.0
  %2677 = vmatprep.subr.mxu0 0.0
  %2678 = vmatpush1.msra.mxu0 0.0
  %2679 = vmatprep.subr.mxu0 0.0
  %2680 = vmatpush1.msra.mxu0 0.0
  %2681 = vmatprep.subr.mxu0 0.0
  %2682 = vmatpush1.msra.mxu0 0.0
  %2683 = vmatprep.subr.mxu0 0.0
  %2684 = vmatpush1.msra.mxu0 0.0
  %2685 = vmatprep.subr.mxu0 0.0
  %2686 = vmatpush1.msra.mxu0 0.0
  %2687 = vmatprep.subr.mxu0 0.0
  %2688 = vmatpush1.msra.mxu0 0.0
  %2689 = vmatprep.subr.mxu0 0.0
  %2690 = vmatpush1.msra.mxu0 0.0
  %2691 = vmatprep.subr.mxu0 0.0
  %2692 = vmatpush1.msra.mxu0 0.0
  %2693 = vmatprep.subr.mxu0 0.0
  %2694 = vmatpush1.msra.mxu0 0.0
  %2695 = vmatprep.subr.mxu0 0.0
  %2696 = vmatpush1.msra.mxu0 0.0
  %2697 = vmatprep.subr.mxu0 0.0
  %2698 = vmatpush1.msra.mxu0 0.0
  %2699 = vmatprep.subr.mxu0 0.0
  %2700 = vmatpush1.msra.mxu0 0.0
  %2701 = vmatprep.subr.mxu0 0.0
  %2702 = vmatpush1.msra.mxu0 0.0
  %2703 = vmatprep.subr.mxu0 0.0
  %2704 = vmatpush1.msra.mxu0 0.0
  %2705 = vmatprep.subr.mxu0 0.0
  %2706 = vmatpush1.msra.mxu0 0.0
  %2707 = vmatprep.subr.mxu0 0.0
  %2708 = vmatpush1.msra.mxu0 0.0
  %2709 = vmatprep.subr.mxu0 0.0
  %2710 = vmatpush1.msra.mxu0 0.0
  %2711 = vmatprep.subr.mxu0 0.0
  %2712 = vmatpush1.msra.mxu0 0.0
  %2713 = vmatprep.subr.mxu0 0.0
  %2714 = vmatpush1.msra.mxu0 0.0
  %2715 = vmatprep.subr.mxu0 0.0
  %2716 = vmatpush1.msra.mxu0 0.0
  %2717 = vmatprep.subr.mxu0 0.0
  %2718 = vmatpush1.msra.mxu0 0.0
  %2719 = vmatprep.subr.mxu0 0.0
  %2720 = vmatpush1.msra.mxu0 0.0
  %2721 = vmatprep.subr.mxu0 0.0
  %2722 = vmatpush1.msra.mxu0 0.0
  %2723 = vmatprep.subr.mxu0 0.0
  %2724 = vmatpush1.msra.mxu0 0.0
  %2725 = vmatprep.subr.mxu0 0.0
  %2726 = vmatpush1.msra.mxu0 0.0
  %2727 = vmatprep.subr.mxu0 0.0
  %2728 = vmatpush1.msra.mxu0 0.0
  %2729 = vmatprep.subr.mxu0 0.0
  %2730 = vmatpush1.msra.mxu0 0.0
  %2731 = vmatprep.subr.mxu0 0.0
  %2732 = vmatpush1.msra.mxu0 0.0
  %2733 = vmatprep.subr.mxu0 0.0
  %2734 = vmatpush1.msra.mxu0 0.0
  %2735 = vmatprep.mubr.f32.mxu0 0.0
  %2736 = vmatmul.mubr.f32.gmra.mrb[0].mxu0 %v2667
  %v2737 = vpop.f32.mrb[0].mxu0
  %v2738 = vadd.f32 0.0, %v2737
  %v2739 = vpop.f32.mrb[0].mxu0
  %2740 = vmatprep.mubr.f32.mxu0 0.0
  %2741 = vmatmul.mubr.f32.gmra.mrb[0].mxu0 %v2669
  %v2742 = vpop.f32.mrb[0].mxu0
  %v2743 = vadd.f32 0.0, %v2742
  %v2744 = vpop.f32.mrb[0].mxu0
  %2745 = vdwg.mxu0
  %v2762 = vsel %vm1109, %v2398, %v2391
  %v2763 = vsel %vm1111, %v2405, %v2762
  %v2764 = vsel %vm1113, %v2412, %v2763
  %v2765 = vsel %vm1115, %v2419, %v2764
  %v2766 = vsel %vm1117, %v2426, %v2765
  %v2767 = vsel %vm1119, %v2433, %v2766
  %v2768 = vsel %vm1121, %v2440, %v2767
  %v2769 = vsel %vm1109, %v2454, %v2447
  %v2770 = vsel %vm1111, %v2461, %v2769
  %v2771 = vsel %vm1113, %v2468, %v2770
  %v2772 = vsel %vm1115, %v2475, %v2771
  %v2773 = vsel %vm1117, %v2482, %v2772
  %v2774 = vsel %vm1119, %v2489, %v2773
  %v2775 = vsel %vm1121, %v2496, %v2774
  %v2776 = vsel %vm515, %v2768, 0
  %v2778 = vsel %vm515, %v2775, 0
  %2780 = vmatprep.subr.mxu0 0.0
  %2781 = vmatpush1.msra.mxu0 %v2632
  %2782 = vmatprep.subr.mxu0 0.0
  %2783 = vmatpush1.msra.mxu0 %v2633
  %2784 = vmatprep.subr.mxu0 0.0
  %2785 = vmatpush1.msra.mxu0 0.0
  %2786 = vmatprep.subr.mxu0 0.0
  %2787 = vmatpush1.msra.mxu0 0.0
  %2788 = vmatprep.subr.mxu0 0.0
  %2789 = vmatpush1.msra.mxu0 0.0
  %2790 = vmatprep.subr.mxu0 0.0
  %2791 = vmatpush1.msra.mxu0 0.0
  %2792 = vmatprep.subr.mxu0 0.0
  %2793 = vmatpush1.msra.mxu0 0.0
  %2794 = vmatprep.subr.mxu0 0.0
  %2795 = vmatpush1.msra.mxu0 0.0
  %2796 = vmatprep.subr.mxu0 0.0
  %2797 = vmatpush1.msra.mxu0 0.0
  %2798 = vmatprep.subr.mxu0 0.0
  %2799 = vmatpush1.msra.mxu0 0.0
  %2800 = vmatprep.subr.mxu0 0.0
  %2801 = vmatpush1.msra.mxu0 0.0
  %2802 = vmatprep.subr.mxu0 0.0
  %2803 = vmatpush1.msra.mxu0 0.0
  %2804 = vmatprep.subr.mxu0 0.0
  %2805 = vmatpush1.msra.mxu0 0.0
  %2806 = vmatprep.subr.mxu0 0.0
  %2807 = vmatpush1.msra.mxu0 0.0
  %2808 = vmatprep.subr.mxu0 0.0
  %2809 = vmatpush1.msra.mxu0 0.0
  %2810 = vmatprep.subr.mxu0 0.0
  %2811 = vmatpush1.msra.mxu0 0.0
  %2812 = vmatprep.subr.mxu0 0.0
  %2813 = vmatpush1.msra.mxu0 0.0
  %2814 = vmatprep.subr.mxu0 0.0
  %2815 = vmatpush1.msra.mxu0 0.0
  %2816 = vmatprep.subr.mxu0 0.0
  %2817 = vmatpush1.msra.mxu0 0.0
  %2818 = vmatprep.subr.mxu0 0.0
  %2819 = vmatpush1.msra.mxu0 0.0
  %2820 = vmatprep.subr.mxu0 0.0
  %2821 = vmatpush1.msra.mxu0 0.0
  %2822 = vmatprep.subr.mxu0 0.0
  %2823 = vmatpush1.msra.mxu0 0.0
  %2824 = vmatprep.subr.mxu0 0.0
  %2825 = vmatpush1.msra.mxu0 0.0
  %2826 = vmatprep.subr.mxu0 0.0
  %2827 = vmatpush1.msra.mxu0 0.0
  %2828 = vmatprep.subr.mxu0 0.0
  %2829 = vmatpush1.msra.mxu0 0.0
  %2830 = vmatprep.subr.mxu0 0.0
  %2831 = vmatpush1.msra.mxu0 0.0
  %2832 = vmatprep.subr.mxu0 0.0
  %2833 = vmatpush1.msra.mxu0 0.0
  %2834 = vmatprep.subr.mxu0 0.0
  %2835 = vmatpush1.msra.mxu0 0.0
  %2836 = vmatprep.subr.mxu0 0.0
  %2837 = vmatpush1.msra.mxu0 0.0
  %2838 = vmatprep.subr.mxu0 0.0
  %2839 = vmatpush1.msra.mxu0 0.0
  %2840 = vmatprep.subr.mxu0 0.0
  %2841 = vmatpush1.msra.mxu0 0.0
  %2842 = vmatprep.subr.mxu0 0.0
  %2843 = vmatpush1.msra.mxu0 0.0
  %2844 = vmatprep.mubr.f32.mxu0 0.0
  %2845 = vmatmul.mubr.f32.gmra.mrb[0].mxu0 %v2776
  %v2846 = vpop.f32.mrb[0].mxu0
  %v2847 = vadd.f32 %v2738, %v2846
  %v2848 = vpop.f32.mrb[0].mxu0
  %2849 = vmatprep.mubr.f32.mxu0 0.0
  %2850 = vmatmul.mubr.f32.gmra.mrb[0].mxu0 %v2778
  %v2851 = vpop.f32.mrb[0].mxu0
  %v2852 = vadd.f32 %v2743, %v2851
  %v2853 = vpop.f32.mrb[0].mxu0
  %2854 = vdwg.mxu0
  %v2855 = vld [vmem:[%s10 + $0x7] sm:$0x1]
  %v2856 = vlaneseq
  %v2857 = vshrl.u32 %v2856, 7
  %v2858 = vsub.s32 0, %v2857
  %v2859 = vrot.slane %v2855, %v2858
  %v2860 = vadd.f32 %v2847, %v2859
  %v2861 = vadd.f32 %v2852, %v2859
  %v2862 = vadd.f32 %v1684, %v2860
  %v2863 = vadd.f32 %v1685, %v2861
  %v2864 = vld [vmem:[%s10 + $0x8] sm:$0x1]
  %v2865 = vld [vmem:[%s10 + $0x9] sm:$0x1]
  %v2866 = vsel %vm515, %v2862, 0.0
  %2867 = vadd.xlane.f32.xlu0 %v2866
  %v2868 = vpop.xlane.xlu0 %2867
  %v2869 = vsel %vm515, %v2863, 0.0
  %2870 = vadd.xlane.f32.xlu0 %v2869
  %v2871 = vpop.xlane.xlu0 %2870
  %v2872 = vmul.f32 %v2868, %v1335
  %v2873 = vmul.f32 %v2871, %v1335
  %v2874 = vsub.f32 %v2862, %v2872
  %v2875 = vsub.f32 %v2863, %v2873
  %v2876 = vmul.f32 %v2874, %v2874
  %v2877 = vmul.f32 %v2875, %v2875
  %v2878 = vsel %vm515, %v2876, 0.0
  %2879 = vadd.xlane.f32.xlu0 %v2878
  %v2880 = vpop.xlane.xlu0 %2879
  %v2881 = vsel %vm515, %v2877, 0.0
  %2882 = vadd.xlane.f32.xlu0 %v2881
  %v2883 = vpop.xlane.xlu0 %2882
  %v2884 = vmul.f32 %v2880, %v1335
  %v2885 = vmul.f32 %v2883, %v1335
  %v2886 = vadd.f32 %v2884, 1e-05
  %v2887 = vadd.f32 %v2885, 1e-05
  %v2888 = vrsqrt.pop %v2886
  %v2889 = vrsqrt.pop %v2887
  %v2890 = vmul.f32 %v2874, %v2888
  %v2891 = vmul.f32 %v2875, %v2889
  %2894 = vrot.lane.b32.xlu0 %v2862, 112
  %v2895 = vpop.permute.xlu0 %2894
  %2896 = vrot.lane.b32.xlu0 %v2863, 112
  %v2897 = vpop.permute.xlu0 %2896
  %v2900 = vsel %vm515, %v2895, 0.0
  %2901 = vadd.xlane.f32.xlu0 %v2900
  %v2902 = vpop.xlane.xlu0 %2901
  %v2903 = vsel %vm515, %v2897, 0.0
  %2904 = vadd.xlane.f32.xlu0 %v2903
  %v2905 = vpop.xlane.xlu0 %2904
  %v2906 = vmul.f32 %v2902, %v1335
  %v2907 = vmul.f32 %v2905, %v1335
  %v2908 = vsub.f32 %v2862, %v2906
  %v2909 = vsub.f32 %v2863, %v2907
  %v2910 = vmul.f32 %v2908, %v2908
  %v2911 = vmul.f32 %v2909, %v2909
  %2914 = vrot.lane.b32.xlu0 %v2910, 112
  %v2915 = vpop.permute.xlu0 %2914
  %2916 = vrot.lane.b32.xlu0 %v2911, 112
  %v2917 = vpop.permute.xlu0 %2916
  %v2920 = vsel %vm515, %v2915, 0.0
  %2921 = vadd.xlane.f32.xlu0 %v2920
  %v2922 = vpop.xlane.xlu0 %2921
  %v2923 = vsel %vm515, %v2917, 0.0
  %2924 = vadd.xlane.f32.xlu0 %v2923
  %v2925 = vpop.xlane.xlu0 %2924
  %v2926 = vmul.f32 %v2922, %v1335
  %v2927 = vmul.f32 %v2925, %v1335
  %v2928 = vadd.f32 %v2926, 1e-05
  %v2929 = vadd.f32 %v2927, 1e-05
  %v2930 = vrsqrt.pop %v2928
  %v2931 = vrsqrt.pop %v2929
  %v2932 = vmul.f32 %v2908, %v2930
  %v2933 = vmul.f32 %v2909, %v2931
  %v2934 = vsel %vm515, %v2890, %v2932
  %v2935 = vsel %vm515, %v2891, %v2933
  %v2936 = vlaneseq
  %v2937 = vshrl.u32 %v2936, 7
  %v2938 = vsub.s32 0, %v2937
  %v2939 = vrot.slane %v2864, %v2938
  %v2940 = vmul.f32 %v2934, %v2939
  %v2941 = vmul.f32 %v2935, %v2939
  %v2942 = vlaneseq
  %v2943 = vshrl.u32 %v2942, 7
  %v2944 = vsub.s32 0, %v2943
  %v2945 = vrot.slane %v2865, %v2944
  %v2946 = vadd.f32 %v2940, %v2945
  %v2947 = vadd.f32 %v2941, %v2945
  %s2948 = scalar_lea.vmem %s5, 32
  %v2949 = vld [vmem:[%s2948] sm:$0xff]
  %v2950 = vld [vmem:[%s2948 + $0x8] sm:$0xff]
  %v2951 = vld [vmem:[%s2948 + $0x10] sm:$0xff]
  %v2952 = vld [vmem:[%s2948 + $0x18] sm:$0xff]
  %v2953 = vld [vmem:[%s12 + $0x1] sm:$0x1]
  %v2954 = vlaneseq
  %v2955 = vshrl.u32 %v2954, 7
  %v2956 = vsub.s32 0, %v2955
  %v2957 = vrot.slane %v2953, %v2956
  %v2959 = vsel %vm58, %v2946, 0
  %v2962 = vsel %vm58, %v2947, 0
  %2964 = vmatprep.subr.mxu0 0.0
  %2965 = vmatpush1.msra.mxu0 %v2949
  %2966 = vmatprep.subr.mxu0 0.0
  %2967 = vmatpush1.msra.mxu0 %v2950
  %2968 = vmatprep.subr.mxu0 0.0
  %2969 = vmatpush1.msra.mxu0 %v2951
  %2970 = vmatprep.subr.mxu0 0.0
  %2971 = vmatpush1.msra.mxu0 %v2952
  %2972 = vmatprep.subr.mxu0 0.0
  %2973 = vmatpush1.msra.mxu0 0.0
  %2974 = vmatprep.subr.mxu0 0.0
  %2975 = vmatpush1.msra.mxu0 0.0
  %2976 = vmatprep.subr.mxu0 0.0
  %2977 = vmatpush1.msra.mxu0 0.0
  %2978 = vmatprep.subr.mxu0 0.0
  %2979 = vmatpush1.msra.mxu0 0.0
  %2980 = vmatprep.subr.mxu0 0.0
  %2981 = vmatpush1.msra.mxu0 0.0
  %2982 = vmatprep.subr.mxu0 0.0
  %2983 = vmatpush1.msra.mxu0 0.0
  %2984 = vmatprep.subr.mxu0 0.0
  %2985 = vmatpush1.msra.mxu0 0.0
  %2986 = vmatprep.subr.mxu0 0.0
  %2987 = vmatpush1.msra.mxu0 0.0
  %2988 = vmatprep.subr.mxu0 0.0
  %2989 = vmatpush1.msra.mxu0 0.0
  %2990 = vmatprep.subr.mxu0 0.0
  %2991 = vmatpush1.msra.mxu0 0.0
  %2992 = vmatprep.subr.mxu0 0.0
  %2993 = vmatpush1.msra.mxu0 0.0
  %2994 = vmatprep.subr.mxu0 0.0
  %2995 = vmatpush1.msra.mxu0 0.0
  %2996 = vmatprep.subr.mxu0 0.0
  %2997 = vmatpush1.msra.mxu0 0.0
  %2998 = vmatprep.subr.mxu0 0.0
  %2999 = vmatpush1.msra.mxu0 0.0
  %3000 = vmatprep.subr.mxu0 0.0
  %3001 = vmatpush1.msra.mxu0 0.0
  %3002 = vmatprep.subr.mxu0 0.0
  %3003 = vmatpush1.msra.mxu0 0.0
  %3004 = vmatprep.subr.mxu0 0.0
  %3005 = vmatpush1.msra.mxu0 0.0
  %3006 = vmatprep.subr.mxu0 0.0
  %3007 = vmatpush1.msra.mxu0 0.0
  %3008 = vmatprep.subr.mxu0 0.0
  %3009 = vmatpush1.msra.mxu0 0.0
  %3010 = vmatprep.subr.mxu0 0.0
  %3011 = vmatpush1.msra.mxu0 0.0
  %3012 = vmatprep.subr.mxu0 0.0
  %3013 = vmatpush1.msra.mxu0 0.0
  %3014 = vmatprep.subr.mxu0 0.0
  %3015 = vmatpush1.msra.mxu0 0.0
  %3016 = vmatprep.subr.mxu0 0.0
  %3017 = vmatpush1.msra.mxu0 0.0
  %3018 = vmatprep.subr.mxu0 0.0
  %3019 = vmatpush1.msra.mxu0 0.0
  %3020 = vmatprep.subr.mxu0 0.0
  %3021 = vmatpush1.msra.mxu0 0.0
  %3022 = vmatprep.subr.mxu0 0.0
  %3023 = vmatpush1.msra.mxu0 0.0
  %3024 = vmatprep.subr.mxu0 0.0
  %3025 = vmatpush1.msra.mxu0 0.0
  %3026 = vmatprep.subr.mxu0 0.0
  %3027 = vmatpush1.msra.mxu0 0.0
  %3028 = vmatprep.mubr.f32.mxu0 0.0
  %3029 = vmatmul.mubr.f32.gmra.mrb[0].mxu0 %v2959
  %v3030 = vpop.f32.mrb[0].mxu0
  %v3031 = vadd.f32 %v2957, %v3030
  %v3032 = vpop.f32.mrb[0].mxu0
  %3033 = vmatprep.mubr.f32.mxu0 0.0
  %3034 = vmatmul.mubr.f32.gmra.mrb[0].mxu0 %v2962
  %v3035 = vpop.f32.mrb[0].mxu0
  %v3036 = vadd.f32 %v2957, %v3035
  %v3037 = vpop.f32.mrb[0].mxu0
  %3038 = vdwg.mxu0
  %v3039 = vmax.f32 %v3031, 0.0
  %v3040 = vmax.f32 %v3036, 0.0
  %s3041 = scalar_lea.vmem %s6, 128
  %v3042 = vld [vmem:[%s3041] sm:$0xff]
  %v3043 = vld [vmem:[%s3041 + $0x8] sm:$0xff]
  %v3044 = vld [vmem:[%s3041 + $0x10] sm:$0xff]
  %v3045 = vld [vmem:[%s3041 + $0x18] sm:$0xff]
  %v3046 = vld [vmem:[%s3041 + $0x20] sm:$0xff]
  %v3047 = vld [vmem:[%s3041 + $0x28] sm:$0xff]
  %v3048 = vld [vmem:[%s3041 + $0x30] sm:$0xff]
  %v3049 = vld [vmem:[%s3041 + $0x38] sm:$0xff]
  %v3050 = vld [vmem:[%s3041 + $0x40] sm:$0xff]
  %v3051 = vld [vmem:[%s3041 + $0x48] sm:$0xff]
  %v3052 = vld [vmem:[%s3041 + $0x50] sm:$0xff]
  %v3053 = vld [vmem:[%s3041 + $0x58] sm:$0xff]
  %v3054 = vld [vmem:[%s3041 + $0x60] sm:$0xff]
  %v3055 = vld [vmem:[%s3041 + $0x68] sm:$0xff]
  %v3056 = vld [vmem:[%s3041 + $0x70] sm:$0xff]
  %v3057 = vld [vmem:[%s3041 + $0x78] sm:$0xff]
  %v3058 = vld [vmem:[%s10 + $0xa] sm:$0x1]
  %v3059 = vlaneseq
  %v3060 = vshrl.u32 %v3059, 7
  %v3061 = vsub.s32 0, %v3060
  %v3062 = vrot.slane %v3058, %v3061
  %3063 = vmatprep.subr.mxu0 0.0
  %3064 = vmatpush1.msra.mxu0 %v3042
  %3065 = vmatprep.subr.mxu0 0.0
  %3066 = vmatpush1.msra.mxu0 %v3043
  %3067 = vmatprep.subr.mxu0 0.0
  %3068 = vmatpush1.msra.mxu0 %v3044
  %3069 = vmatprep.subr.mxu0 0.0
  %3070 = vmatpush1.msra.mxu0 %v3045
  %3071 = vmatprep.subr.mxu0 0.0
  %3072 = vmatpush1.msra.mxu0 %v3046
  %3073 = vmatprep.subr.mxu0 0.0
  %3074 = vmatpush1.msra.mxu0 %v3047
  %3075 = vmatprep.subr.mxu0 0.0
  %3076 = vmatpush1.msra.mxu0 %v3048
  %3077 = vmatprep.subr.mxu0 0.0
  %3078 = vmatpush1.msra.mxu0 %v3049
  %3079 = vmatprep.subr.mxu0 0.0
  %3080 = vmatpush1.msra.mxu0 %v3050
  %3081 = vmatprep.subr.mxu0 0.0
  %3082 = vmatpush1.msra.mxu0 %v3051
  %3083 = vmatprep.subr.mxu0 0.0
  %3084 = vmatpush1.msra.mxu0 %v3052
  %3085 = vmatprep.subr.mxu0 0.0
  %3086 = vmatpush1.msra.mxu0 %v3053
  %3087 = vmatprep.subr.mxu0 0.0
  %3088 = vmatpush1.msra.mxu0 %v3054
  %3089 = vmatprep.subr.mxu0 0.0
  %3090 = vmatpush1.msra.mxu0 %v3055
  %3091 = vmatprep.subr.mxu0 0.0
  %3092 = vmatpush1.msra.mxu0 %v3056
  %3093 = vmatprep.subr.mxu0 0.0
  %3094 = vmatpush1.msra.mxu0 %v3057
  %3095 = vmatprep.subr.mxu0 0.0
  %3096 = vmatpush1.msra.mxu0 0.0
  %3097 = vmatprep.subr.mxu0 0.0
  %3098 = vmatpush1.msra.mxu0 0.0
  %3099 = vmatprep.subr.mxu0 0.0
  %3100 = vmatpush1.msra.mxu0 0.0
  %3101 = vmatprep.subr.mxu0 0.0
  %3102 = vmatpush1.msra.mxu0 0.0
  %3103 = vmatprep.subr.mxu0 0.0
  %3104 = vmatpush1.msra.mxu0 0.0
  %3105 = vmatprep.subr.mxu0 0.0
  %3106 = vmatpush1.msra.mxu0 0.0
  %3107 = vmatprep.subr.mxu0 0.0
  %3108 = vmatpush1.msra.mxu0 0.0
  %3109 = vmatprep.subr.mxu0 0.0
  %3110 = vmatpush1.msra.mxu0 0.0
  %3111 = vmatprep.subr.mxu0 0.0
  %3112 = vmatpush1.msra.mxu0 0.0
  %3113 = vmatprep.subr.mxu0 0.0
  %3114 = vmatpush1.msra.mxu0 0.0
  %3115 = vmatprep.subr.mxu0 0.0
  %3116 = vmatpush1.msra.mxu0 0.0
  %3117 = vmatprep.subr.mxu0 0.0
  %3118 = vmatpush1.msra.mxu0 0.0
  %3119 = vmatprep.subr.mxu0 0.0
  %3120 = vmatpush1.msra.mxu0 0.0
  %3121 = vmatprep.subr.mxu0 0.0
  %3122 = vmatpush1.msra.mxu0 0.0
  %3123 = vmatprep.subr.mxu0 0.0
  %3124 = vmatpush1.msra.mxu0 0.0
  %3125 = vmatprep.subr.mxu0 0.0
  %3126 = vmatpush1.msra.mxu0 0.0
  %3127 = vmatprep.mubr.f32.mxu0 0.0
  %3128 = vmatmul.mubr.f32.gmra.mrb[0].mxu0 %v3039
  %v3129 = vpop.f32.mrb[0].mxu0
  %v3130 = vadd.f32 %v3062, %v3129
  %v3131 = vpop.f32.mrb[0].mxu0
  %3132 = vmatprep.mubr.f32.mxu0 0.0
  %3133 = vmatmul.mubr.f32.gmra.mrb[0].mxu0 %v3040
  %v3134 = vpop.f32.mrb[0].mxu0
  %v3135 = vadd.f32 %v3062, %v3134
  %v3136 = vpop.f32.mrb[0].mxu0
  %3137 = vdwg.mxu0
  %v3138 = vadd.f32 %v2946, %v3130
  %v3139 = vadd.f32 %v2947, %v3135
  %v3140 = vld [vmem:[%s10 + $0xb] sm:$0x1]
  %v3141 = vld [vmem:[%s10 + $0xc] sm:$0x1]
  %v3142 = vsel %vm515, %v3138, 0.0
  %3143 = vadd.xlane.f32.xlu0 %v3142
  %v3144 = vpop.xlane.xlu0 %3143
  %v3145 = vsel %vm515, %v3139, 0.0
  %3146 = vadd.xlane.f32.xlu0 %v3145
  %v3147 = vpop.xlane.xlu0 %3146
  %v3148 = vmul.f32 %v3144, %v1335
  %v3149 = vmul.f32 %v3147, %v1335
  %v3150 = vsub.f32 %v3138, %v3148
  %v3151 = vsub.f32 %v3139, %v3149
  %v3152 = vmul.f32 %v3150, %v3150
  %v3153 = vmul.f32 %v3151, %v3151
  %v3154 = vsel %vm515, %v3152, 0.0
  %3155 = vadd.xlane.f32.xlu0 %v3154
  %v3156 = vpop.xlane.xlu0 %3155
  %v3157 = vsel %vm515, %v3153, 0.0
  %3158 = vadd.xlane.f32.xlu0 %v3157
  %v3159 = vpop.xlane.xlu0 %3158
  %v3160 = vmul.f32 %v3156, %v1335
  %v3161 = vmul.f32 %v3159, %v1335
  %v3162 = vadd.f32 %v3160, 1e-05
  %v3163 = vadd.f32 %v3161, 1e-05
  %v3164 = vrsqrt.pop %v3162
  %v3165 = vrsqrt.pop %v3163
  %v3166 = vmul.f32 %v3150, %v3164
  %v3167 = vmul.f32 %v3151, %v3165
  %3170 = vrot.lane.b32.xlu0 %v3138, 112
  %v3171 = vpop.permute.xlu0 %3170
  %3172 = vrot.lane.b32.xlu0 %v3139, 112
  %v3173 = vpop.permute.xlu0 %3172
  %v3176 = vsel %vm515, %v3171, 0.0
  %3177 = vadd.xlane.f32.xlu0 %v3176
  %v3178 = vpop.xlane.xlu0 %3177
  %v3179 = vsel %vm515, %v3173, 0.0
  %3180 = vadd.xlane.f32.xlu0 %v3179
  %v3181 = vpop.xlane.xlu0 %3180
  %v3182 = vmul.f32 %v3178, %v1335
  %v3183 = vmul.f32 %v3181, %v1335
  %v3184 = vsub.f32 %v3138, %v3182
  %v3185 = vsub.f32 %v3139, %v3183
  %v3186 = vmul.f32 %v3184, %v3184
  %v3187 = vmul.f32 %v3185, %v3185
  %3190 = vrot.lane.b32.xlu0 %v3186, 112
  %v3191 = vpop.permute.xlu0 %3190
  %3192 = vrot.lane.b32.xlu0 %v3187, 112
  %v3193 = vpop.permute.xlu0 %3192
  %v3196 = vsel %vm515, %v3191, 0.0
  %3197 = vadd.xlane.f32.xlu0 %v3196
  %v3198 = vpop.xlane.xlu0 %3197
  %v3199 = vsel %vm515, %v3193, 0.0
  %3200 = vadd.xlane.f32.xlu0 %v3199
  %v3201 = vpop.xlane.xlu0 %3200
  %v3202 = vmul.f32 %v3198, %v1335
  %v3203 = vmul.f32 %v3201, %v1335
  %v3204 = vadd.f32 %v3202, 1e-05
  %v3205 = vadd.f32 %v3203, 1e-05
  %v3206 = vrsqrt.pop %v3204
  %v3207 = vrsqrt.pop %v3205
  %v3208 = vmul.f32 %v3184, %v3206
  %v3209 = vmul.f32 %v3185, %v3207
  %v3210 = vsel %vm515, %v3166, %v3208
  %v3211 = vsel %vm515, %v3167, %v3209
  %v3212 = vlaneseq
  %v3213 = vshrl.u32 %v3212, 7
  %v3214 = vsub.s32 0, %v3213
  %v3215 = vrot.slane %v3140, %v3214
  %v3216 = vmul.f32 %v3210, %v3215
  %v3217 = vmul.f32 %v3211, %v3215
  %v3218 = vlaneseq
  %v3219 = vshrl.u32 %v3218, 7
  %v3220 = vsub.s32 0, %v3219
  %v3221 = vrot.slane %v3141, %v3220
  %v3222 = vadd.f32 %v3216, %v3221
  %v3223 = vadd.f32 %v3217, %v3221
  %v3224 = vsel %vm58, %v3222, 0.0
  %v3225 = vrot.slane %v3224, 4
  %v3226 = vadd.f32 %v3224, %v3225
  %v3227 = vrot.slane %v3226, 2
  %v3228 = vadd.f32 %v3226, %v3227
  %v3229 = vrot.slane %v3228, 1
  %v3230 = vadd.f32 %v3228, %v3229
  %v3231 = vsel %vm58, %v3223, 0.0
  %v3232 = vrot.slane %v3231, 4
  %v3233 = vadd.f32 %v3231, %v3232
  %v3234 = vrot.slane %v3233, 2
  %v3235 = vadd.f32 %v3233, %v3234
  %v3236 = vrot.slane %v3235, 1
  %v3237 = vadd.f32 %v3235, %v3236
  %v3238 = vrcp.pop 8.0
  %v3239 = vmul.f32 %v3230, %v3238
  %v3240 = vmul.f32 %v3237, %v3238
  %v3241 = vld [vmem:[%s7] sm:$0xff]
  %v3242 = vld [vmem:[%s7 + $0x8] sm:$0xff]
  %v3243 = vld [vmem:[%s7 + $0x10] sm:$0xff]
  %v3244 = vld [vmem:[%s7 + $0x18] sm:$0xff]
  %v3245 = vld [vmem:[%s13] sm:$0x1]
  %v3246 = vlaneseq
  %v3247 = vshrl.u32 %v3246, 7
  %v3248 = vsub.s32 0, %v3247
  %v3249 = vrot.slane %v3245, %v3248
  %v3252 = vsel %vm1109, %v3240, %v3239
  %v3253 = vsel %vm58, %v3252, 0
  %3255 = vmatprep.subr.mxu0 0.0
  %3256 = vmatpush1.msra.mxu0 %v3241
  %3257 = vmatprep.subr.mxu0 0.0
  %3258 = vmatpush1.msra.mxu0 %v3242
  %3259 = vmatprep.subr.mxu0 0.0
  %3260 = vmatpush1.msra.mxu0 %v3243
  %3261 = vmatprep.subr.mxu0 0.0
  %3262 = vmatpush1.msra.mxu0 %v3244
  %3263 = vmatprep.subr.mxu0 0.0
  %3264 = vmatpush1.msra.mxu0 0.0
  %3265 = vmatprep.subr.mxu0 0.0
  %3266 = vmatpush1.msra.mxu0 0.0
  %3267 = vmatprep.subr.mxu0 0.0
  %3268 = vmatpush1.msra.mxu0 0.0
  %3269 = vmatprep.subr.mxu0 0.0
  %3270 = vmatpush1.msra.mxu0 0.0
  %3271 = vmatprep.subr.mxu0 0.0
  %3272 = vmatpush1.msra.mxu0 0.0
  %3273 = vmatprep.subr.mxu0 0.0
  %3274 = vmatpush1.msra.mxu0 0.0
  %3275 = vmatprep.subr.mxu0 0.0
  %3276 = vmatpush1.msra.mxu0 0.0
  %3277 = vmatprep.subr.mxu0 0.0
  %3278 = vmatpush1.msra.mxu0 0.0
  %3279 = vmatprep.subr.mxu0 0.0
  %3280 = vmatpush1.msra.mxu0 0.0
  %3281 = vmatprep.subr.mxu0 0.0
  %3282 = vmatpush1.msra.mxu0 0.0
  %3283 = vmatprep.subr.mxu0 0.0
  %3284 = vmatpush1.msra.mxu0 0.0
  %3285 = vmatprep.subr.mxu0 0.0
  %3286 = vmatpush1.msra.mxu0 0.0
  %3287 = vmatprep.subr.mxu0 0.0
  %3288 = vmatpush1.msra.mxu0 0.0
  %3289 = vmatprep.subr.mxu0 0.0
  %3290 = vmatpush1.msra.mxu0 0.0
  %3291 = vmatprep.subr.mxu0 0.0
  %3292 = vmatpush1.msra.mxu0 0.0
  %3293 = vmatprep.subr.mxu0 0.0
  %3294 = vmatpush1.msra.mxu0 0.0
  %3295 = vmatprep.subr.mxu0 0.0
  %3296 = vmatpush1.msra.mxu0 0.0
  %3297 = vmatprep.subr.mxu0 0.0
  %3298 = vmatpush1.msra.mxu0 0.0
  %3299 = vmatprep.subr.mxu0 0.0
  %3300 = vmatpush1.msra.mxu0 0.0
  %3301 = vmatprep.subr.mxu0 0.0
  %3302 = vmatpush1.msra.mxu0 0.0
  %3303 = vmatprep.subr.mxu0 0.0
  %3304 = vmatpush1.msra.mxu0 0.0
  %3305 = vmatprep.subr.mxu0 0.0
  %3306 = vmatpush1.msra.mxu0 0.0
  %3307 = vmatprep.subr.mxu0 0.0
  %3308 = vmatpush1.msra.mxu0 0.0
  %3309 = vmatprep.subr.mxu0 0.0
  %3310 = vmatpush1.msra.mxu0 0.0
  %3311 = vmatprep.subr.mxu0 0.0
  %3312 = vmatpush1.msra.mxu0 0.0
  %3313 = vmatprep.subr.mxu0 0.0
  %3314 = vmatpush1.msra.mxu0 0.0
  %3315 = vmatprep.subr.mxu0 0.0
  %3316 = vmatpush1.msra.mxu0 0.0
  %3317 = vmatprep.subr.mxu0 0.0
  %3318 = vmatpush1.msra.mxu0 0.0
  %3319 = vmatprep.mubr.f32.mxu0 0.0
  %3320 = vmatmul.mubr.f32.gmra.mrb[0].mxu0 %v3253
  %v3321 = vpop.f32.mrb[0].mxu0
  %v3322 = vadd.f32 %v3249, %v3321
  %v3323 = vpop.f32.mrb[0].mxu0
  %3324 = vdwg.mxu0
  %v3325 = vmax.f32 %v3322, 0.0
  %v3326 = vld [vmem:[%s8] sm:$0xff]
  %v3327 = vld [vmem:[%s8 + $0x8] sm:$0xff]
  %v3328 = vld [vmem:[%s8 + $0x10] sm:$0xff]
  %v3329 = vld [vmem:[%s8 + $0x18] sm:$0xff]
  %v3330 = vld [vmem:[%s8 + $0x20] sm:$0xff]
  %v3331 = vld [vmem:[%s8 + $0x28] sm:$0xff]
  %v3332 = vld [vmem:[%s8 + $0x30] sm:$0xff]
  %v3333 = vld [vmem:[%s8 + $0x38] sm:$0xff]
  %v3334 = vld [vmem:[%s13 + $0x1] sm:$0x1]
  %v3335 = vlaneseq
  %v3336 = vshrl.u32 %v3335, 7
  %v3337 = vsub.s32 0, %v3336
  %v3338 = vrot.slane %v3334, %v3337
  %vm3339 = vcmask 523264
  %v3341 = vsel %vm3339, %v3325, 0
  %3343 = vmatprep.subr.mxu0 0.0
  %3344 = vmatpush1.msra.mxu0 %v3326
  %3345 = vmatprep.subr.mxu0 0.0
  %3346 = vmatpush1.msra.mxu0 %v3327
  %3347 = vmatprep.subr.mxu0 0.0
  %3348 = vmatpush1.msra.mxu0 %v3328
  %3349 = vmatprep.subr.mxu0 0.0
  %3350 = vmatpush1.msra.mxu0 %v3329
  %3351 = vmatprep.subr.mxu0 0.0
  %3352 = vmatpush1.msra.mxu0 %v3330
  %3353 = vmatprep.subr.mxu0 0.0
  %3354 = vmatpush1.msra.mxu0 %v3331
  %3355 = vmatprep.subr.mxu0 0.0
  %3356 = vmatpush1.msra.mxu0 %v3332
  %3357 = vmatprep.subr.mxu0 0.0
  %3358 = vmatpush1.msra.mxu0 %v3333
  %3359 = vmatprep.subr.mxu0 0.0
  %3360 = vmatpush1.msra.mxu0 0.0
  %3361 = vmatprep.subr.mxu0 0.0
  %3362 = vmatpush1.msra.mxu0 0.0
  %3363 = vmatprep.subr.mxu0 0.0
  %3364 = vmatpush1.msra.mxu0 0.0
  %3365 = vmatprep.subr.mxu0 0.0
  %3366 = vmatpush1.msra.mxu0 0.0
  %3367 = vmatprep.subr.mxu0 0.0
  %3368 = vmatpush1.msra.mxu0 0.0
  %3369 = vmatprep.subr.mxu0 0.0
  %3370 = vmatpush1.msra.mxu0 0.0
  %3371 = vmatprep.subr.mxu0 0.0
  %3372 = vmatpush1.msra.mxu0 0.0
  %3373 = vmatprep.subr.mxu0 0.0
  %3374 = vmatpush1.msra.mxu0 0.0
  %3375 = vmatprep.subr.mxu0 0.0
  %3376 = vmatpush1.msra.mxu0 0.0
  %3377 = vmatprep.subr.mxu0 0.0
  %3378 = vmatpush1.msra.mxu0 0.0
  %3379 = vmatprep.subr.mxu0 0.0
  %3380 = vmatpush1.msra.mxu0 0.0
  %3381 = vmatprep.subr.mxu0 0.0
  %3382 = vmatpush1.msra.mxu0 0.0
  %3383 = vmatprep.subr.mxu0 0.0
  %3384 = vmatpush1.msra.mxu0 0.0
  %3385 = vmatprep.subr.mxu0 0.0
  %3386 = vmatpush1.msra.mxu0 0.0
  %3387 = vmatprep.subr.mxu0 0.0
  %3388 = vmatpush1.msra.mxu0 0.0
  %3389 = vmatprep.subr.mxu0 0.0
  %3390 = vmatpush1.msra.mxu0 0.0
  %3391 = vmatprep.subr.mxu0 0.0
  %3392 = vmatpush1.msra.mxu0 0.0
  %3393 = vmatprep.subr.mxu0 0.0
  %3394 = vmatpush1.msra.mxu0 0.0
  %3395 = vmatprep.subr.mxu0 0.0
  %3396 = vmatpush1.msra.mxu0 0.0
  %3397 = vmatprep.subr.mxu0 0.0
  %3398 = vmatpush1.msra.mxu0 0.0
  %3399 = vmatprep.subr.mxu0 0.0
  %3400 = vmatpush1.msra.mxu0 0.0
  %3401 = vmatprep.subr.mxu0 0.0
  %3402 = vmatpush1.msra.mxu0 0.0
  %3403 = vmatprep.subr.mxu0 0.0
  %3404 = vmatpush1.msra.mxu0 0.0
  %3405 = vmatprep.subr.mxu0 0.0
  %3406 = vmatpush1.msra.mxu0 0.0
  %3407 = vmatprep.mubr.f32.mxu0 0.0
  %3408 = vmatmul.mubr.f32.gmra.mrb[0].mxu0 %v3341
  %v3409 = vpop.f32.mrb[0].mxu0
  %v3410 = vadd.f32 %v3338, %v3409
  %v3411 = vpop.f32.mrb[0].mxu0
  %3412 = vdwg.mxu0
  %v3413 = vmax.f32 %v3410, 0.0
  %v3414 = vld [vmem:[%s9] sm:$0xff]
  %v3415 = vld [vmem:[%s9 + $0x8] sm:$0xff]
  %v3416 = vld [vmem:[%s9 + $0x10] sm:$0xff]
  %v3417 = vld [vmem:[%s9 + $0x18] sm:$0xff]
  %v3418 = vld [vmem:[%s13 + $0x2] sm:$0x1]
  %v3419 = vlaneseq
  %v3420 = vshrl.u32 %v3419, 7
  %v3421 = vsub.s32 0, %v3420
  %v3422 = vrot.slane %v3418, %v3421
  %v3424 = vsel %vm58, %v3413, 0
  %3426 = vmatprep.subr.mxu0 0.0
  %3427 = vmatpush1.msra.mxu0 %v3414
  %3428 = vmatprep.subr.mxu0 0.0
  %3429 = vmatpush1.msra.mxu0 %v3415
  %3430 = vmatprep.subr.mxu0 0.0
  %3431 = vmatpush1.msra.mxu0 %v3416
  %3432 = vmatprep.subr.mxu0 0.0
  %3433 = vmatpush1.msra.mxu0 %v3417
  %3434 = vmatprep.subr.mxu0 0.0
  %3435 = vmatpush1.msra.mxu0 0.0
  %3436 = vmatprep.subr.mxu0 0.0
  %3437 = vmatpush1.msra.mxu0 0.0
  %3438 = vmatprep.subr.mxu0 0.0
  %3439 = vmatpush1.msra.mxu0 0.0
  %3440 = vmatprep.subr.mxu0 0.0
  %3441 = vmatpush1.msra.mxu0 0.0
  %3442 = vmatprep.subr.mxu0 0.0
  %3443 = vmatpush1.msra.mxu0 0.0
  %3444 = vmatprep.subr.mxu0 0.0
  %3445 = vmatpush1.msra.mxu0 0.0
  %3446 = vmatprep.subr.mxu0 0.0
  %3447 = vmatpush1.msra.mxu0 0.0
  %3448 = vmatprep.subr.mxu0 0.0
  %3449 = vmatpush1.msra.mxu0 0.0
  %3450 = vmatprep.subr.mxu0 0.0
  %3451 = vmatpush1.msra.mxu0 0.0
  %3452 = vmatprep.subr.mxu0 0.0
  %3453 = vmatpush1.msra.mxu0 0.0
  %3454 = vmatprep.subr.mxu0 0.0
  %3455 = vmatpush1.msra.mxu0 0.0
  %3456 = vmatprep.subr.mxu0 0.0
  %3457 = vmatpush1.msra.mxu0 0.0
  %3458 = vmatprep.subr.mxu0 0.0
  %3459 = vmatpush1.msra.mxu0 0.0
  %3460 = vmatprep.subr.mxu0 0.0
  %3461 = vmatpush1.msra.mxu0 0.0
  %3462 = vmatprep.subr.mxu0 0.0
  %3463 = vmatpush1.msra.mxu0 0.0
  %3464 = vmatprep.subr.mxu0 0.0
  %3465 = vmatpush1.msra.mxu0 0.0
  %3466 = vmatprep.subr.mxu0 0.0
  %3467 = vmatpush1.msra.mxu0 0.0
  %3468 = vmatprep.subr.mxu0 0.0
  %3469 = vmatpush1.msra.mxu0 0.0
  %3470 = vmatprep.subr.mxu0 0.0
  %3471 = vmatpush1.msra.mxu0 0.0
  %3472 = vmatprep.subr.mxu0 0.0
  %3473 = vmatpush1.msra.mxu0 0.0
  %3474 = vmatprep.subr.mxu0 0.0
  %3475 = vmatpush1.msra.mxu0 0.0
  %3476 = vmatprep.subr.mxu0 0.0
  %3477 = vmatpush1.msra.mxu0 0.0
  %3478 = vmatprep.subr.mxu0 0.0
  %3479 = vmatpush1.msra.mxu0 0.0
  %3480 = vmatprep.subr.mxu0 0.0
  %3481 = vmatpush1.msra.mxu0 0.0
  %3482 = vmatprep.subr.mxu0 0.0
  %3483 = vmatpush1.msra.mxu0 0.0
  %3484 = vmatprep.subr.mxu0 0.0
  %3485 = vmatpush1.msra.mxu0 0.0
  %3486 = vmatprep.subr.mxu0 0.0
  %3487 = vmatpush1.msra.mxu0 0.0
  %3488 = vmatprep.subr.mxu0 0.0
  %3489 = vmatpush1.msra.mxu0 0.0
  %3490 = vmatprep.mubr.f32.mxu0 0.0
  %3491 = vmatmul.mubr.f32.gmra.mrb[0].mxu0 %v3424
  %v3492 = vpop.f32.mrb[0].mxu0
  %v3493 = vadd.f32 %v3422, %v3492
  %v3494 = vpop.f32.mrb[0].mxu0
  %3495 = vdwg.mxu0
  %v3496 = vxor.u32 %v3493, 2147483648
  %v3497 = vmul.f32 %v3496, 1.442695
  %v3498 = vpow.pop %v3497
  %v3499 = vadd.f32 %v3498, 1.0
  %v3500 = vrcp.pop %v3499
  %v3501 = vmul.f32 1.0, %v3500
  %vm3502 = vcmask 1024
  %3503 = vst.msk [vmem:[%s14] sm:$0x3] %vm3502, %v3501
  // Predicated region
  $region58: #{tpu_custom_call.1} parent=0 // pred_check
    _
  $region59: #{tpu_custom_call.1} parent=0 // pred_check_branch
    %3505 = sbr.rel (0) target = $region61
  $region60: #{tpu_custom_call.1} parent=0 // pred_region
    _
  $region61: #{tpu_custom_call.1} parent=0 // pred_fallthru
    _
  // Predicated region
  $region62: #{tpu_custom_call.1} parent=0 // pred_check
    _
  $region63: #{tpu_custom_call.1} parent=0 // pred_check_branch
    %3507 = sbr.rel (0) target = $region65
  $region64: #{tpu_custom_call.1} parent=0 // pred_region
    _
  $region65: #{tpu_custom_call.1} parent=0 // pred_fallthru
    _

</llo_original>
